<compile_context>
chip_gen: v7x
topology: tpu7x:2x2x1
jax: 0.10.0
libtpu: 0.0.40
codegen_flags: <defaults>
</compile_context>

<pallas_src>
import functools
import math

import jax
import jax.numpy as jnp
from jax import lax
from jax.experimental import pallas as pl
from jax.experimental.pallas import tpu as pltpu

# ---- small BERT config ----
VOCAB = 100
HIDDEN = 32
HEADS = 4
HEAD_DIM = HIDDEN // HEADS
INTER = 64
LAYERS = 2
MAX_POS = 16
TYPES = 2
SEQ = 8
BATCH = 2
LN_EPS = 1e-12
NEG_INF = -10000.0   # HF extended-attention-mask fill value
HP = 128             # lane-dense padded feature width (HIDDEN, 3*HIDDEN, INTER <= 128)


def _gelu(x):
    # TODO(synk): HF BERT default is erf-based GELU; using tanh approximation here.
    c = math.sqrt(2.0 / math.pi)
    return 0.5 * x * (1.0 + jnp.tanh(c * (x + 0.044715 * x * x * x)))


def _layernorm(x, g, b):
    # x: [rows, HP]; only the first HIDDEN lanes carry data, the rest are zero.
    # Use E[x^2] - E[x]^2 so the zero-padded lanes do not perturb the statistics;
    # gamma/beta are zero-padded, so padded lanes stay exactly zero after LN.
    mu = jnp.sum(x, axis=-1, keepdims=True) * (1.0 / HIDDEN)
    ex2 = jnp.sum(x * x, axis=-1, keepdims=True) * (1.0 / HIDDEN)
    var = ex2 - mu * mu
    return (x - mu) * lax.rsqrt(var + LN_EPS) * g + b


# --------------------------- fused Pallas kernel -----------------------------

def _bert_kernel(x_ref, mask_ref, eg_ref, eb_ref,
                 wqkv_ref, bqkv_ref, wo_ref, bo_ref, ln1g_ref, ln1b_ref,
                 wi_ref, bi_ref, wo2_ref, bo2_ref, ln2g_ref, ln2b_ref,
                 pw_ref, pb_ref,
                 seq_ref, pool_ref):
    # One grid step == one batch element (one sequence).
    x = x_ref[0]                                   # [SEQ, HP]  (word+pos+type embeddings)
    bias = mask_ref[0]                             # [1, SEQ]   additive mask bias (precomputed)

    # Embedding LayerNorm (no residual).
    x = _layernorm(x, eg_ref[...], eb_ref[...])

    scale = 1.0 / math.sqrt(HEAD_DIM)

    for l in range(LAYERS):
        # ---- fused QKV projection: one MXU pass ----
        qkv = jnp.dot(x, wqkv_ref[l], preferred_element_type=jnp.float32) + bqkv_ref[l]
        # columns:  [0, H) = Q, [H, 2H) = K, [2H, 3H) = V   (rest zero padding)

        # ---- multi-head attention + output projection (accumulated per head) ----
        wo_l = wo_ref[l]                           # [HP, HP]
        attn = jnp.zeros((SEQ, HP), jnp.float32)
        for h in range(HEADS):
            lo = h * HEAD_DIM
            q_h = qkv[:, lo:lo + HEAD_DIM]                         # [SEQ, Dh]
            k_h = qkv[:, HIDDEN + lo:HIDDEN + lo + HEAD_DIM]       # [SEQ, Dh]
            v_h = qkv[:, 2 * HIDDEN + lo:2 * HIDDEN + lo + HEAD_DIM]

            s = lax.dot_general(q_h, k_h, (((1,), (1,)), ((), ())),
                                preferred_element_type=jnp.float32) * scale
            s = s + bias                                           # broadcast over queries
            s = s - jnp.max(s, axis=-1, keepdims=True)
            p = jnp.exp(s)
            p = p * pl.reciprocal(jnp.sum(p, axis=-1, keepdims=True), approx=True)
            ctx = jnp.dot(p, v_h, preferred_element_type=jnp.float32)   # [SEQ, Dh]

            # fold the head directly into the output projection (avoids concat)
            attn = attn + jnp.dot(ctx, wo_l[lo:lo + HEAD_DIM, :],
                                  preferred_element_type=jnp.float32)
        attn = attn + bo_ref[l]

        # ---- add & norm ----
        x = _layernorm(attn + x, ln1g_ref[l], ln1b_ref[l])

        # ---- feed-forward ----
        ff = jnp.dot(x, wi_ref[l], preferred_element_type=jnp.float32) + bi_ref[l]
        ff = _gelu(ff)
        ff = jnp.dot(ff, wo2_ref[l], preferred_element_type=jnp.float32) + bo2_ref[l]

        # ---- add & norm ----
        x = _layernorm(ff + x, ln2g_ref[l], ln2b_ref[l])

    # last_hidden_state (lane-dense padded store; sliced to HIDDEN in JAX glue)
    seq_ref[0] = x.astype(seq_ref.dtype)

    # pooler: tanh(CLS @ W + b)  (fused epilogue, no separate kernel launch)
    cls = x[0:1, :]
    pooled = jnp.tanh(jnp.dot(cls, pw_ref[...], preferred_element_type=jnp.float32)
                      + pb_ref[...])
    pool_ref[0] = pooled.astype(pool_ref.dtype)


def _fused_bert(x_emb, mask_bias, pk):
    B = x_emb.shape[0]
    w3 = lambda b: (0, 0, 0)
    w2 = lambda b: (0, 0)
    in_specs = [
        pl.BlockSpec((1, SEQ, HP), lambda b: (b, 0, 0)),        # embeddings
        pl.BlockSpec((1, 1, SEQ), lambda b: (b, 0, 0)),         # mask bias
        pl.BlockSpec((1, HP), w2),                              # emb LN gamma
        pl.BlockSpec((1, HP), w2),                              # emb LN beta
        pl.BlockSpec((LAYERS, HP, HP), w3),                     # wqkv
        pl.BlockSpec((LAYERS, 1, HP), w3),                      # bqkv
        pl.BlockSpec((LAYERS, HP, HP), w3),                     # wo
        pl.BlockSpec((LAYERS, 1, HP), w3),                      # bo
        pl.BlockSpec((LAYERS, 1, HP), w3),                      # ln1 gamma
        pl.BlockSpec((LAYERS, 1, HP), w3),                      # ln1 beta
        pl.BlockSpec((LAYERS, HP, HP), w3),                     # wi
        pl.BlockSpec((LAYERS, 1, HP), w3),                      # bi
        pl.BlockSpec((LAYERS, HP, HP), w3),                     # wo2
        pl.BlockSpec((LAYERS, 1, HP), w3),                      # bo2
        pl.BlockSpec((LAYERS, 1, HP), w3),                      # ln2 gamma
        pl.BlockSpec((LAYERS, 1, HP), w3),                      # ln2 beta
        pl.BlockSpec((HP, HP), w2),                             # pooler w
        pl.BlockSpec((1, HP), w2),                              # pooler b
    ]
    out_specs = [
        pl.BlockSpec((1, SEQ, HP), lambda b: (b, 0, 0)),        # last_hidden_state (padded)
        pl.BlockSpec((1, 1, HP), lambda b: (b, 0, 0)),          # pooler output (padded)
    ]
    return pl.pallas_call(
        _bert_kernel,
        out_shape=(jax.ShapeDtypeStruct((B, SEQ, HP), jnp.float32),
                   jax.ShapeDtypeStruct((B, 1, HP), jnp.float32)),
        grid=(B,),
        in_specs=in_specs,
        out_specs=out_specs,
        compiler_params=pltpu.CompilerParams(dimension_semantics=("parallel",)),
    )(x_emb, mask_bias,
      pk["emb_ln_g"], pk["emb_ln_b"],
      pk["wqkv"], pk["bqkv"], pk["wo"], pk["bo"],
      pk["ln1_g"], pk["ln1_b"],
      pk["wi"], pk["bi"], pk["wo2"], pk["bo2"],
      pk["ln2_g"], pk["ln2_b"],
      pk["pooler_w"], pk["pooler_b"])


# ------------------------- parameters & forward ------------------------------

def init_params(key):
    ki = iter(jax.random.split(key, 8 + LAYERS * 16))

    def w(shape):
        return jax.random.normal(next(ki), shape, jnp.float32) * 0.02

    p = {
        "word_emb": w((VOCAB, HIDDEN)),
        "pos_emb": w((MAX_POS, HIDDEN)),
        "type_emb": w((TYPES, HIDDEN)),
        "emb_ln_g": jnp.ones((HIDDEN,), jnp.float32),
        "emb_ln_b": jnp.zeros((HIDDEN,), jnp.float32),
        "pooler_w": w((HIDDEN, HIDDEN)),
        "pooler_b": jnp.zeros((HIDDEN,), jnp.float32),
        "layers": [],
    }
    for _ in range(LAYERS):
        p["layers"].append({
            "wq": w((HIDDEN, HIDDEN)), "bq": jnp.zeros((HIDDEN,), jnp.float32),
            "wk": w((HIDDEN, HIDDEN)), "bk": jnp.zeros((HIDDEN,), jnp.float32),
            "wv": w((HIDDEN, HIDDEN)), "bv": jnp.zeros((HIDDEN,), jnp.float32),
            "wo": w((HIDDEN, HIDDEN)), "bo": jnp.zeros((HIDDEN,), jnp.float32),
            "ln1_g": jnp.ones((HIDDEN,), jnp.float32),
            "ln1_b": jnp.zeros((HIDDEN,), jnp.float32),
            "wi": w((HIDDEN, INTER)), "bi": jnp.zeros((INTER,), jnp.float32),
            "wo2": w((INTER, HIDDEN)), "bo2": jnp.zeros((HIDDEN,), jnp.float32),
            "ln2_g": jnp.ones((HIDDEN,), jnp.float32),
            "ln2_b": jnp.zeros((HIDDEN,), jnp.float32),
        })
    return p


def pack_params(p):
    """Pad every feature dim to 128 lanes (zero fill) and stack per-layer weights.

    Zero padding keeps the math identical: padded weight rows/cols are zero,
    padded biases/gammas/betas are zero, so padded lanes stay exactly zero.
    """
    def padw(w):
        out = jnp.zeros((HP, HP), jnp.float32)
        return out.at[: w.shape[0], : w.shape[1]].set(w)

    def padv(v):
        out = jnp.zeros((1, HP), jnp.float32)
        return out.at[0, : v.shape[0]].set(v)

    stk = lambda xs: jnp.stack(xs, axis=0)
    L = p["layers"]
    return {
        "word_emb": p["word_emb"],
        "pos_emb": p["pos_emb"],
        "type_emb": p["type_emb"],
        "emb_ln_g": padv(p["emb_ln_g"]),
        "emb_ln_b": padv(p["emb_ln_b"]),
        "wqkv": stk([padw(jnp.concatenate([l["wq"], l["wk"], l["wv"]], axis=1)) for l in L]),
        "bqkv": stk([padv(jnp.concatenate([l["bq"], l["bk"], l["bv"]])) for l in L]),
        "wo": stk([padw(l["wo"]) for l in L]),
        "bo": stk([padv(l["bo"]) for l in L]),
        "ln1_g": stk([padv(l["ln1_g"]) for l in L]),
        "ln1_b": stk([padv(l["ln1_b"]) for l in L]),
        "wi": stk([padw(l["wi"]) for l in L]),
        "bi": stk([padv(l["bi"]) for l in L]),
        "wo2": stk([padw(l["wo2"]) for l in L]),
        "bo2": stk([padv(l["bo2"]) for l in L]),
        "ln2_g": stk([padv(l["ln2_g"]) for l in L]),
        "ln2_b": stk([padv(l["ln2_b"]) for l in L]),
        "pooler_w": padw(p["pooler_w"]),
        "pooler_b": padv(p["pooler_b"]),
    }


def bert_forward(pk, tokens, segments, input_masks):
    B, S = tokens.shape

    # --- embedding gathers stay in plain JAX (data-dependent gather) ---
    emb = (pk["word_emb"][tokens]
           + pk["pos_emb"][jnp.arange(S)][None, :, :]
           + pk["type_emb"][segments])                      # [B, S, HIDDEN]
    x_emb = jnp.pad(emb, ((0, 0), (0, 0), (0, HP - HIDDEN)))  # lane-dense [B, S, 128]

    # additive attention-mask bias, computed once (not per layer)
    mask_bias = ((1.0 - input_masks.astype(jnp.float32)) * NEG_INF).reshape(B, 1, S)

    seq_p, pool_p = _fused_bert(x_emb, mask_bias, pk)

    seq_out = seq_p[:, :, :HIDDEN]        # last_hidden_state  [B, S, H]
    pooled = pool_p[:, 0, :HIDDEN]        # pooler_output      [B, H]

    # mirrors `output, att_scores = BertModel(...)`; return (output[0], att_scores)
    return seq_out[0], pooled


if __name__ == "__main__":
    key = jax.random.PRNGKey(0)
    pkey, tkey = jax.random.split(key)
    params = pack_params(init_params(pkey))

    tokens = jax.random.randint(tkey, (BATCH, SEQ), 0, VOCAB, dtype=jnp.int32)
    segments = jnp.zeros((BATCH, SEQ), jnp.int32)
    lens = jnp.array([6, 8], jnp.int32)
    input_masks = (jnp.arange(SEQ)[None, :] < lens[:, None]).astype(jnp.int32)

    fwd = jax.jit(functools.partial(bert_forward, params))
    out0, att_scores = fwd(tokens, segments, input_masks)
    jax.block_until_ready((out0, att_scores))
    assert out0.shape == (SEQ, HIDDEN)
    assert att_scores.shape == (BATCH, HIDDEN)
    print("KERNEL_OK")
</pallas_src>

<mosaic_0001>
module attributes {stable_mosaic.version = 11 : i64} {
  func.func @_bert_kernel(%arg0: i32, %arg1: memref<1x8x128xf32, #tpu.memory_space<vmem>>, %arg2: memref<1x1x8xf32, #tpu.memory_space<vmem>>, %arg3: memref<1x128xf32, #tpu.memory_space<vmem>>, %arg4: memref<1x128xf32, #tpu.memory_space<vmem>>, %arg5: memref<2x128x128xf32, #tpu.memory_space<vmem>>, %arg6: memref<2x1x128xf32, #tpu.memory_space<vmem>>, %arg7: memref<2x128x128xf32, #tpu.memory_space<vmem>>, %arg8: memref<2x1x128xf32, #tpu.memory_space<vmem>>, %arg9: memref<2x1x128xf32, #tpu.memory_space<vmem>>, %arg10: memref<2x1x128xf32, #tpu.memory_space<vmem>>, %arg11: memref<2x128x128xf32, #tpu.memory_space<vmem>>, %arg12: memref<2x1x128xf32, #tpu.memory_space<vmem>>, %arg13: memref<2x128x128xf32, #tpu.memory_space<vmem>>, %arg14: memref<2x1x128xf32, #tpu.memory_space<vmem>>, %arg15: memref<2x1x128xf32, #tpu.memory_space<vmem>>, %arg16: memref<2x1x128xf32, #tpu.memory_space<vmem>>, %arg17: memref<128x128xf32, #tpu.memory_space<vmem>>, %arg18: memref<1x128xf32, #tpu.memory_space<vmem>>, %arg19: memref<1x8x128xf32, #tpu.memory_space<vmem>>, %arg20: memref<1x1x128xf32, #tpu.memory_space<vmem>>) attributes {dimension_semantics = [#tpu.dimension_semantics<parallel>], iteration_bounds = array<i64: 2>, scalar_prefetch = 0 : i64, scratch_operands = 0 : i64, tpu.core_type = #tpu.core_type<tc>, window_params = [{transform_indices = @transform_0, window_bounds = array<i64: 1, 8, 128>}, {transform_indices = @transform_1, window_bounds = array<i64: 1, 1, 8>}, {pipeline_mode = #tpu.pipeline_mode<synchronous>, transform_indices = @transform_2, window_bounds = array<i64: 1, 128>}, {pipeline_mode = #tpu.pipeline_mode<synchronous>, transform_indices = @transform_3, window_bounds = array<i64: 1, 128>}, {pipeline_mode = #tpu.pipeline_mode<synchronous>, transform_indices = @transform_4, window_bounds = array<i64: 2, 128, 128>}, {pipeline_mode = #tpu.pipeline_mode<synchronous>, transform_indices = @transform_5, window_bounds = array<i64: 2, 1, 128>}, {pipeline_mode = #tpu.pipeline_mode<synchronous>, transform_indices = @transform_6, window_bounds = array<i64: 2, 128, 128>}, {pipeline_mode = #tpu.pipeline_mode<synchronous>, transform_indices = @transform_7, window_bounds = array<i64: 2, 1, 128>}, {pipeline_mode = #tpu.pipeline_mode<synchronous>, transform_indices = @transform_8, window_bounds = array<i64: 2, 1, 128>}, {pipeline_mode = #tpu.pipeline_mode<synchronous>, transform_indices = @transform_9, window_bounds = array<i64: 2, 1, 128>}, {pipeline_mode = #tpu.pipeline_mode<synchronous>, transform_indices = @transform_10, window_bounds = array<i64: 2, 128, 128>}, {pipeline_mode = #tpu.pipeline_mode<synchronous>, transform_indices = @transform_11, window_bounds = array<i64: 2, 1, 128>}, {pipeline_mode = #tpu.pipeline_mode<synchronous>, transform_indices = @transform_12, window_bounds = array<i64: 2, 128, 128>}, {pipeline_mode = #tpu.pipeline_mode<synchronous>, transform_indices = @transform_13, window_bounds = array<i64: 2, 1, 128>}, {pipeline_mode = #tpu.pipeline_mode<synchronous>, transform_indices = @transform_14, window_bounds = array<i64: 2, 1, 128>}, {pipeline_mode = #tpu.pipeline_mode<synchronous>, transform_indices = @transform_15, window_bounds = array<i64: 2, 1, 128>}, {pipeline_mode = #tpu.pipeline_mode<synchronous>, transform_indices = @transform_16, window_bounds = array<i64: 128, 128>}, {pipeline_mode = #tpu.pipeline_mode<synchronous>, transform_indices = @transform_17, window_bounds = array<i64: 1, 128>}, {transform_indices = @transform_18, window_bounds = array<i64: 1, 8, 128>}, {transform_indices = @transform_19, window_bounds = array<i64: 1, 1, 128>}]} {
    %c0 = arith.constant 0 : index
    %c0_0 = arith.constant 0 : index
    %c0_1 = arith.constant 0 : index
    %0 = vector.load %arg1[%c0, %c0_0, %c0_1] : memref<1x8x128xf32, #tpu.memory_space<vmem>>, vector<1x8x128xf32>
    %1 = vector.shape_cast %0 : vector<1x8x128xf32> to vector<8x128xf32>
    %c0_2 = arith.constant 0 : index
    %c0_3 = arith.constant 0 : index
    %c0_4 = arith.constant 0 : index
    %2 = vector.load %arg2[%c0_2, %c0_3, %c0_4] : memref<1x1x8xf32, #tpu.memory_space<vmem>>, vector<1x1x8xf32>
    %3 = vector.shape_cast %2 : vector<1x1x8xf32> to vector<1x8xf32>
    %c0_5 = arith.constant 0 : index
    %c0_6 = arith.constant 0 : index
    %4 = vector.load %arg3[%c0_5, %c0_6] : memref<1x128xf32, #tpu.memory_space<vmem>>, vector<1x128xf32>
    %c0_7 = arith.constant 0 : index
    %c0_8 = arith.constant 0 : index
    %5 = vector.load %arg4[%c0_7, %c0_8] : memref<1x128xf32, #tpu.memory_space<vmem>>, vector<1x128xf32>
    %cst = arith.constant dense<0.000000e+00> : vector<8xf32>
    %6 = vector.multi_reduction <add>, %1, %cst [1] : vector<8x128xf32> to vector<8xf32>
    %7 = vector.shape_cast %6 : vector<8xf32> to vector<8x1xf32>
    %cst_9 = arith.constant 3.125000e-02 : f32
    %8 = vector.broadcast %cst_9 : f32 to vector<8x1xf32>
    %9 = arith.mulf %7, %8 : vector<8x1xf32>
    %10 = arith.mulf %1, %1 : vector<8x128xf32>
    %cst_10 = arith.constant dense<0.000000e+00> : vector<8xf32>
    %11 = vector.multi_reduction <add>, %10, %cst_10 [1] : vector<8x128xf32> to vector<8xf32>
    %12 = vector.shape_cast %11 : vector<8xf32> to vector<8x1xf32>
    %cst_11 = arith.constant 3.125000e-02 : f32
    %13 = vector.broadcast %cst_11 : f32 to vector<8x1xf32>
    %14 = arith.mulf %12, %13 : vector<8x1xf32>
    %15 = arith.mulf %9, %9 : vector<8x1xf32>
    %16 = arith.subf %14, %15 : vector<8x1xf32>
    %17 = vector.broadcast %9 : vector<8x1xf32> to vector<8x128xf32>
    %18 = arith.subf %1, %17 : vector<8x128xf32>
    %cst_12 = arith.constant 9.99999996E-13 : f32
    %19 = vector.broadcast %cst_12 : f32 to vector<8x1xf32>
    %20 = arith.addf %16, %19 : vector<8x1xf32>
    %21 = math.rsqrt %20 : vector<8x1xf32>
    %22 = vector.broadcast %21 : vector<8x1xf32> to vector<8x128xf32>
    %23 = arith.mulf %18, %22 : vector<8x128xf32>
    %24 = vector.broadcast %4 : vector<1x128xf32> to vector<8x128xf32>
    %25 = arith.mulf %23, %24 : vector<8x128xf32>
    %26 = vector.broadcast %5 : vector<1x128xf32> to vector<8x128xf32>
    %27 = arith.addf %25, %26 : vector<8x128xf32>
    %c0_13 = arith.constant 0 : index
    %c0_14 = arith.constant 0 : index
    %c0_15 = arith.constant 0 : index
    %28 = vector.load %arg5[%c0_13, %c0_14, %c0_15] : memref<2x128x128xf32, #tpu.memory_space<vmem>>, vector<1x128x128xf32>
    %29 = vector.shape_cast %28 : vector<1x128x128xf32> to vector<128x128xf32>
    %cst_16 = arith.constant dense<0.000000e+00> : vector<8x128xf32>
    %30 = tpu.matmul %27, %29, %cst_16 {dimension_numbers = #tpu.dot_dimension_numbers<[1], [0], [0], [1], [0, 0, 1, 1], [], []>} : vector<8x128xf32>, vector<128x128xf32>, vector<8x128xf32> -> vector<8x128xf32>
    %c0_17 = arith.constant 0 : index
    %c0_18 = arith.constant 0 : index
    %c0_19 = arith.constant 0 : index
    %31 = vector.load %arg6[%c0_17, %c0_18, %c0_19] : memref<2x1x128xf32, #tpu.memory_space<vmem>>, vector<1x1x128xf32>
    %32 = vector.shape_cast %31 : vector<1x1x128xf32> to vector<1x128xf32>
    %33 = vector.broadcast %32 : vector<1x128xf32> to vector<8x128xf32>
    %34 = arith.addf %30, %33 : vector<8x128xf32>
    %c0_20 = arith.constant 0 : index
    %c0_21 = arith.constant 0 : index
    %c0_22 = arith.constant 0 : index
    %35 = vector.load %arg7[%c0_20, %c0_21, %c0_22] : memref<2x128x128xf32, #tpu.memory_space<vmem>>, vector<1x128x128xf32>
    %36 = vector.shape_cast %35 : vector<1x128x128xf32> to vector<128x128xf32>
    %cst_23 = arith.constant 0.000000e+00 : f32
    %37 = vector.broadcast %cst_23 : f32 to vector<8x128xf32>
    %38 = vector.extract_strided_slice %34 {offsets = [0, 0], sizes = [8, 8], strides = [1, 1]} : vector<8x128xf32> to vector<8x8xf32>
    %39 = vector.extract_strided_slice %34 {offsets = [0, 32], sizes = [8, 8], strides = [1, 1]} : vector<8x128xf32> to vector<8x8xf32>
    %40 = vector.extract_strided_slice %34 {offsets = [0, 64], sizes = [8, 8], strides = [1, 1]} : vector<8x128xf32> to vector<8x8xf32>
    %cst_24 = arith.constant dense<0.000000e+00> : vector<8x8xf32>
    %41 = tpu.matmul %38, %39, %cst_24 {dimension_numbers = #tpu.dot_dimension_numbers<[1], [1], [0], [0], [0, 0, 1, 0], [], []>} : vector<8x8xf32>, vector<8x8xf32>, vector<8x8xf32> -> vector<8x8xf32>
    %cst_25 = arith.constant 0.353553385 : f32
    %42 = vector.broadcast %cst_25 : f32 to vector<8x8xf32>
    %43 = arith.mulf %41, %42 : vector<8x8xf32>
    %44 = vector.broadcast %3 : vector<1x8xf32> to vector<8x8xf32>
    %45 = arith.addf %43, %44 : vector<8x8xf32>
    %cst_26 = arith.constant dense<0xFF800000> : vector<8xf32>
    %46 = vector.multi_reduction <maximumf>, %45, %cst_26 [1] : vector<8x8xf32> to vector<8xf32>
    %47 = vector.shape_cast %46 : vector<8xf32> to vector<8x1xf32>
    %48 = vector.broadcast %47 : vector<8x1xf32> to vector<8x8xf32>
    %49 = arith.subf %45, %48 : vector<8x8xf32>
    %50 = math.exp %49 : vector<8x8xf32>
    %cst_27 = arith.constant dense<0.000000e+00> : vector<8xf32>
    %51 = vector.multi_reduction <add>, %50, %cst_27 [1] : vector<8x8xf32> to vector<8xf32>
    %52 = vector.shape_cast %51 : vector<8xf32> to vector<8x1xf32>
    %53 = tpu.reciprocal %52 {approx = true} : vector<8x1xf32> -> vector<8x1xf32>
    %54 = vector.broadcast %53 : vector<8x1xf32> to vector<8x8xf32>
    %55 = arith.mulf %50, %54 : vector<8x8xf32>
    %cst_28 = arith.constant dense<0.000000e+00> : vector<8x8xf32>
    %56 = tpu.matmul %55, %40, %cst_28 {dimension_numbers = #tpu.dot_dimension_numbers<[1], [0], [0], [1], [0, 0, 1, 1], [], []>} : vector<8x8xf32>, vector<8x8xf32>, vector<8x8xf32> -> vector<8x8xf32>
    %57 = vector.extract_strided_slice %36 {offsets = [0, 0], sizes = [8, 128], strides = [1, 1]} : vector<128x128xf32> to vector<8x128xf32>
    %cst_29 = arith.constant dense<0.000000e+00> : vector<8x128xf32>
    %58 = tpu.matmul %56, %57, %cst_29 {dimension_numbers = #tpu.dot_dimension_numbers<[1], [0], [0], [1], [0, 0, 1, 1], [], []>} : vector<8x8xf32>, vector<8x128xf32>, vector<8x128xf32> -> vector<8x128xf32>
    %59 = arith.addf %37, %58 : vector<8x128xf32>
    %60 = vector.extract_strided_slice %34 {offsets = [0, 8], sizes = [8, 8], strides = [1, 1]} : vector<8x128xf32> to vector<8x8xf32>
    %61 = vector.extract_strided_slice %34 {offsets = [0, 40], sizes = [8, 8], strides = [1, 1]} : vector<8x128xf32> to vector<8x8xf32>
    %62 = vector.extract_strided_slice %34 {offsets = [0, 72], sizes = [8, 8], strides = [1, 1]} : vector<8x128xf32> to vector<8x8xf32>
    %cst_30 = arith.constant dense<0.000000e+00> : vector<8x8xf32>
    %63 = tpu.matmul %60, %61, %cst_30 {dimension_numbers = #tpu.dot_dimension_numbers<[1], [1], [0], [0], [0, 0, 1, 0], [], []>} : vector<8x8xf32>, vector<8x8xf32>, vector<8x8xf32> -> vector<8x8xf32>
    %cst_31 = arith.constant 0.353553385 : f32
    %64 = vector.broadcast %cst_31 : f32 to vector<8x8xf32>
    %65 = arith.mulf %63, %64 : vector<8x8xf32>
    %66 = vector.broadcast %3 : vector<1x8xf32> to vector<8x8xf32>
    %67 = arith.addf %65, %66 : vector<8x8xf32>
    %cst_32 = arith.constant dense<0xFF800000> : vector<8xf32>
    %68 = vector.multi_reduction <maximumf>, %67, %cst_32 [1] : vector<8x8xf32> to vector<8xf32>
    %69 = vector.shape_cast %68 : vector<8xf32> to vector<8x1xf32>
    %70 = vector.broadcast %69 : vector<8x1xf32> to vector<8x8xf32>
    %71 = arith.subf %67, %70 : vector<8x8xf32>
    %72 = math.exp %71 : vector<8x8xf32>
    %cst_33 = arith.constant dense<0.000000e+00> : vector<8xf32>
    %73 = vector.multi_reduction <add>, %72, %cst_33 [1] : vector<8x8xf32> to vector<8xf32>
    %74 = vector.shape_cast %73 : vector<8xf32> to vector<8x1xf32>
    %75 = tpu.reciprocal %74 {approx = true} : vector<8x1xf32> -> vector<8x1xf32>
    %76 = vector.broadcast %75 : vector<8x1xf32> to vector<8x8xf32>
    %77 = arith.mulf %72, %76 : vector<8x8xf32>
    %cst_34 = arith.constant dense<0.000000e+00> : vector<8x8xf32>
    %78 = tpu.matmul %77, %62, %cst_34 {dimension_numbers = #tpu.dot_dimension_numbers<[1], [0], [0], [1], [0, 0, 1, 1], [], []>} : vector<8x8xf32>, vector<8x8xf32>, vector<8x8xf32> -> vector<8x8xf32>
    %79 = vector.extract_strided_slice %36 {offsets = [8, 0], sizes = [8, 128], strides = [1, 1]} : vector<128x128xf32> to vector<8x128xf32>
    %cst_35 = arith.constant dense<0.000000e+00> : vector<8x128xf32>
    %80 = tpu.matmul %78, %79, %cst_35 {dimension_numbers = #tpu.dot_dimension_numbers<[1], [0], [0], [1], [0, 0, 1, 1], [], []>} : vector<8x8xf32>, vector<8x128xf32>, vector<8x128xf32> -> vector<8x128xf32>
    %81 = arith.addf %59, %80 : vector<8x128xf32>
    %82 = vector.extract_strided_slice %34 {offsets = [0, 16], sizes = [8, 8], strides = [1, 1]} : vector<8x128xf32> to vector<8x8xf32>
    %83 = vector.extract_strided_slice %34 {offsets = [0, 48], sizes = [8, 8], strides = [1, 1]} : vector<8x128xf32> to vector<8x8xf32>
    %84 = vector.extract_strided_slice %34 {offsets = [0, 80], sizes = [8, 8], strides = [1, 1]} : vector<8x128xf32> to vector<8x8xf32>
    %cst_36 = arith.constant dense<0.000000e+00> : vector<8x8xf32>
    %85 = tpu.matmul %82, %83, %cst_36 {dimension_numbers = #tpu.dot_dimension_numbers<[1], [1], [0], [0], [0, 0, 1, 0], [], []>} : vector<8x8xf32>, vector<8x8xf32>, vector<8x8xf32> -> vector<8x8xf32>
    %cst_37 = arith.constant 0.353553385 : f32
    %86 = vector.broadcast %cst_37 : f32 to vector<8x8xf32>
    %87 = arith.mulf %85, %86 : vector<8x8xf32>
    %88 = vector.broadcast %3 : vector<1x8xf32> to vector<8x8xf32>
    %89 = arith.addf %87, %88 : vector<8x8xf32>
    %cst_38 = arith.constant dense<0xFF800000> : vector<8xf32>
    %90 = vector.multi_reduction <maximumf>, %89, %cst_38 [1] : vector<8x8xf32> to vector<8xf32>
    %91 = vector.shape_cast %90 : vector<8xf32> to vector<8x1xf32>
    %92 = vector.broadcast %91 : vector<8x1xf32> to vector<8x8xf32>
    %93 = arith.subf %89, %92 : vector<8x8xf32>
    %94 = math.exp %93 : vector<8x8xf32>
    %cst_39 = arith.constant dense<0.000000e+00> : vector<8xf32>
    %95 = vector.multi_reduction <add>, %94, %cst_39 [1] : vector<8x8xf32> to vector<8xf32>
    %96 = vector.shape_cast %95 : vector<8xf32> to vector<8x1xf32>
    %97 = tpu.reciprocal %96 {approx = true} : vector<8x1xf32> -> vector<8x1xf32>
    %98 = vector.broadcast %97 : vector<8x1xf32> to vector<8x8xf32>
    %99 = arith.mulf %94, %98 : vector<8x8xf32>
    %cst_40 = arith.constant dense<0.000000e+00> : vector<8x8xf32>
    %100 = tpu.matmul %99, %84, %cst_40 {dimension_numbers = #tpu.dot_dimension_numbers<[1], [0], [0], [1], [0, 0, 1, 1], [], []>} : vector<8x8xf32>, vector<8x8xf32>, vector<8x8xf32> -> vector<8x8xf32>
    %101 = vector.extract_strided_slice %36 {offsets = [16, 0], sizes = [8, 128], strides = [1, 1]} : vector<128x128xf32> to vector<8x128xf32>
    %cst_41 = arith.constant dense<0.000000e+00> : vector<8x128xf32>
    %102 = tpu.matmul %100, %101, %cst_41 {dimension_numbers = #tpu.dot_dimension_numbers<[1], [0], [0], [1], [0, 0, 1, 1], [], []>} : vector<8x8xf32>, vector<8x128xf32>, vector<8x128xf32> -> vector<8x128xf32>
    %103 = arith.addf %81, %102 : vector<8x128xf32>
    %104 = vector.extract_strided_slice %34 {offsets = [0, 24], sizes = [8, 8], strides = [1, 1]} : vector<8x128xf32> to vector<8x8xf32>
    %105 = vector.extract_strided_slice %34 {offsets = [0, 56], sizes = [8, 8], strides = [1, 1]} : vector<8x128xf32> to vector<8x8xf32>
    %106 = vector.extract_strided_slice %34 {offsets = [0, 88], sizes = [8, 8], strides = [1, 1]} : vector<8x128xf32> to vector<8x8xf32>
    %cst_42 = arith.constant dense<0.000000e+00> : vector<8x8xf32>
    %107 = tpu.matmul %104, %105, %cst_42 {dimension_numbers = #tpu.dot_dimension_numbers<[1], [1], [0], [0], [0, 0, 1, 0], [], []>} : vector<8x8xf32>, vector<8x8xf32>, vector<8x8xf32> -> vector<8x8xf32>
    %cst_43 = arith.constant 0.353553385 : f32
    %108 = vector.broadcast %cst_43 : f32 to vector<8x8xf32>
    %109 = arith.mulf %107, %108 : vector<8x8xf32>
    %110 = vector.broadcast %3 : vector<1x8xf32> to vector<8x8xf32>
    %111 = arith.addf %109, %110 : vector<8x8xf32>
    %cst_44 = arith.constant dense<0xFF800000> : vector<8xf32>
    %112 = vector.multi_reduction <maximumf>, %111, %cst_44 [1] : vector<8x8xf32> to vector<8xf32>
    %113 = vector.shape_cast %112 : vector<8xf32> to vector<8x1xf32>
    %114 = vector.broadcast %113 : vector<8x1xf32> to vector<8x8xf32>
    %115 = arith.subf %111, %114 : vector<8x8xf32>
    %116 = math.exp %115 : vector<8x8xf32>
    %cst_45 = arith.constant dense<0.000000e+00> : vector<8xf32>
    %117 = vector.multi_reduction <add>, %116, %cst_45 [1] : vector<8x8xf32> to vector<8xf32>
    %118 = vector.shape_cast %117 : vector<8xf32> to vector<8x1xf32>
    %119 = tpu.reciprocal %118 {approx = true} : vector<8x1xf32> -> vector<8x1xf32>
    %120 = vector.broadcast %119 : vector<8x1xf32> to vector<8x8xf32>
    %121 = arith.mulf %116, %120 : vector<8x8xf32>
    %cst_46 = arith.constant dense<0.000000e+00> : vector<8x8xf32>
    %122 = tpu.matmul %121, %106, %cst_46 {dimension_numbers = #tpu.dot_dimension_numbers<[1], [0], [0], [1], [0, 0, 1, 1], [], []>} : vector<8x8xf32>, vector<8x8xf32>, vector<8x8xf32> -> vector<8x8xf32>
    %123 = vector.extract_strided_slice %36 {offsets = [24, 0], sizes = [8, 128], strides = [1, 1]} : vector<128x128xf32> to vector<8x128xf32>
    %cst_47 = arith.constant dense<0.000000e+00> : vector<8x128xf32>
    %124 = tpu.matmul %122, %123, %cst_47 {dimension_numbers = #tpu.dot_dimension_numbers<[1], [0], [0], [1], [0, 0, 1, 1], [], []>} : vector<8x8xf32>, vector<8x128xf32>, vector<8x128xf32> -> vector<8x128xf32>
    %125 = arith.addf %103, %124 : vector<8x128xf32>
    %c0_48 = arith.constant 0 : index
    %c0_49 = arith.constant 0 : index
    %c0_50 = arith.constant 0 : index
    %126 = vector.load %arg8[%c0_48, %c0_49, %c0_50] : memref<2x1x128xf32, #tpu.memory_space<vmem>>, vector<1x1x128xf32>
    %127 = vector.shape_cast %126 : vector<1x1x128xf32> to vector<1x128xf32>
    %128 = vector.broadcast %127 : vector<1x128xf32> to vector<8x128xf32>
    %129 = arith.addf %125, %128 : vector<8x128xf32>
    %130 = arith.addf %129, %27 : vector<8x128xf32>
    %c0_51 = arith.constant 0 : index
    %c0_52 = arith.constant 0 : index
    %c0_53 = arith.constant 0 : index
    %131 = vector.load %arg9[%c0_51, %c0_52, %c0_53] : memref<2x1x128xf32, #tpu.memory_space<vmem>>, vector<1x1x128xf32>
    %132 = vector.shape_cast %131 : vector<1x1x128xf32> to vector<1x128xf32>
    %c0_54 = arith.constant 0 : index
    %c0_55 = arith.constant 0 : index
    %c0_56 = arith.constant 0 : index
    %133 = vector.load %arg10[%c0_54, %c0_55, %c0_56] : memref<2x1x128xf32, #tpu.memory_space<vmem>>, vector<1x1x128xf32>
    %134 = vector.shape_cast %133 : vector<1x1x128xf32> to vector<1x128xf32>
    %cst_57 = arith.constant dense<0.000000e+00> : vector<8xf32>
    %135 = vector.multi_reduction <add>, %130, %cst_57 [1] : vector<8x128xf32> to vector<8xf32>
    %136 = vector.shape_cast %135 : vector<8xf32> to vector<8x1xf32>
    %cst_58 = arith.constant 3.125000e-02 : f32
    %137 = vector.broadcast %cst_58 : f32 to vector<8x1xf32>
    %138 = arith.mulf %136, %137 : vector<8x1xf32>
    %139 = arith.mulf %130, %130 : vector<8x128xf32>
    %cst_59 = arith.constant dense<0.000000e+00> : vector<8xf32>
    %140 = vector.multi_reduction <add>, %139, %cst_59 [1] : vector<8x128xf32> to vector<8xf32>
    %141 = vector.shape_cast %140 : vector<8xf32> to vector<8x1xf32>
    %cst_60 = arith.constant 3.125000e-02 : f32
    %142 = vector.broadcast %cst_60 : f32 to vector<8x1xf32>
    %143 = arith.mulf %141, %142 : vector<8x1xf32>
    %144 = arith.mulf %138, %138 : vector<8x1xf32>
    %145 = arith.subf %143, %144 : vector<8x1xf32>
    %146 = vector.broadcast %138 : vector<8x1xf32> to vector<8x128xf32>
    %147 = arith.subf %130, %146 : vector<8x128xf32>
    %cst_61 = arith.constant 9.99999996E-13 : f32
    %148 = vector.broadcast %cst_61 : f32 to vector<8x1xf32>
    %149 = arith.addf %145, %148 : vector<8x1xf32>
    %150 = math.rsqrt %149 : vector<8x1xf32>
    %151 = vector.broadcast %150 : vector<8x1xf32> to vector<8x128xf32>
    %152 = arith.mulf %147, %151 : vector<8x128xf32>
    %153 = vector.broadcast %132 : vector<1x128xf32> to vector<8x128xf32>
    %154 = arith.mulf %152, %153 : vector<8x128xf32>
    %155 = vector.broadcast %134 : vector<1x128xf32> to vector<8x128xf32>
    %156 = arith.addf %154, %155 : vector<8x128xf32>
    %c0_62 = arith.constant 0 : index
    %c0_63 = arith.constant 0 : index
    %c0_64 = arith.constant 0 : index
    %157 = vector.load %arg11[%c0_62, %c0_63, %c0_64] : memref<2x128x128xf32, #tpu.memory_space<vmem>>, vector<1x128x128xf32>
    %158 = vector.shape_cast %157 : vector<1x128x128xf32> to vector<128x128xf32>
    %cst_65 = arith.constant dense<0.000000e+00> : vector<8x128xf32>
    %159 = tpu.matmul %156, %158, %cst_65 {dimension_numbers = #tpu.dot_dimension_numbers<[1], [0], [0], [1], [0, 0, 1, 1], [], []>} : vector<8x128xf32>, vector<128x128xf32>, vector<8x128xf32> -> vector<8x128xf32>
    %c0_66 = arith.constant 0 : index
    %c0_67 = arith.constant 0 : index
    %c0_68 = arith.constant 0 : index
    %160 = vector.load %arg12[%c0_66, %c0_67, %c0_68] : memref<2x1x128xf32, #tpu.memory_space<vmem>>, vector<1x1x128xf32>
    %161 = vector.shape_cast %160 : vector<1x1x128xf32> to vector<1x128xf32>
    %162 = vector.broadcast %161 : vector<1x128xf32> to vector<8x128xf32>
    %163 = arith.addf %159, %162 : vector<8x128xf32>
    %cst_69 = arith.constant 5.000000e-01 : f32
    %164 = vector.broadcast %cst_69 : f32 to vector<8x128xf32>
    %165 = arith.mulf %164, %163 : vector<8x128xf32>
    %cst_70 = arith.constant 4.471500e-02 : f32
    %166 = vector.broadcast %cst_70 : f32 to vector<8x128xf32>
    %167 = arith.mulf %166, %163 : vector<8x128xf32>
    %168 = arith.mulf %167, %163 : vector<8x128xf32>
    %169 = arith.mulf %168, %163 : vector<8x128xf32>
    %170 = arith.addf %163, %169 : vector<8x128xf32>
    %cst_71 = arith.constant 0.797884583 : f32
    %171 = vector.broadcast %cst_71 : f32 to vector<8x128xf32>
    %172 = arith.mulf %171, %170 : vector<8x128xf32>
    %173 = math.tanh %172 : vector<8x128xf32>
    %cst_72 = arith.constant 1.000000e+00 : f32
    %174 = vector.broadcast %cst_72 : f32 to vector<8x128xf32>
    %175 = arith.addf %174, %173 : vector<8x128xf32>
    %176 = arith.mulf %165, %175 : vector<8x128xf32>
    %c0_73 = arith.constant 0 : index
    %c0_74 = arith.constant 0 : index
    %c0_75 = arith.constant 0 : index
    %177 = vector.load %arg13[%c0_73, %c0_74, %c0_75] : memref<2x128x128xf32, #tpu.memory_space<vmem>>, vector<1x128x128xf32>
    %178 = vector.shape_cast %177 : vector<1x128x128xf32> to vector<128x128xf32>
    %cst_76 = arith.constant dense<0.000000e+00> : vector<8x128xf32>
    %179 = tpu.matmul %176, %178, %cst_76 {dimension_numbers = #tpu.dot_dimension_numbers<[1], [0], [0], [1], [0, 0, 1, 1], [], []>} : vector<8x128xf32>, vector<128x128xf32>, vector<8x128xf32> -> vector<8x128xf32>
    %c0_77 = arith.constant 0 : index
    %c0_78 = arith.constant 0 : index
    %c0_79 = arith.constant 0 : index
    %180 = vector.load %arg14[%c0_77, %c0_78, %c0_79] : memref<2x1x128xf32, #tpu.memory_space<vmem>>, vector<1x1x128xf32>
    %181 = vector.shape_cast %180 : vector<1x1x128xf32> to vector<1x128xf32>
    %182 = vector.broadcast %181 : vector<1x128xf32> to vector<8x128xf32>
    %183 = arith.addf %179, %182 : vector<8x128xf32>
    %184 = arith.addf %183, %156 : vector<8x128xf32>
    %c0_80 = arith.constant 0 : index
    %c0_81 = arith.constant 0 : index
    %c0_82 = arith.constant 0 : index
    %185 = vector.load %arg15[%c0_80, %c0_81, %c0_82] : memref<2x1x128xf32, #tpu.memory_space<vmem>>, vector<1x1x128xf32>
    %186 = vector.shape_cast %185 : vector<1x1x128xf32> to vector<1x128xf32>
    %c0_83 = arith.constant 0 : index
    %c0_84 = arith.constant 0 : index
    %c0_85 = arith.constant 0 : index
    %187 = vector.load %arg16[%c0_83, %c0_84, %c0_85] : memref<2x1x128xf32, #tpu.memory_space<vmem>>, vector<1x1x128xf32>
    %188 = vector.shape_cast %187 : vector<1x1x128xf32> to vector<1x128xf32>
    %cst_86 = arith.constant dense<0.000000e+00> : vector<8xf32>
    %189 = vector.multi_reduction <add>, %184, %cst_86 [1] : vector<8x128xf32> to vector<8xf32>
    %190 = vector.shape_cast %189 : vector<8xf32> to vector<8x1xf32>
    %cst_87 = arith.constant 3.125000e-02 : f32
    %191 = vector.broadcast %cst_87 : f32 to vector<8x1xf32>
    %192 = arith.mulf %190, %191 : vector<8x1xf32>
    %193 = arith.mulf %184, %184 : vector<8x128xf32>
    %cst_88 = arith.constant dense<0.000000e+00> : vector<8xf32>
    %194 = vector.multi_reduction <add>, %193, %cst_88 [1] : vector<8x128xf32> to vector<8xf32>
    %195 = vector.shape_cast %194 : vector<8xf32> to vector<8x1xf32>
    %cst_89 = arith.constant 3.125000e-02 : f32
    %196 = vector.broadcast %cst_89 : f32 to vector<8x1xf32>
    %197 = arith.mulf %195, %196 : vector<8x1xf32>
    %198 = arith.mulf %192, %192 : vector<8x1xf32>
    %199 = arith.subf %197, %198 : vector<8x1xf32>
    %200 = vector.broadcast %192 : vector<8x1xf32> to vector<8x128xf32>
    %201 = arith.subf %184, %200 : vector<8x128xf32>
    %cst_90 = arith.constant 9.99999996E-13 : f32
    %202 = vector.broadcast %cst_90 : f32 to vector<8x1xf32>
    %203 = arith.addf %199, %202 : vector<8x1xf32>
    %204 = math.rsqrt %203 : vector<8x1xf32>
    %205 = vector.broadcast %204 : vector<8x1xf32> to vector<8x128xf32>
    %206 = arith.mulf %201, %205 : vector<8x128xf32>
    %207 = vector.broadcast %186 : vector<1x128xf32> to vector<8x128xf32>
    %208 = arith.mulf %206, %207 : vector<8x128xf32>
    %209 = vector.broadcast %188 : vector<1x128xf32> to vector<8x128xf32>
    %210 = arith.addf %208, %209 : vector<8x128xf32>
    %c1 = arith.constant 1 : index
    %c0_91 = arith.constant 0 : index
    %c0_92 = arith.constant 0 : index
    %211 = vector.load %arg5[%c1, %c0_91, %c0_92] : memref<2x128x128xf32, #tpu.memory_space<vmem>>, vector<1x128x128xf32>
    %212 = vector.shape_cast %211 : vector<1x128x128xf32> to vector<128x128xf32>
    %cst_93 = arith.constant dense<0.000000e+00> : vector<8x128xf32>
    %213 = tpu.matmul %210, %212, %cst_93 {dimension_numbers = #tpu.dot_dimension_numbers<[1], [0], [0], [1], [0, 0, 1, 1], [], []>} : vector<8x128xf32>, vector<128x128xf32>, vector<8x128xf32> -> vector<8x128xf32>
    %c1_94 = arith.constant 1 : index
    %c0_95 = arith.constant 0 : index
    %c0_96 = arith.constant 0 : index
    %214 = vector.load %arg6[%c1_94, %c0_95, %c0_96] : memref<2x1x128xf32, #tpu.memory_space<vmem>>, vector<1x1x128xf32>
    %215 = vector.shape_cast %214 : vector<1x1x128xf32> to vector<1x128xf32>
    %216 = vector.broadcast %215 : vector<1x128xf32> to vector<8x128xf32>
    %217 = arith.addf %213, %216 : vector<8x128xf32>
    %c1_97 = arith.constant 1 : index
    %c0_98 = arith.constant 0 : index
    %c0_99 = arith.constant 0 : index
    %218 = vector.load %arg7[%c1_97, %c0_98, %c0_99] : memref<2x128x128xf32, #tpu.memory_space<vmem>>, vector<1x128x128xf32>
    %219 = vector.shape_cast %218 : vector<1x128x128xf32> to vector<128x128xf32>
    %cst_100 = arith.constant 0.000000e+00 : f32
    %220 = vector.broadcast %cst_100 : f32 to vector<8x128xf32>
    %221 = vector.extract_strided_slice %217 {offsets = [0, 0], sizes = [8, 8], strides = [1, 1]} : vector<8x128xf32> to vector<8x8xf32>
    %222 = vector.extract_strided_slice %217 {offsets = [0, 32], sizes = [8, 8], strides = [1, 1]} : vector<8x128xf32> to vector<8x8xf32>
    %223 = vector.extract_strided_slice %217 {offsets = [0, 64], sizes = [8, 8], strides = [1, 1]} : vector<8x128xf32> to vector<8x8xf32>
    %cst_101 = arith.constant dense<0.000000e+00> : vector<8x8xf32>
    %224 = tpu.matmul %221, %222, %cst_101 {dimension_numbers = #tpu.dot_dimension_numbers<[1], [1], [0], [0], [0, 0, 1, 0], [], []>} : vector<8x8xf32>, vector<8x8xf32>, vector<8x8xf32> -> vector<8x8xf32>
    %cst_102 = arith.constant 0.353553385 : f32
    %225 = vector.broadcast %cst_102 : f32 to vector<8x8xf32>
    %226 = arith.mulf %224, %225 : vector<8x8xf32>
    %227 = vector.broadcast %3 : vector<1x8xf32> to vector<8x8xf32>
    %228 = arith.addf %226, %227 : vector<8x8xf32>
    %cst_103 = arith.constant dense<0xFF800000> : vector<8xf32>
    %229 = vector.multi_reduction <maximumf>, %228, %cst_103 [1] : vector<8x8xf32> to vector<8xf32>
    %230 = vector.shape_cast %229 : vector<8xf32> to vector<8x1xf32>
    %231 = vector.broadcast %230 : vector<8x1xf32> to vector<8x8xf32>
    %232 = arith.subf %228, %231 : vector<8x8xf32>
    %233 = math.exp %232 : vector<8x8xf32>
    %cst_104 = arith.constant dense<0.000000e+00> : vector<8xf32>
    %234 = vector.multi_reduction <add>, %233, %cst_104 [1] : vector<8x8xf32> to vector<8xf32>
    %235 = vector.shape_cast %234 : vector<8xf32> to vector<8x1xf32>
    %236 = tpu.reciprocal %235 {approx = true} : vector<8x1xf32> -> vector<8x1xf32>
    %237 = vector.broadcast %236 : vector<8x1xf32> to vector<8x8xf32>
    %238 = arith.mulf %233, %237 : vector<8x8xf32>
    %cst_105 = arith.constant dense<0.000000e+00> : vector<8x8xf32>
    %239 = tpu.matmul %238, %223, %cst_105 {dimension_numbers = #tpu.dot_dimension_numbers<[1], [0], [0], [1], [0, 0, 1, 1], [], []>} : vector<8x8xf32>, vector<8x8xf32>, vector<8x8xf32> -> vector<8x8xf32>
    %240 = vector.extract_strided_slice %219 {offsets = [0, 0], sizes = [8, 128], strides = [1, 1]} : vector<128x128xf32> to vector<8x128xf32>
    %cst_106 = arith.constant dense<0.000000e+00> : vector<8x128xf32>
    %241 = tpu.matmul %239, %240, %cst_106 {dimension_numbers = #tpu.dot_dimension_numbers<[1], [0], [0], [1], [0, 0, 1, 1], [], []>} : vector<8x8xf32>, vector<8x128xf32>, vector<8x128xf32> -> vector<8x128xf32>
    %242 = arith.addf %220, %241 : vector<8x128xf32>
    %243 = vector.extract_strided_slice %217 {offsets = [0, 8], sizes = [8, 8], strides = [1, 1]} : vector<8x128xf32> to vector<8x8xf32>
    %244 = vector.extract_strided_slice %217 {offsets = [0, 40], sizes = [8, 8], strides = [1, 1]} : vector<8x128xf32> to vector<8x8xf32>
    %245 = vector.extract_strided_slice %217 {offsets = [0, 72], sizes = [8, 8], strides = [1, 1]} : vector<8x128xf32> to vector<8x8xf32>
    %cst_107 = arith.constant dense<0.000000e+00> : vector<8x8xf32>
    %246 = tpu.matmul %243, %244, %cst_107 {dimension_numbers = #tpu.dot_dimension_numbers<[1], [1], [0], [0], [0, 0, 1, 0], [], []>} : vector<8x8xf32>, vector<8x8xf32>, vector<8x8xf32> -> vector<8x8xf32>
    %cst_108 = arith.constant 0.353553385 : f32
    %247 = vector.broadcast %cst_108 : f32 to vector<8x8xf32>
    %248 = arith.mulf %246, %247 : vector<8x8xf32>
    %249 = vector.broadcast %3 : vector<1x8xf32> to vector<8x8xf32>
    %250 = arith.addf %248, %249 : vector<8x8xf32>
    %cst_109 = arith.constant dense<0xFF800000> : vector<8xf32>
    %251 = vector.multi_reduction <maximumf>, %250, %cst_109 [1] : vector<8x8xf32> to vector<8xf32>
    %252 = vector.shape_cast %251 : vector<8xf32> to vector<8x1xf32>
    %253 = vector.broadcast %252 : vector<8x1xf32> to vector<8x8xf32>
    %254 = arith.subf %250, %253 : vector<8x8xf32>
    %255 = math.exp %254 : vector<8x8xf32>
    %cst_110 = arith.constant dense<0.000000e+00> : vector<8xf32>
    %256 = vector.multi_reduction <add>, %255, %cst_110 [1] : vector<8x8xf32> to vector<8xf32>
    %257 = vector.shape_cast %256 : vector<8xf32> to vector<8x1xf32>
    %258 = tpu.reciprocal %257 {approx = true} : vector<8x1xf32> -> vector<8x1xf32>
    %259 = vector.broadcast %258 : vector<8x1xf32> to vector<8x8xf32>
    %260 = arith.mulf %255, %259 : vector<8x8xf32>
    %cst_111 = arith.constant dense<0.000000e+00> : vector<8x8xf32>
    %261 = tpu.matmul %260, %245, %cst_111 {dimension_numbers = #tpu.dot_dimension_numbers<[1], [0], [0], [1], [0, 0, 1, 1], [], []>} : vector<8x8xf32>, vector<8x8xf32>, vector<8x8xf32> -> vector<8x8xf32>
    %262 = vector.extract_strided_slice %219 {offsets = [8, 0], sizes = [8, 128], strides = [1, 1]} : vector<128x128xf32> to vector<8x128xf32>
    %cst_112 = arith.constant dense<0.000000e+00> : vector<8x128xf32>
    %263 = tpu.matmul %261, %262, %cst_112 {dimension_numbers = #tpu.dot_dimension_numbers<[1], [0], [0], [1], [0, 0, 1, 1], [], []>} : vector<8x8xf32>, vector<8x128xf32>, vector<8x128xf32> -> vector<8x128xf32>
    %264 = arith.addf %242, %263 : vector<8x128xf32>
    %265 = vector.extract_strided_slice %217 {offsets = [0, 16], sizes = [8, 8], strides = [1, 1]} : vector<8x128xf32> to vector<8x8xf32>
    %266 = vector.extract_strided_slice %217 {offsets = [0, 48], sizes = [8, 8], strides = [1, 1]} : vector<8x128xf32> to vector<8x8xf32>
    %267 = vector.extract_strided_slice %217 {offsets = [0, 80], sizes = [8, 8], strides = [1, 1]} : vector<8x128xf32> to vector<8x8xf32>
    %cst_113 = arith.constant dense<0.000000e+00> : vector<8x8xf32>
    %268 = tpu.matmul %265, %266, %cst_113 {dimension_numbers = #tpu.dot_dimension_numbers<[1], [1], [0], [0], [0, 0, 1, 0], [], []>} : vector<8x8xf32>, vector<8x8xf32>, vector<8x8xf32> -> vector<8x8xf32>
    %cst_114 = arith.constant 0.353553385 : f32
    %269 = vector.broadcast %cst_114 : f32 to vector<8x8xf32>
    %270 = arith.mulf %268, %269 : vector<8x8xf32>
    %271 = vector.broadcast %3 : vector<1x8xf32> to vector<8x8xf32>
    %272 = arith.addf %270, %271 : vector<8x8xf32>
    %cst_115 = arith.constant dense<0xFF800000> : vector<8xf32>
    %273 = vector.multi_reduction <maximumf>, %272, %cst_115 [1] : vector<8x8xf32> to vector<8xf32>
    %274 = vector.shape_cast %273 : vector<8xf32> to vector<8x1xf32>
    %275 = vector.broadcast %274 : vector<8x1xf32> to vector<8x8xf32>
    %276 = arith.subf %272, %275 : vector<8x8xf32>
    %277 = math.exp %276 : vector<8x8xf32>
    %cst_116 = arith.constant dense<0.000000e+00> : vector<8xf32>
    %278 = vector.multi_reduction <add>, %277, %cst_116 [1] : vector<8x8xf32> to vector<8xf32>
    %279 = vector.shape_cast %278 : vector<8xf32> to vector<8x1xf32>
    %280 = tpu.reciprocal %279 {approx = true} : vector<8x1xf32> -> vector<8x1xf32>
    %281 = vector.broadcast %280 : vector<8x1xf32> to vector<8x8xf32>
    %282 = arith.mulf %277, %281 : vector<8x8xf32>
    %cst_117 = arith.constant dense<0.000000e+00> : vector<8x8xf32>
    %283 = tpu.matmul %282, %267, %cst_117 {dimension_numbers = #tpu.dot_dimension_numbers<[1], [0], [0], [1], [0, 0, 1, 1], [], []>} : vector<8x8xf32>, vector<8x8xf32>, vector<8x8xf32> -> vector<8x8xf32>
    %284 = vector.extract_strided_slice %219 {offsets = [16, 0], sizes = [8, 128], strides = [1, 1]} : vector<128x128xf32> to vector<8x128xf32>
    %cst_118 = arith.constant dense<0.000000e+00> : vector<8x128xf32>
    %285 = tpu.matmul %283, %284, %cst_118 {dimension_numbers = #tpu.dot_dimension_numbers<[1], [0], [0], [1], [0, 0, 1, 1], [], []>} : vector<8x8xf32>, vector<8x128xf32>, vector<8x128xf32> -> vector<8x128xf32>
    %286 = arith.addf %264, %285 : vector<8x128xf32>
    %287 = vector.extract_strided_slice %217 {offsets = [0, 24], sizes = [8, 8], strides = [1, 1]} : vector<8x128xf32> to vector<8x8xf32>
    %288 = vector.extract_strided_slice %217 {offsets = [0, 56], sizes = [8, 8], strides = [1, 1]} : vector<8x128xf32> to vector<8x8xf32>
    %289 = vector.extract_strided_slice %217 {offsets = [0, 88], sizes = [8, 8], strides = [1, 1]} : vector<8x128xf32> to vector<8x8xf32>
    %cst_119 = arith.constant dense<0.000000e+00> : vector<8x8xf32>
    %290 = tpu.matmul %287, %288, %cst_119 {dimension_numbers = #tpu.dot_dimension_numbers<[1], [1], [0], [0], [0, 0, 1, 0], [], []>} : vector<8x8xf32>, vector<8x8xf32>, vector<8x8xf32> -> vector<8x8xf32>
    %cst_120 = arith.constant 0.353553385 : f32
    %291 = vector.broadcast %cst_120 : f32 to vector<8x8xf32>
    %292 = arith.mulf %290, %291 : vector<8x8xf32>
    %293 = vector.broadcast %3 : vector<1x8xf32> to vector<8x8xf32>
    %294 = arith.addf %292, %293 : vector<8x8xf32>
    %cst_121 = arith.constant dense<0xFF800000> : vector<8xf32>
    %295 = vector.multi_reduction <maximumf>, %294, %cst_121 [1] : vector<8x8xf32> to vector<8xf32>
    %296 = vector.shape_cast %295 : vector<8xf32> to vector<8x1xf32>
    %297 = vector.broadcast %296 : vector<8x1xf32> to vector<8x8xf32>
    %298 = arith.subf %294, %297 : vector<8x8xf32>
    %299 = math.exp %298 : vector<8x8xf32>
    %cst_122 = arith.constant dense<0.000000e+00> : vector<8xf32>
    %300 = vector.multi_reduction <add>, %299, %cst_122 [1] : vector<8x8xf32> to vector<8xf32>
    %301 = vector.shape_cast %300 : vector<8xf32> to vector<8x1xf32>
    %302 = tpu.reciprocal %301 {approx = true} : vector<8x1xf32> -> vector<8x1xf32>
    %303 = vector.broadcast %302 : vector<8x1xf32> to vector<8x8xf32>
    %304 = arith.mulf %299, %303 : vector<8x8xf32>
    %cst_123 = arith.constant dense<0.000000e+00> : vector<8x8xf32>
    %305 = tpu.matmul %304, %289, %cst_123 {dimension_numbers = #tpu.dot_dimension_numbers<[1], [0], [0], [1], [0, 0, 1, 1], [], []>} : vector<8x8xf32>, vector<8x8xf32>, vector<8x8xf32> -> vector<8x8xf32>
    %306 = vector.extract_strided_slice %219 {offsets = [24, 0], sizes = [8, 128], strides = [1, 1]} : vector<128x128xf32> to vector<8x128xf32>
    %cst_124 = arith.constant dense<0.000000e+00> : vector<8x128xf32>
    %307 = tpu.matmul %305, %306, %cst_124 {dimension_numbers = #tpu.dot_dimension_numbers<[1], [0], [0], [1], [0, 0, 1, 1], [], []>} : vector<8x8xf32>, vector<8x128xf32>, vector<8x128xf32> -> vector<8x128xf32>
    %308 = arith.addf %286, %307 : vector<8x128xf32>
    %c1_125 = arith.constant 1 : index
    %c0_126 = arith.constant 0 : index
    %c0_127 = arith.constant 0 : index
    %309 = vector.load %arg8[%c1_125, %c0_126, %c0_127] : memref<2x1x128xf32, #tpu.memory_space<vmem>>, vector<1x1x128xf32>
    %310 = vector.shape_cast %309 : vector<1x1x128xf32> to vector<1x128xf32>
    %311 = vector.broadcast %310 : vector<1x128xf32> to vector<8x128xf32>
    %312 = arith.addf %308, %311 : vector<8x128xf32>
    %313 = arith.addf %312, %210 : vector<8x128xf32>
    %c1_128 = arith.constant 1 : index
    %c0_129 = arith.constant 0 : index
    %c0_130 = arith.constant 0 : index
    %314 = vector.load %arg9[%c1_128, %c0_129, %c0_130] : memref<2x1x128xf32, #tpu.memory_space<vmem>>, vector<1x1x128xf32>
    %315 = vector.shape_cast %314 : vector<1x1x128xf32> to vector<1x128xf32>
    %c1_131 = arith.constant 1 : index
    %c0_132 = arith.constant 0 : index
    %c0_133 = arith.constant 0 : index
    %316 = vector.load %arg10[%c1_131, %c0_132, %c0_133] : memref<2x1x128xf32, #tpu.memory_space<vmem>>, vector<1x1x128xf32>
    %317 = vector.shape_cast %316 : vector<1x1x128xf32> to vector<1x128xf32>
    %cst_134 = arith.constant dense<0.000000e+00> : vector<8xf32>
    %318 = vector.multi_reduction <add>, %313, %cst_134 [1] : vector<8x128xf32> to vector<8xf32>
    %319 = vector.shape_cast %318 : vector<8xf32> to vector<8x1xf32>
    %cst_135 = arith.constant 3.125000e-02 : f32
    %320 = vector.broadcast %cst_135 : f32 to vector<8x1xf32>
    %321 = arith.mulf %319, %320 : vector<8x1xf32>
    %322 = arith.mulf %313, %313 : vector<8x128xf32>
    %cst_136 = arith.constant dense<0.000000e+00> : vector<8xf32>
    %323 = vector.multi_reduction <add>, %322, %cst_136 [1] : vector<8x128xf32> to vector<8xf32>
    %324 = vector.shape_cast %323 : vector<8xf32> to vector<8x1xf32>
    %cst_137 = arith.constant 3.125000e-02 : f32
    %325 = vector.broadcast %cst_137 : f32 to vector<8x1xf32>
    %326 = arith.mulf %324, %325 : vector<8x1xf32>
    %327 = arith.mulf %321, %321 : vector<8x1xf32>
    %328 = arith.subf %326, %327 : vector<8x1xf32>
    %329 = vector.broadcast %321 : vector<8x1xf32> to vector<8x128xf32>
    %330 = arith.subf %313, %329 : vector<8x128xf32>
    %cst_138 = arith.constant 9.99999996E-13 : f32
    %331 = vector.broadcast %cst_138 : f32 to vector<8x1xf32>
    %332 = arith.addf %328, %331 : vector<8x1xf32>
    %333 = math.rsqrt %332 : vector<8x1xf32>
    %334 = vector.broadcast %333 : vector<8x1xf32> to vector<8x128xf32>
    %335 = arith.mulf %330, %334 : vector<8x128xf32>
    %336 = vector.broadcast %315 : vector<1x128xf32> to vector<8x128xf32>
    %337 = arith.mulf %335, %336 : vector<8x128xf32>
    %338 = vector.broadcast %317 : vector<1x128xf32> to vector<8x128xf32>
    %339 = arith.addf %337, %338 : vector<8x128xf32>
    %c1_139 = arith.constant 1 : index
    %c0_140 = arith.constant 0 : index
    %c0_141 = arith.constant 0 : index
    %340 = vector.load %arg11[%c1_139, %c0_140, %c0_141] : memref<2x128x128xf32, #tpu.memory_space<vmem>>, vector<1x128x128xf32>
    %341 = vector.shape_cast %340 : vector<1x128x128xf32> to vector<128x128xf32>
    %cst_142 = arith.constant dense<0.000000e+00> : vector<8x128xf32>
    %342 = tpu.matmul %339, %341, %cst_142 {dimension_numbers = #tpu.dot_dimension_numbers<[1], [0], [0], [1], [0, 0, 1, 1], [], []>} : vector<8x128xf32>, vector<128x128xf32>, vector<8x128xf32> -> vector<8x128xf32>
    %c1_143 = arith.constant 1 : index
    %c0_144 = arith.constant 0 : index
    %c0_145 = arith.constant 0 : index
    %343 = vector.load %arg12[%c1_143, %c0_144, %c0_145] : memref<2x1x128xf32, #tpu.memory_space<vmem>>, vector<1x1x128xf32>
    %344 = vector.shape_cast %343 : vector<1x1x128xf32> to vector<1x128xf32>
    %345 = vector.broadcast %344 : vector<1x128xf32> to vector<8x128xf32>
    %346 = arith.addf %342, %345 : vector<8x128xf32>
    %cst_146 = arith.constant 5.000000e-01 : f32
    %347 = vector.broadcast %cst_146 : f32 to vector<8x128xf32>
    %348 = arith.mulf %347, %346 : vector<8x128xf32>
    %cst_147 = arith.constant 4.471500e-02 : f32
    %349 = vector.broadcast %cst_147 : f32 to vector<8x128xf32>
    %350 = arith.mulf %349, %346 : vector<8x128xf32>
    %351 = arith.mulf %350, %346 : vector<8x128xf32>
    %352 = arith.mulf %351, %346 : vector<8x128xf32>
    %353 = arith.addf %346, %352 : vector<8x128xf32>
    %cst_148 = arith.constant 0.797884583 : f32
    %354 = vector.broadcast %cst_148 : f32 to vector<8x128xf32>
    %355 = arith.mulf %354, %353 : vector<8x128xf32>
    %356 = math.tanh %355 : vector<8x128xf32>
    %cst_149 = arith.constant 1.000000e+00 : f32
    %357 = vector.broadcast %cst_149 : f32 to vector<8x128xf32>
    %358 = arith.addf %357, %356 : vector<8x128xf32>
    %359 = arith.mulf %348, %358 : vector<8x128xf32>
    %c1_150 = arith.constant 1 : index
    %c0_151 = arith.constant 0 : index
    %c0_152 = arith.constant 0 : index
    %360 = vector.load %arg13[%c1_150, %c0_151, %c0_152] : memref<2x128x128xf32, #tpu.memory_space<vmem>>, vector<1x128x128xf32>
    %361 = vector.shape_cast %360 : vector<1x128x128xf32> to vector<128x128xf32>
    %cst_153 = arith.constant dense<0.000000e+00> : vector<8x128xf32>
    %362 = tpu.matmul %359, %361, %cst_153 {dimension_numbers = #tpu.dot_dimension_numbers<[1], [0], [0], [1], [0, 0, 1, 1], [], []>} : vector<8x128xf32>, vector<128x128xf32>, vector<8x128xf32> -> vector<8x128xf32>
    %c1_154 = arith.constant 1 : index
    %c0_155 = arith.constant 0 : index
    %c0_156 = arith.constant 0 : index
    %363 = vector.load %arg14[%c1_154, %c0_155, %c0_156] : memref<2x1x128xf32, #tpu.memory_space<vmem>>, vector<1x1x128xf32>
    %364 = vector.shape_cast %363 : vector<1x1x128xf32> to vector<1x128xf32>
    %365 = vector.broadcast %364 : vector<1x128xf32> to vector<8x128xf32>
    %366 = arith.addf %362, %365 : vector<8x128xf32>
    %367 = arith.addf %366, %339 : vector<8x128xf32>
    %c1_157 = arith.constant 1 : index
    %c0_158 = arith.constant 0 : index
    %c0_159 = arith.constant 0 : index
    %368 = vector.load %arg15[%c1_157, %c0_158, %c0_159] : memref<2x1x128xf32, #tpu.memory_space<vmem>>, vector<1x1x128xf32>
    %369 = vector.shape_cast %368 : vector<1x1x128xf32> to vector<1x128xf32>
    %c1_160 = arith.constant 1 : index
    %c0_161 = arith.constant 0 : index
    %c0_162 = arith.constant 0 : index
    %370 = vector.load %arg16[%c1_160, %c0_161, %c0_162] : memref<2x1x128xf32, #tpu.memory_space<vmem>>, vector<1x1x128xf32>
    %371 = vector.shape_cast %370 : vector<1x1x128xf32> to vector<1x128xf32>
    %cst_163 = arith.constant dense<0.000000e+00> : vector<8xf32>
    %372 = vector.multi_reduction <add>, %367, %cst_163 [1] : vector<8x128xf32> to vector<8xf32>
    %373 = vector.shape_cast %372 : vector<8xf32> to vector<8x1xf32>
    %cst_164 = arith.constant 3.125000e-02 : f32
    %374 = vector.broadcast %cst_164 : f32 to vector<8x1xf32>
    %375 = arith.mulf %373, %374 : vector<8x1xf32>
    %376 = arith.mulf %367, %367 : vector<8x128xf32>
    %cst_165 = arith.constant dense<0.000000e+00> : vector<8xf32>
    %377 = vector.multi_reduction <add>, %376, %cst_165 [1] : vector<8x128xf32> to vector<8xf32>
    %378 = vector.shape_cast %377 : vector<8xf32> to vector<8x1xf32>
    %cst_166 = arith.constant 3.125000e-02 : f32
    %379 = vector.broadcast %cst_166 : f32 to vector<8x1xf32>
    %380 = arith.mulf %378, %379 : vector<8x1xf32>
    %381 = arith.mulf %375, %375 : vector<8x1xf32>
    %382 = arith.subf %380, %381 : vector<8x1xf32>
    %383 = vector.broadcast %375 : vector<8x1xf32> to vector<8x128xf32>
    %384 = arith.subf %367, %383 : vector<8x128xf32>
    %cst_167 = arith.constant 9.99999996E-13 : f32
    %385 = vector.broadcast %cst_167 : f32 to vector<8x1xf32>
    %386 = arith.addf %382, %385 : vector<8x1xf32>
    %387 = math.rsqrt %386 : vector<8x1xf32>
    %388 = vector.broadcast %387 : vector<8x1xf32> to vector<8x128xf32>
    %389 = arith.mulf %384, %388 : vector<8x128xf32>
    %390 = vector.broadcast %369 : vector<1x128xf32> to vector<8x128xf32>
    %391 = arith.mulf %389, %390 : vector<8x128xf32>
    %392 = vector.broadcast %371 : vector<1x128xf32> to vector<8x128xf32>
    %393 = arith.addf %391, %392 : vector<8x128xf32>
    %c0_168 = arith.constant 0 : index
    %c0_169 = arith.constant 0 : index
    %c0_170 = arith.constant 0 : index
    %394 = vector.load %arg19[%c0_168, %c0_169, %c0_170] : memref<1x8x128xf32, #tpu.memory_space<vmem>>, vector<1x8x128xf32>
    %395 = vector.shape_cast %394 : vector<1x8x128xf32> to vector<8x128xf32>
    %396 = vector.shape_cast %393 : vector<8x128xf32> to vector<1x8x128xf32>
    tpu.vector_store %arg19[%c0_168, %c0_169, %c0_170], %396 {strides = array<i32>} : memref<1x8x128xf32, #tpu.memory_space<vmem>>, vector<1x8x128xf32>,
    %397 = vector.extract_strided_slice %393 {offsets = [0, 0], sizes = [1, 128], strides = [1, 1]} : vector<8x128xf32> to vector<1x128xf32>
    %c0_171 = arith.constant 0 : index
    %c0_172 = arith.constant 0 : index
    %398 = vector.load %arg17[%c0_171, %c0_172] : memref<128x128xf32, #tpu.memory_space<vmem>>, vector<128x128xf32>
    %cst_173 = arith.constant dense<0.000000e+00> : vector<1x128xf32>
    %399 = tpu.matmul %397, %398, %cst_173 {dimension_numbers = #tpu.dot_dimension_numbers<[1], [0], [0], [1], [0, 0, 1, 1], [], []>} : vector<1x128xf32>, vector<128x128xf32>, vector<1x128xf32> -> vector<1x128xf32>
    %c0_174 = arith.constant 0 : index
    %c0_175 = arith.constant 0 : index
    %400 = vector.load %arg18[%c0_174, %c0_175] : memref<1x128xf32, #tpu.memory_space<vmem>>, vector<1x128xf32>
    %401 = arith.addf %399, %400 : vector<1x128xf32>
    %402 = math.tanh %401 : vector<1x128xf32>
    %c0_176 = arith.constant 0 : index
    %c0_177 = arith.constant 0 : index
    %c0_178 = arith.constant 0 : index
    %403 = vector.load %arg20[%c0_176, %c0_177, %c0_178] : memref<1x1x128xf32, #tpu.memory_space<vmem>>, vector<1x1x128xf32>
    %404 = vector.shape_cast %403 : vector<1x1x128xf32> to vector<1x128xf32>
    %405 = vector.shape_cast %402 : vector<1x128xf32> to vector<1x1x128xf32>
    tpu.vector_store %arg20[%c0_176, %c0_177, %c0_178], %405 {strides = array<i32>} : memref<1x1x128xf32, #tpu.memory_space<vmem>>, vector<1x1x128xf32>,
    return
  }
  func.func @transform_0(%arg0: i32) -> (i32, i32, i32) {
    %c0_i32 = arith.constant 0 : i32
    %c0_i32_0 = arith.constant 0 : i32
    %c0_i32_1 = arith.constant 0 : i32
    return %arg0, %c0_i32, %c0_i32_0 : i32, i32, i32
  }
  func.func @transform_1(%arg0: i32) -> (i32, i32, i32) {
    %c0_i32 = arith.constant 0 : i32
    %c0_i32_0 = arith.constant 0 : i32
    %c0_i32_1 = arith.constant 0 : i32
    return %arg0, %c0_i32, %c0_i32_0 : i32, i32, i32
  }
  func.func @transform_2(%arg0: i32) -> (i32, i32) {
    %c0_i32 = arith.constant 0 : i32
    %c0_i32_0 = arith.constant 0 : i32
    %c0_i32_1 = arith.constant 0 : i32
    return %c0_i32, %c0_i32_0 : i32, i32
  }
  func.func @transform_3(%arg0: i32) -> (i32, i32) {
    %c0_i32 = arith.constant 0 : i32
    %c0_i32_0 = arith.constant 0 : i32
    %c0_i32_1 = arith.constant 0 : i32
    return %c0_i32, %c0_i32_0 : i32, i32
  }
  func.func @transform_4(%arg0: i32) -> (i32, i32, i32) {
    %c0_i32 = arith.constant 0 : i32
    %c0_i32_0 = arith.constant 0 : i32
    %c0_i32_1 = arith.constant 0 : i32
    %c0_i32_2 = arith.constant 0 : i32
    return %c0_i32, %c0_i32_0, %c0_i32_1 : i32, i32, i32
  }
  func.func @transform_5(%arg0: i32) -> (i32, i32, i32) {
    %c0_i32 = arith.constant 0 : i32
    %c0_i32_0 = arith.constant 0 : i32
    %c0_i32_1 = arith.constant 0 : i32
    %c0_i32_2 = arith.constant 0 : i32
    return %c0_i32, %c0_i32_0, %c0_i32_1 : i32, i32, i32
  }
  func.func @transform_6(%arg0: i32) -> (i32, i32, i32) {
    %c0_i32 = arith.constant 0 : i32
    %c0_i32_0 = arith.constant 0 : i32
    %c0_i32_1 = arith.constant 0 : i32
    %c0_i32_2 = arith.constant 0 : i32
    return %c0_i32, %c0_i32_0, %c0_i32_1 : i32, i32, i32
  }
  func.func @transform_7(%arg0: i32) -> (i32, i32, i32) {
    %c0_i32 = arith.constant 0 : i32
    %c0_i32_0 = arith.constant 0 : i32
    %c0_i32_1 = arith.constant 0 : i32
    %c0_i32_2 = arith.constant 0 : i32
    return %c0_i32, %c0_i32_0, %c0_i32_1 : i32, i32, i32
  }
  func.func @transform_8(%arg0: i32) -> (i32, i32, i32) {
    %c0_i32 = arith.constant 0 : i32
    %c0_i32_0 = arith.constant 0 : i32
    %c0_i32_1 = arith.constant 0 : i32
    %c0_i32_2 = arith.constant 0 : i32
    return %c0_i32, %c0_i32_0, %c0_i32_1 : i32, i32, i32
  }
  func.func @transform_9(%arg0: i32) -> (i32, i32, i32) {
    %c0_i32 = arith.constant 0 : i32
    %c0_i32_0 = arith.constant 0 : i32
    %c0_i32_1 = arith.constant 0 : i32
    %c0_i32_2 = arith.constant 0 : i32
    return %c0_i32, %c0_i32_0, %c0_i32_1 : i32, i32, i32
  }
  func.func @transform_10(%arg0: i32) -> (i32, i32, i32) {
    %c0_i32 = arith.constant 0 : i32
    %c0_i32_0 = arith.constant 0 : i32
    %c0_i32_1 = arith.constant 0 : i32
    %c0_i32_2 = arith.constant 0 : i32
    return %c0_i32, %c0_i32_0, %c0_i32_1 : i32, i32, i32
  }
  func.func @transform_11(%arg0: i32) -> (i32, i32, i32) {
    %c0_i32 = arith.constant 0 : i32
    %c0_i32_0 = arith.constant 0 : i32
    %c0_i32_1 = arith.constant 0 : i32
    %c0_i32_2 = arith.constant 0 : i32
    return %c0_i32, %c0_i32_0, %c0_i32_1 : i32, i32, i32
  }
  func.func @transform_12(%arg0: i32) -> (i32, i32, i32) {
    %c0_i32 = arith.constant 0 : i32
    %c0_i32_0 = arith.constant 0 : i32
    %c0_i32_1 = arith.constant 0 : i32
    %c0_i32_2 = arith.constant 0 : i32
    return %c0_i32, %c0_i32_0, %c0_i32_1 : i32, i32, i32
  }
  func.func @transform_13(%arg0: i32) -> (i32, i32, i32) {
    %c0_i32 = arith.constant 0 : i32
    %c0_i32_0 = arith.constant 0 : i32
    %c0_i32_1 = arith.constant 0 : i32
    %c0_i32_2 = arith.constant 0 : i32
    return %c0_i32, %c0_i32_0, %c0_i32_1 : i32, i32, i32
  }
  func.func @transform_14(%arg0: i32) -> (i32, i32, i32) {
    %c0_i32 = arith.constant 0 : i32
    %c0_i32_0 = arith.constant 0 : i32
    %c0_i32_1 = arith.constant 0 : i32
    %c0_i32_2 = arith.constant 0 : i32
    return %c0_i32, %c0_i32_0, %c0_i32_1 : i32, i32, i32
  }
  func.func @transform_15(%arg0: i32) -> (i32, i32, i32) {
    %c0_i32 = arith.constant 0 : i32
    %c0_i32_0 = arith.constant 0 : i32
    %c0_i32_1 = arith.constant 0 : i32
    %c0_i32_2 = arith.constant 0 : i32
    return %c0_i32, %c0_i32_0, %c0_i32_1 : i32, i32, i32
  }
  func.func @transform_16(%arg0: i32) -> (i32, i32) {
    %c0_i32 = arith.constant 0 : i32
    %c0_i32_0 = arith.constant 0 : i32
    %c0_i32_1 = arith.constant 0 : i32
    return %c0_i32, %c0_i32_0 : i32, i32
  }
  func.func @transform_17(%arg0: i32) -> (i32, i32) {
    %c0_i32 = arith.constant 0 : i32
    %c0_i32_0 = arith.constant 0 : i32
    %c0_i32_1 = arith.constant 0 : i32
    return %c0_i32, %c0_i32_0 : i32, i32
  }
  func.func @transform_18(%arg0: i32) -> (i32, i32, i32) {
    %c0_i32 = arith.constant 0 : i32
    %c0_i32_0 = arith.constant 0 : i32
    %c0_i32_1 = arith.constant 0 : i32
    return %arg0, %c0_i32, %c0_i32_0 : i32, i32, i32
  }
  func.func @transform_19(%arg0: i32) -> (i32, i32, i32) {
    %c0_i32 = arith.constant 0 : i32
    %c0_i32_0 = arith.constant 0 : i32
    %c0_i32_1 = arith.constant 0 : i32
    return %arg0, %c0_i32, %c0_i32_0 : i32, i32, i32
  }
}

</mosaic_0001>

<llo_original>
// kernel: bert_forward.1
$region0: #{bert_forward.1}
  #allocation0 [shape = 'u32[]', space=smem, size = 0x4, offset = 0x4, fixed_abs, tag = 'smem constant byte address 0x4 - core index']
  #allocation1 [shape = 'u32[144,128]{1,0:T(1,128)}', space=vmem, size = 0x12000, scoped, tag = 'internal scratch']
  %s0 = inlined_call_operand.vmem [shape: f32[2,8,128], index: 0, kind: input, shape index: {}]
  %s1 = inlined_call_operand.vmem [shape: f32[2,1,8], index: 1, kind: input, shape index: {}]
  %s2 = inlined_call_operand.vmem [shape: f32[1,128], index: 2, kind: input, shape index: {}]
  %s3 = inlined_call_operand.vmem [shape: f32[1,128], index: 3, kind: input, shape index: {}, may-alias: {3,17}]
  %s4 = inlined_call_operand.vmem [shape: f32[2,128,128], index: 4, kind: input, shape index: {}]
  %s5 = inlined_call_operand.vmem [shape: f32[2,1,128], index: 5, kind: input, shape index: {}, may-alias: {5,7,9,11,13,15}]
  %s6 = inlined_call_operand.hbm [shape: f32[2,128,128], index: 6, kind: input, shape index: {}]
  %s7 = inlined_call_operand.vmem [shape: f32[2,1,128], index: 7, kind: input, shape index: {}, may-alias: {5,7,9,11,13,15}]
  %s8 = inlined_call_operand.vmem [shape: f32[2,1,128], index: 8, kind: input, shape index: {}, may-alias: {8,14}]
  %s9 = inlined_call_operand.vmem [shape: f32[2,1,128], index: 9, kind: input, shape index: {}, may-alias: {5,7,9,11,13,15}]
  %s10 = inlined_call_operand.hbm [shape: f32[2,128,128], index: 10, kind: input, shape index: {}]
  %s11 = inlined_call_operand.vmem [shape: f32[2,1,128], index: 11, kind: input, shape index: {}, may-alias: {5,7,9,11,13,15}]
  %s12 = inlined_call_operand.hbm [shape: f32[2,128,128], index: 12, kind: input, shape index: {}]
  %s13 = inlined_call_operand.vmem [shape: f32[2,1,128], index: 13, kind: input, shape index: {}, may-alias: {5,7,9,11,13,15}]
  %s14 = inlined_call_operand.vmem [shape: f32[2,1,128], index: 14, kind: input, shape index: {}, may-alias: {8,14}]
  %s15 = inlined_call_operand.vmem [shape: f32[2,1,128], index: 15, kind: input, shape index: {}, may-alias: {5,7,9,11,13,15}]
  %s16 = inlined_call_operand.vmem [shape: f32[128,128], index: 16, kind: input, shape index: {}]
  %s17 = inlined_call_operand.vmem [shape: f32[1,128], index: 17, kind: input, shape index: {}, may-alias: {3,17}]
  %s18 = inlined_call_operand.vmem [shape: f32[2,8,128], index: 18, kind: output, shape index: {0}]
  %s19 = inlined_call_operand.hbm [shape: f32[2,1,128], index: 19, kind: output, shape index: {1}]
  %20 = xla_tuple %s18, %s19
  %s21 = sld [smem:[#allocation0]]
  $region125: #{bert_forward.1} parent=0
    _
  %s23 = ssub.s32 1, %s21
  %s24 = scalar_select 0, %s23, %s21
  $region1: #{bert_forward.1} parent=0
    #allocation2 [shape = 'u8[131072]{0}', space=vmem, size = 0x20000, scoped, tag = 'input window, operand 6, single buffered']
    #allocation3 [shape = 's32[2]{0}', space=sflag, size = 0x8, scoped, tag = 'scoped memory for bert_forward.1']
    #allocation4 [shape = 's32[2]{0}', space=sflag, size = 0x8, scoped, tag = 'scoped memory for bert_forward.1']
    #allocation5 [shape = 'u8[131072]{0}', space=vmem, size = 0x20000, scoped, tag = 'input window, operand 10, single buffered']
    #allocation6 [shape = 's32[1]{0}', space=sflag, size = 0x4, scoped, tag = 'scoped memory for bert_forward.1']
    #allocation7 [shape = 'u8[131072]{0}', space=vmem, size = 0x20000, scoped, tag = 'input window, operand 12, single buffered']
    #allocation8 [shape = 'u8[1024]{0}', space=vmem, size = 0x400, scoped, tag = 'output window, operand 1']
    %25 = vsyncpa [#allocation3], 0
    %26 = vsyncpa [#allocation6], 0
    %27 = vsyncpa [#allocation4], 0
    %s28 = scalar_lea.sflag [#allocation4], 1
    %29 = vsyncpa %s28, 0
    loop: start=0, step=1, limit=4
    $region2: #{bert_forward.1} parent=1 // loop_pre_header
      _
    $region3: #{bert_forward.1} parent=1 // loop_header
      %s31 = sphi 0, %s35
      %p32 = scmp.ge.s32.totalorder %s31, 4
      %s41 = sphi 0, %s43
      %s44 = sphi 0, %s41
      %s45 = sphi 0, %s44
      %s61 = sphi 0, %s45
      %s67 = sphi 0, %s69
      %s70 = sphi 0, %s67
      %s71 = sphi 0, %s70
      %s87 = sphi 0, %s71
      %s91 = sphi 0, %s91
      %s93 = sphi 0, %s91
      %s94 = sphi 0, %s93
      %s108 = sphi 0, %s94
      %s112 = sphi 0, %s112
      %s114 = sphi 0, %s112
      %s115 = sphi 0, %s114
      %s129 = sphi 0, %s115
      %s133 = sphi 0, %s133
      %s135 = sphi 0, %s133
      %s136 = sphi 0, %s135
      %s150 = sphi 0, %s136
      %s154 = sphi 0, %s154
      %s156 = sphi 0, %s154
      %s157 = sphi 0, %s156
      %s171 = sphi 0, %s157
      %s175 = sphi 0, %s175
      %s177 = sphi 0, %s175
      %s178 = sphi 0, %s177
      %s192 = sphi 0, %s178
      %s196 = sphi 0, %s196
      %s198 = sphi 0, %s196
      %s199 = sphi 0, %s198
      %s213 = sphi 0, %s199
      %s217 = sphi 0, %s217
      %s219 = sphi 0, %s217
      %s220 = sphi 0, %s219
      %s234 = sphi 0, %s220
      %s238 = sphi 0, %s238
      %s240 = sphi 0, %s238
      %s241 = sphi 0, %s240
      %s255 = sphi 0, %s241
      %s259 = sphi 0, %s259
      %s261 = sphi 0, %s259
      %s262 = sphi 0, %s261
      %s276 = sphi 0, %s262
      %s280 = sphi 0, %s280
      %s282 = sphi 0, %s280
      %s283 = sphi 0, %s282
      %s297 = sphi 0, %s283
      %s301 = sphi 0, %s301
      %s303 = sphi 0, %s301
      %s304 = sphi 0, %s303
      %s318 = sphi 0, %s304
      %s322 = sphi 0, %s322
      %s324 = sphi 0, %s322
      %s325 = sphi 0, %s324
      %s339 = sphi 0, %s325
      %s343 = sphi 0, %s343
      %s345 = sphi 0, %s343
      %s346 = sphi 0, %s345
      %s360 = sphi 0, %s346
      %s364 = sphi 0, %s364
      %s366 = sphi 0, %s364
      %s367 = sphi 0, %s366
      %s381 = sphi 0, %s367
      %s385 = sphi 0, %s385
      %s387 = sphi 0, %s385
      %s388 = sphi 0, %s387
      %s402 = sphi 0, %s388
      %s406 = sphi 0, %s406
      %s408 = sphi 0, %s406
      %s409 = sphi 0, %s408
      %s423 = sphi 0, %s409
      %s429 = sphi 0, %s431
      %s432 = sphi 0, %s429
      %s433 = sphi 0, %s432
      %s449 = sphi 0, %s433
      %s455 = sphi 0, %s457
      %s458 = sphi 0, %s455
      %s459 = sphi 0, %s458
      %s475 = sphi 0, %s459
    $region4: #{bert_forward.1} parent=1 // loop_header_branch
      %34 = sbr.rel (%p32) target = $region8
    $region5: #{bert_forward.1} parent=1 // loop_body
      %s36 = ssub.s32 %s31, 1
      %s37 = ssub.s32 %s31, 2
      %s38 = sadd.s32 %s31, 1
      %s39 = ssub.s32 %s31, %s38
      %p40 = scmp.eq.s32.totalorder %s39, 0
      %s42 = sadd.s32 %s41, 1
      %s43 = scalar_select %p40, %s41, %s42
      %p46 = pneg %p40
      %p47 = scmp.eq.s32.totalorder %s31, 1
      %p48 = por %p46, %p47
      %p49 = scmp.ne.s32.totalorder %s41, %s44
      %p50 = scmp.eq.s32.totalorder %s31, 0
      %p51 = por %p49, %p50
      %p52 = scmp.ne.s32.totalorder %s41, %s44
      %p53 = scmp.eq.s32.totalorder %s36, 1
      %p54 = por %p52, %p53
      %p55 = scmp.ne.s32.totalorder %s44, %s45
      %p56 = scmp.eq.s32.totalorder %s36, 0
      %p57 = por %p55, %p56
      %p58 = scmp.ne.s32.totalorder %s44, %s45
      %p59 = scmp.eq.s32.totalorder %s37, 1
      %p60 = por %p58, %p59
      %p62 = scmp.ne.s32.totalorder %s45, %s61
      %p63 = scmp.eq.s32.totalorder %s37, 0
      %p64 = por %p62, %p63
      %s65 = ssub.s32 %s31, %s38
      %p66 = scmp.eq.s32.totalorder %s65, 0
      %s68 = sadd.s32 %s67, 1
      %s69 = scalar_select %p66, %s67, %s68
      %p72 = pneg %p66
      %p73 = scmp.eq.s32.totalorder %s31, 1
      %p74 = por %p72, %p73
      %p75 = scmp.ne.s32.totalorder %s67, %s70
      %p76 = scmp.eq.s32.totalorder %s31, 0
      %p77 = por %p75, %p76
      %p78 = scmp.ne.s32.totalorder %s67, %s70
      %p79 = scmp.eq.s32.totalorder %s36, 1
      %p80 = por %p78, %p79
      %p81 = scmp.ne.s32.totalorder %s70, %s71
      %p82 = scmp.eq.s32.totalorder %s36, 0
      %p83 = por %p81, %p82
      %p84 = scmp.ne.s32.totalorder %s70, %s71
      %p85 = scmp.eq.s32.totalorder %s37, 1
      %p86 = por %p84, %p85
      %p88 = scmp.ne.s32.totalorder %s71, %s87
      %p89 = scmp.eq.s32.totalorder %s37, 0
      %p90 = por %p88, %p89
      %s92 = sadd.s32 %s91, 1
      %p95 = scmp.eq.s32.totalorder %s31, 1
      %p96 = scmp.ne.s32.totalorder %s91, %s93
      %p97 = scmp.eq.s32.totalorder %s31, 0
      %p98 = por %p96, %p97
      %p99 = scmp.ne.s32.totalorder %s91, %s93
      %p100 = scmp.eq.s32.totalorder %s36, 1
      %p101 = por %p99, %p100
      %p102 = scmp.ne.s32.totalorder %s93, %s94
      %p103 = scmp.eq.s32.totalorder %s36, 0
      %p104 = por %p102, %p103
      %p105 = scmp.ne.s32.totalorder %s93, %s94
      %p106 = scmp.eq.s32.totalorder %s37, 1
      %p107 = por %p105, %p106
      %p109 = scmp.ne.s32.totalorder %s94, %s108
      %p110 = scmp.eq.s32.totalorder %s37, 0
      %p111 = por %p109, %p110
      %s113 = sadd.s32 %s112, 1
      %p116 = scmp.eq.s32.totalorder %s31, 1
      %p117 = scmp.ne.s32.totalorder %s112, %s114
      %p118 = scmp.eq.s32.totalorder %s31, 0
      %p119 = por %p117, %p118
      %p120 = scmp.ne.s32.totalorder %s112, %s114
      %p121 = scmp.eq.s32.totalorder %s36, 1
      %p122 = por %p120, %p121
      %p123 = scmp.ne.s32.totalorder %s114, %s115
      %p124 = scmp.eq.s32.totalorder %s36, 0
      %p125 = por %p123, %p124
      %p126 = scmp.ne.s32.totalorder %s114, %s115
      %p127 = scmp.eq.s32.totalorder %s37, 1
      %p128 = por %p126, %p127
      %p130 = scmp.ne.s32.totalorder %s115, %s129
      %p131 = scmp.eq.s32.totalorder %s37, 0
      %p132 = por %p130, %p131
      %s134 = sadd.s32 %s133, 1
      %p137 = scmp.eq.s32.totalorder %s31, 1
      %p138 = scmp.ne.s32.totalorder %s133, %s135
      %p139 = scmp.eq.s32.totalorder %s31, 0
      %p140 = por %p138, %p139
      %p141 = scmp.ne.s32.totalorder %s133, %s135
      %p142 = scmp.eq.s32.totalorder %s36, 1
      %p143 = por %p141, %p142
      %p144 = scmp.ne.s32.totalorder %s135, %s136
      %p145 = scmp.eq.s32.totalorder %s36, 0
      %p146 = por %p144, %p145
      %p147 = scmp.ne.s32.totalorder %s135, %s136
      %p148 = scmp.eq.s32.totalorder %s37, 1
      %p149 = por %p147, %p148
      %p151 = scmp.ne.s32.totalorder %s136, %s150
      %p152 = scmp.eq.s32.totalorder %s37, 0
      %p153 = por %p151, %p152
      %s155 = sadd.s32 %s154, 1
      %p158 = scmp.eq.s32.totalorder %s31, 1
      %p159 = scmp.ne.s32.totalorder %s154, %s156
      %p160 = scmp.eq.s32.totalorder %s31, 0
      %p161 = por %p159, %p160
      %p162 = scmp.ne.s32.totalorder %s154, %s156
      %p163 = scmp.eq.s32.totalorder %s36, 1
      %p164 = por %p162, %p163
      %p165 = scmp.ne.s32.totalorder %s156, %s157
      %p166 = scmp.eq.s32.totalorder %s36, 0
      %p167 = por %p165, %p166
      %p168 = scmp.ne.s32.totalorder %s156, %s157
      %p169 = scmp.eq.s32.totalorder %s37, 1
      %p170 = por %p168, %p169
      %p172 = scmp.ne.s32.totalorder %s157, %s171
      %p173 = scmp.eq.s32.totalorder %s37, 0
      %p174 = por %p172, %p173
      %s176 = sadd.s32 %s175, 1
      %p179 = scmp.eq.s32.totalorder %s31, 1
      %p180 = scmp.ne.s32.totalorder %s175, %s177
      %p181 = scmp.eq.s32.totalorder %s31, 0
      %p182 = por %p180, %p181
      %p183 = scmp.ne.s32.totalorder %s175, %s177
      %p184 = scmp.eq.s32.totalorder %s36, 1
      %p185 = por %p183, %p184
      %p186 = scmp.ne.s32.totalorder %s177, %s178
      %p187 = scmp.eq.s32.totalorder %s36, 0
      %p188 = por %p186, %p187
      %p189 = scmp.ne.s32.totalorder %s177, %s178
      %p190 = scmp.eq.s32.totalorder %s37, 1
      %p191 = por %p189, %p190
      %p193 = scmp.ne.s32.totalorder %s178, %s192
      %p194 = scmp.eq.s32.totalorder %s37, 0
      %p195 = por %p193, %p194
      %s197 = sadd.s32 %s196, 1
      %p200 = scmp.eq.s32.totalorder %s31, 1
      %p201 = scmp.ne.s32.totalorder %s196, %s198
      %p202 = scmp.eq.s32.totalorder %s31, 0
      %p203 = por %p201, %p202
      %p204 = scmp.ne.s32.totalorder %s196, %s198
      %p205 = scmp.eq.s32.totalorder %s36, 1
      %p206 = por %p204, %p205
      %p207 = scmp.ne.s32.totalorder %s198, %s199
      %p208 = scmp.eq.s32.totalorder %s36, 0
      %p209 = por %p207, %p208
      %p210 = scmp.ne.s32.totalorder %s198, %s199
      %p211 = scmp.eq.s32.totalorder %s37, 1
      %p212 = por %p210, %p211
      %p214 = scmp.ne.s32.totalorder %s199, %s213
      %p215 = scmp.eq.s32.totalorder %s37, 0
      %p216 = por %p214, %p215
      %s218 = sadd.s32 %s217, 1
      %p221 = scmp.eq.s32.totalorder %s31, 1
      %p222 = scmp.ne.s32.totalorder %s217, %s219
      %p223 = scmp.eq.s32.totalorder %s31, 0
      %p224 = por %p222, %p223
      %p225 = scmp.ne.s32.totalorder %s217, %s219
      %p226 = scmp.eq.s32.totalorder %s36, 1
      %p227 = por %p225, %p226
      %p228 = scmp.ne.s32.totalorder %s219, %s220
      %p229 = scmp.eq.s32.totalorder %s36, 0
      %p230 = por %p228, %p229
      %p231 = scmp.ne.s32.totalorder %s219, %s220
      %p232 = scmp.eq.s32.totalorder %s37, 1
      %p233 = por %p231, %p232
      %p235 = scmp.ne.s32.totalorder %s220, %s234
      %p236 = scmp.eq.s32.totalorder %s37, 0
      %p237 = por %p235, %p236
      %s239 = sadd.s32 %s238, 1
      %p242 = scmp.eq.s32.totalorder %s31, 1
      %p243 = scmp.ne.s32.totalorder %s238, %s240
      %p244 = scmp.eq.s32.totalorder %s31, 0
      %p245 = por %p243, %p244
      %p246 = scmp.ne.s32.totalorder %s238, %s240
      %p247 = scmp.eq.s32.totalorder %s36, 1
      %p248 = por %p246, %p247
      %p249 = scmp.ne.s32.totalorder %s240, %s241
      %p250 = scmp.eq.s32.totalorder %s36, 0
      %p251 = por %p249, %p250
      %p252 = scmp.ne.s32.totalorder %s240, %s241
      %p253 = scmp.eq.s32.totalorder %s37, 1
      %p254 = por %p252, %p253
      %p256 = scmp.ne.s32.totalorder %s241, %s255
      %p257 = scmp.eq.s32.totalorder %s37, 0
      %p258 = por %p256, %p257
      %s260 = sadd.s32 %s259, 1
      %p263 = scmp.eq.s32.totalorder %s31, 1
      %p264 = scmp.ne.s32.totalorder %s259, %s261
      %p265 = scmp.eq.s32.totalorder %s31, 0
      %p266 = por %p264, %p265
      %p267 = scmp.ne.s32.totalorder %s259, %s261
      %p268 = scmp.eq.s32.totalorder %s36, 1
      %p269 = por %p267, %p268
      %p270 = scmp.ne.s32.totalorder %s261, %s262
      %p271 = scmp.eq.s32.totalorder %s36, 0
      %p272 = por %p270, %p271
      %p273 = scmp.ne.s32.totalorder %s261, %s262
      %p274 = scmp.eq.s32.totalorder %s37, 1
      %p275 = por %p273, %p274
      %p277 = scmp.ne.s32.totalorder %s262, %s276
      %p278 = scmp.eq.s32.totalorder %s37, 0
      %p279 = por %p277, %p278
      %s281 = sadd.s32 %s280, 1
      %p284 = scmp.eq.s32.totalorder %s31, 1
      %p285 = scmp.ne.s32.totalorder %s280, %s282
      %p286 = scmp.eq.s32.totalorder %s31, 0
      %p287 = por %p285, %p286
      %p288 = scmp.ne.s32.totalorder %s280, %s282
      %p289 = scmp.eq.s32.totalorder %s36, 1
      %p290 = por %p288, %p289
      %p291 = scmp.ne.s32.totalorder %s282, %s283
      %p292 = scmp.eq.s32.totalorder %s36, 0
      %p293 = por %p291, %p292
      %p294 = scmp.ne.s32.totalorder %s282, %s283
      %p295 = scmp.eq.s32.totalorder %s37, 1
      %p296 = por %p294, %p295
      %p298 = scmp.ne.s32.totalorder %s283, %s297
      %p299 = scmp.eq.s32.totalorder %s37, 0
      %p300 = por %p298, %p299
      %s302 = sadd.s32 %s301, 1
      %p305 = scmp.eq.s32.totalorder %s31, 1
      %p306 = scmp.ne.s32.totalorder %s301, %s303
      %p307 = scmp.eq.s32.totalorder %s31, 0
      %p308 = por %p306, %p307
      %p309 = scmp.ne.s32.totalorder %s301, %s303
      %p310 = scmp.eq.s32.totalorder %s36, 1
      %p311 = por %p309, %p310
      %p312 = scmp.ne.s32.totalorder %s303, %s304
      %p313 = scmp.eq.s32.totalorder %s36, 0
      %p314 = por %p312, %p313
      %p315 = scmp.ne.s32.totalorder %s303, %s304
      %p316 = scmp.eq.s32.totalorder %s37, 1
      %p317 = por %p315, %p316
      %p319 = scmp.ne.s32.totalorder %s304, %s318
      %p320 = scmp.eq.s32.totalorder %s37, 0
      %p321 = por %p319, %p320
      %s323 = sadd.s32 %s322, 1
      %p326 = scmp.eq.s32.totalorder %s31, 1
      %p327 = scmp.ne.s32.totalorder %s322, %s324
      %p328 = scmp.eq.s32.totalorder %s31, 0
      %p329 = por %p327, %p328
      %p330 = scmp.ne.s32.totalorder %s322, %s324
      %p331 = scmp.eq.s32.totalorder %s36, 1
      %p332 = por %p330, %p331
      %p333 = scmp.ne.s32.totalorder %s324, %s325
      %p334 = scmp.eq.s32.totalorder %s36, 0
      %p335 = por %p333, %p334
      %p336 = scmp.ne.s32.totalorder %s324, %s325
      %p337 = scmp.eq.s32.totalorder %s37, 1
      %p338 = por %p336, %p337
      %p340 = scmp.ne.s32.totalorder %s325, %s339
      %p341 = scmp.eq.s32.totalorder %s37, 0
      %p342 = por %p340, %p341
      %s344 = sadd.s32 %s343, 1
      %p347 = scmp.eq.s32.totalorder %s31, 1
      %p348 = scmp.ne.s32.totalorder %s343, %s345
      %p349 = scmp.eq.s32.totalorder %s31, 0
      %p350 = por %p348, %p349
      %p351 = scmp.ne.s32.totalorder %s343, %s345
      %p352 = scmp.eq.s32.totalorder %s36, 1
      %p353 = por %p351, %p352
      %p354 = scmp.ne.s32.totalorder %s345, %s346
      %p355 = scmp.eq.s32.totalorder %s36, 0
      %p356 = por %p354, %p355
      %p357 = scmp.ne.s32.totalorder %s345, %s346
      %p358 = scmp.eq.s32.totalorder %s37, 1
      %p359 = por %p357, %p358
      %p361 = scmp.ne.s32.totalorder %s346, %s360
      %p362 = scmp.eq.s32.totalorder %s37, 0
      %p363 = por %p361, %p362
      %s365 = sadd.s32 %s364, 1
      %p368 = scmp.eq.s32.totalorder %s31, 1
      %p369 = scmp.ne.s32.totalorder %s364, %s366
      %p370 = scmp.eq.s32.totalorder %s31, 0
      %p371 = por %p369, %p370
      %p372 = scmp.ne.s32.totalorder %s364, %s366
      %p373 = scmp.eq.s32.totalorder %s36, 1
      %p374 = por %p372, %p373
      %p375 = scmp.ne.s32.totalorder %s366, %s367
      %p376 = scmp.eq.s32.totalorder %s36, 0
      %p377 = por %p375, %p376
      %p378 = scmp.ne.s32.totalorder %s366, %s367
      %p379 = scmp.eq.s32.totalorder %s37, 1
      %p380 = por %p378, %p379
      %p382 = scmp.ne.s32.totalorder %s367, %s381
      %p383 = scmp.eq.s32.totalorder %s37, 0
      %p384 = por %p382, %p383
      %s386 = sadd.s32 %s385, 1
      %p389 = scmp.eq.s32.totalorder %s31, 1
      %p390 = scmp.ne.s32.totalorder %s385, %s387
      %p391 = scmp.eq.s32.totalorder %s31, 0
      %p392 = por %p390, %p391
      %p393 = scmp.ne.s32.totalorder %s385, %s387
      %p394 = scmp.eq.s32.totalorder %s36, 1
      %p395 = por %p393, %p394
      %p396 = scmp.ne.s32.totalorder %s387, %s388
      %p397 = scmp.eq.s32.totalorder %s36, 0
      %p398 = por %p396, %p397
      %p399 = scmp.ne.s32.totalorder %s387, %s388
      %p400 = scmp.eq.s32.totalorder %s37, 1
      %p401 = por %p399, %p400
      %p403 = scmp.ne.s32.totalorder %s388, %s402
      %p404 = scmp.eq.s32.totalorder %s37, 0
      %p405 = por %p403, %p404
      %s407 = sadd.s32 %s406, 1
      %p410 = scmp.eq.s32.totalorder %s31, 1
      %p411 = scmp.ne.s32.totalorder %s406, %s408
      %p412 = scmp.eq.s32.totalorder %s31, 0
      %p413 = por %p411, %p412
      %p414 = scmp.ne.s32.totalorder %s406, %s408
      %p415 = scmp.eq.s32.totalorder %s36, 1
      %p416 = por %p414, %p415
      %p417 = scmp.ne.s32.totalorder %s408, %s409
      %p418 = scmp.eq.s32.totalorder %s36, 0
      %p419 = por %p417, %p418
      %p420 = scmp.ne.s32.totalorder %s408, %s409
      %p421 = scmp.eq.s32.totalorder %s37, 1
      %p422 = por %p420, %p421
      %p424 = scmp.ne.s32.totalorder %s409, %s423
      %p425 = scmp.eq.s32.totalorder %s37, 0
      %p426 = por %p424, %p425
      %s427 = ssub.s32 %s31, %s38
      %p428 = scmp.eq.s32.totalorder %s427, 0
      %s430 = sadd.s32 %s429, 1
      %s431 = scalar_select %p428, %s429, %s430
      %p434 = pneg %p428
      %p435 = scmp.eq.s32.totalorder %s31, 1
      %p436 = por %p434, %p435
      %p437 = scmp.ne.s32.totalorder %s429, %s432
      %p438 = scmp.eq.s32.totalorder %s31, 0
      %p439 = por %p437, %p438
      %p440 = scmp.ne.s32.totalorder %s429, %s432
      %p441 = scmp.eq.s32.totalorder %s36, 1
      %p442 = por %p440, %p441
      %p443 = scmp.ne.s32.totalorder %s432, %s433
      %p444 = scmp.eq.s32.totalorder %s36, 0
      %p445 = por %p443, %p444
      %p446 = scmp.ne.s32.totalorder %s432, %s433
      %p447 = scmp.eq.s32.totalorder %s37, 1
      %p448 = por %p446, %p447
      %p450 = scmp.ne.s32.totalorder %s433, %s449
      %p451 = scmp.eq.s32.totalorder %s37, 0
      %p452 = por %p450, %p451
      %s453 = ssub.s32 %s31, %s38
      %p454 = scmp.eq.s32.totalorder %s453, 0
      %s456 = sadd.s32 %s455, 1
      %s457 = scalar_select %p454, %s455, %s456
      %p460 = pneg %p454
      %p461 = scmp.eq.s32.totalorder %s31, 1
      %p462 = por %p460, %p461
      %p463 = scmp.ne.s32.totalorder %s455, %s458
      %p464 = scmp.eq.s32.totalorder %s31, 0
      %p465 = por %p463, %p464
      %p466 = scmp.ne.s32.totalorder %s455, %s458
      %p467 = scmp.eq.s32.totalorder %s36, 1
      %p468 = por %p466, %p467
      %p469 = scmp.ne.s32.totalorder %s458, %s459
      %p470 = scmp.eq.s32.totalorder %s36, 0
      %p471 = por %p469, %p470
      %p472 = scmp.ne.s32.totalorder %s458, %s459
      %p473 = scmp.eq.s32.totalorder %s37, 1
      %p474 = por %p472, %p473
      %p476 = scmp.ne.s32.totalorder %s459, %s475
      %p477 = scmp.eq.s32.totalorder %s37, 0
      %p478 = por %p476, %p477
      %p479 = scmp.le.s32.totalorder 1, %s31
      %p480 = scmp.lt.s32.totalorder %s31, 3
      %p481 = pnand %p479, %p480
      %p482 = pneg %p481
      // Predicated region
      $region9: #{bert_forward.1} parent=5 // pred_check
        _
      $region10: #{bert_forward.1} parent=5 // pred_check_branch
        %484 = sbr.rel (%p481) target = $region12
      $region11: #{bert_forward.1} parent=5 // pred_region
        %s485 = ssub.s32 %s31, 1
        // Predicated region
        $region13: #{bert_forward.1} parent=11 // pred_check
          %p486 = pneg %p104
        $region14: #{bert_forward.1} parent=11 // pred_check_branch
          %488 = sbr.rel (%p486) target = $region16
        $region15: #{bert_forward.1} parent=11 // pred_region
          _
        $region16: #{bert_forward.1} parent=11 // pred_fallthru
          _
        // Predicated region
        $region17: #{bert_forward.1} parent=11 // pred_check
          %p489 = pneg %p125
        $region18: #{bert_forward.1} parent=11 // pred_check_branch
          %491 = sbr.rel (%p489) target = $region20
        $region19: #{bert_forward.1} parent=11 // pred_region
          _
        $region20: #{bert_forward.1} parent=11 // pred_fallthru
          _
        // Predicated region
        $region21: #{bert_forward.1} parent=11 // pred_check
          %p492 = pneg %p146
        $region22: #{bert_forward.1} parent=11 // pred_check_branch
          %494 = sbr.rel (%p492) target = $region24
        $region23: #{bert_forward.1} parent=11 // pred_region
          _
        $region24: #{bert_forward.1} parent=11 // pred_fallthru
          _
        // Predicated region
        $region25: #{bert_forward.1} parent=11 // pred_check
          %p495 = pneg %p167
        $region26: #{bert_forward.1} parent=11 // pred_check_branch
          %497 = sbr.rel (%p495) target = $region28
        $region27: #{bert_forward.1} parent=11 // pred_region
          _
        $region28: #{bert_forward.1} parent=11 // pred_fallthru
          _
        // Predicated region
        $region29: #{bert_forward.1} parent=11 // pred_check
          %p498 = pneg %p188
        $region30: #{bert_forward.1} parent=11 // pred_check_branch
          %500 = sbr.rel (%p498) target = $region32
        $region31: #{bert_forward.1} parent=11 // pred_region
          %s502 = ssub.s32 4096, 4096
          %503 = vsyncadd [#allocation3], %s502
          %s504 = sshll.u32 [#allocation2], 4
          %s505 = int_to_ptr.vmem [resolvable:$true] %s504
          %510 = dma.hbm_to_vmem [thread:$0]  %s6, 4096, %s505, [#allocation3], 128, 128, 8
        $region32: #{bert_forward.1} parent=11 // pred_fallthru
          _
        // Predicated region
        $region33: #{bert_forward.1} parent=11 // pred_check
          %p511 = pneg %p209
        $region34: #{bert_forward.1} parent=11 // pred_check_branch
          %513 = sbr.rel (%p511) target = $region36
        $region35: #{bert_forward.1} parent=11 // pred_region
          _
        $region36: #{bert_forward.1} parent=11 // pred_fallthru
          _
        // Predicated region
        $region37: #{bert_forward.1} parent=11 // pred_check
          %p514 = pneg %p230
        $region38: #{bert_forward.1} parent=11 // pred_check_branch
          %516 = sbr.rel (%p514) target = $region40
        $region39: #{bert_forward.1} parent=11 // pred_region
          _
        $region40: #{bert_forward.1} parent=11 // pred_fallthru
          _
        // Predicated region
        $region41: #{bert_forward.1} parent=11 // pred_check
          %p517 = pneg %p251
        $region42: #{bert_forward.1} parent=11 // pred_check_branch
          %519 = sbr.rel (%p517) target = $region44
        $region43: #{bert_forward.1} parent=11 // pred_region
          _
        $region44: #{bert_forward.1} parent=11 // pred_fallthru
          _
        // Predicated region
        $region45: #{bert_forward.1} parent=11 // pred_check
          %p520 = pneg %p272
        $region46: #{bert_forward.1} parent=11 // pred_check_branch
          %522 = sbr.rel (%p520) target = $region48
        $region47: #{bert_forward.1} parent=11 // pred_region
          %s524 = ssub.s32 4096, 4096
          %525 = vsyncadd [#allocation6], %s524
          %s526 = sshll.u32 [#allocation5], 4
          %s527 = int_to_ptr.vmem [resolvable:$true] %s526
          %532 = dma.hbm_to_vmem [thread:$0]  %s10, 4096, %s527, [#allocation6], 128, 128, 8
        $region48: #{bert_forward.1} parent=11 // pred_fallthru
          _
        // Predicated region
        $region49: #{bert_forward.1} parent=11 // pred_check
          %p533 = pneg %p293
        $region50: #{bert_forward.1} parent=11 // pred_check_branch
          %535 = sbr.rel (%p533) target = $region52
        $region51: #{bert_forward.1} parent=11 // pred_region
          _
        $region52: #{bert_forward.1} parent=11 // pred_fallthru
          _
        // Predicated region
        $region53: #{bert_forward.1} parent=11 // pred_check
          %p536 = pneg %p314
        $region54: #{bert_forward.1} parent=11 // pred_check_branch
          %538 = sbr.rel (%p536) target = $region56
        $region55: #{bert_forward.1} parent=11 // pred_region
          %s540 = ssub.s32 4096, 4096
          %541 = vsyncadd [#allocation6], %s540
          %s542 = sshll.u32 [#allocation7], 4
          %s543 = int_to_ptr.vmem [resolvable:$true] %s542
          %548 = dma.hbm_to_vmem [thread:$0]  %s12, 4096, %s543, [#allocation6], 128, 128, 8
        $region56: #{bert_forward.1} parent=11 // pred_fallthru
          _
        // Predicated region
        $region57: #{bert_forward.1} parent=11 // pred_check
          %p549 = pneg %p335
        $region58: #{bert_forward.1} parent=11 // pred_check_branch
          %551 = sbr.rel (%p549) target = $region60
        $region59: #{bert_forward.1} parent=11 // pred_region
          _
        $region60: #{bert_forward.1} parent=11 // pred_fallthru
          _
        // Predicated region
        $region61: #{bert_forward.1} parent=11 // pred_check
          %p552 = pneg %p356
        $region62: #{bert_forward.1} parent=11 // pred_check_branch
          %554 = sbr.rel (%p552) target = $region64
        $region63: #{bert_forward.1} parent=11 // pred_region
          _
        $region64: #{bert_forward.1} parent=11 // pred_fallthru
          _
        // Predicated region
        $region65: #{bert_forward.1} parent=11 // pred_check
          %p555 = pneg %p377
        $region66: #{bert_forward.1} parent=11 // pred_check_branch
          %557 = sbr.rel (%p555) target = $region68
        $region67: #{bert_forward.1} parent=11 // pred_region
          _
        $region68: #{bert_forward.1} parent=11 // pred_fallthru
          _
        // Predicated region
        $region69: #{bert_forward.1} parent=11 // pred_check
          %p558 = pneg %p398
        $region70: #{bert_forward.1} parent=11 // pred_check_branch
          %560 = sbr.rel (%p558) target = $region72
        $region71: #{bert_forward.1} parent=11 // pred_region
          _
        $region72: #{bert_forward.1} parent=11 // pred_fallthru
          _
        // Predicated region
        $region73: #{bert_forward.1} parent=11 // pred_check
          %p561 = pneg %p419
        $region74: #{bert_forward.1} parent=11 // pred_check_branch
          %563 = sbr.rel (%p561) target = $region76
        $region75: #{bert_forward.1} parent=11 // pred_region
          _
        $region76: #{bert_forward.1} parent=11 // pred_fallthru
          _
      $region12: #{bert_forward.1} parent=5 // pred_fallthru
        _
      %p564 = scmp.lt.s32.totalorder %s31, 2
      // Predicated region
      $region77: #{bert_forward.1} parent=5 // pred_check
        %p565 = pneg %p564
      $region78: #{bert_forward.1} parent=5 // pred_check_branch
        %567 = sbr.rel (%p565) target = $region80
      $region79: #{bert_forward.1} parent=5 // pred_region
        // Predicated region
        $region81: #{bert_forward.1} parent=79 // pred_check
          %p568 = pneg %p51
        $region82: #{bert_forward.1} parent=79 // pred_check_branch
          %570 = sbr.rel (%p568) target = $region84
        $region83: #{bert_forward.1} parent=79 // pred_region
          %p571 = scmp.lt.s32.totalorder %s31, 1
          %s572 = scalar_select %p571, %s31, 1
          %s573 = smul.addr %s572, 8
          %s574 = scalar_lea.vmem %s0, %s573
        $region84: #{bert_forward.1} parent=79 // pred_fallthru
          _
        // Predicated region
        $region85: #{bert_forward.1} parent=79 // pred_check
          %p575 = pneg %p77
        $region86: #{bert_forward.1} parent=79 // pred_check_branch
          %577 = sbr.rel (%p575) target = $region88
        $region87: #{bert_forward.1} parent=79 // pred_region
          %p578 = scmp.lt.s32.totalorder %s31, 1
          %s579 = scalar_select %p578, %s31, 1
          %s580 = scalar_lea.vmem %s1, %s579
        $region88: #{bert_forward.1} parent=79 // pred_fallthru
          _
      $region80: #{bert_forward.1} parent=5 // pred_fallthru
        _
      %p581 = scmp.le.s32.totalorder 1, %s31
      %p582 = scmp.lt.s32.totalorder %s31, 3
      %p583 = pnand %p581, %p582
      %p584 = pneg %p583
      // Predicated region
      $region89: #{bert_forward.1} parent=5 // pred_check
        _
      $region90: #{bert_forward.1} parent=5 // pred_check_branch
        %586 = sbr.rel (%p583) target = $region92
      $region91: #{bert_forward.1} parent=5 // pred_region
        %s587 = ssub.s32 %s31, 1
        // Predicated region
        $region93: #{bert_forward.1} parent=91 // pred_check
          %p588 = pneg %p188
        $region94: #{bert_forward.1} parent=91 // pred_check_branch
          %590 = sbr.rel (%p588) target = $region96
        $region95: #{bert_forward.1} parent=91 // pred_region
          %591 = dma.done [#allocation3], 4096
        $region96: #{bert_forward.1} parent=91 // pred_fallthru
          _
        // Predicated region
        $region97: #{bert_forward.1} parent=91 // pred_check
          %p592 = pneg %p272
        $region98: #{bert_forward.1} parent=91 // pred_check_branch
          %594 = sbr.rel (%p592) target = $region100
        $region99: #{bert_forward.1} parent=91 // pred_region
          %595 = dma.done [#allocation6], 4096
        $region100: #{bert_forward.1} parent=91 // pred_fallthru
          _
        // Predicated region
        $region101: #{bert_forward.1} parent=91 // pred_check
          %p596 = pneg %p314
        $region102: #{bert_forward.1} parent=91 // pred_check_branch
          %598 = sbr.rel (%p596) target = $region104
        $region103: #{bert_forward.1} parent=91 // pred_region
          %599 = dma.done [#allocation6], 4096
        $region104: #{bert_forward.1} parent=91 // pred_fallthru
          _
        %p600 = scmp.lt.s32.totalorder %s36, 1
        %s601 = scalar_select %p600, %s36, 1
        %s602 = smul.addr %s601, 8
        %s603 = scalar_lea.vmem %s0, %s602
        %p604 = pneg %p57
        %p605 = pneg %p54
        %p606 = scmp.lt.s32.totalorder %s36, 1
        %s607 = scalar_select %p606, %s36, 1
        %s608 = scalar_lea.vmem %s1, %s607
        %p609 = pneg %p83
        %p610 = pneg %p80
        %p611 = pneg %p104
        %p612 = pneg %p101
        %p613 = pneg %p125
        %p614 = pneg %p122
        %p615 = pneg %p146
        %p616 = pneg %p143
        %p617 = pneg %p167
        %p618 = pneg %p164
        %p619 = pneg %p188
        %p620 = pneg %p185
        %p621 = pneg %p209
        %p622 = pneg %p206
        %p623 = pneg %p230
        %p624 = pneg %p227
        %p625 = pneg %p251
        %p626 = pneg %p248
        %p627 = pneg %p272
        %p628 = pneg %p269
        %p629 = pneg %p293
        %p630 = pneg %p290
        %p631 = pneg %p314
        %p632 = pneg %p311
        %p633 = pneg %p335
        %p634 = pneg %p332
        %p635 = pneg %p356
        %p636 = pneg %p353
        %p637 = pneg %p377
        %p638 = pneg %p374
        %p639 = pneg %p398
        %p640 = pneg %p395
        %p641 = pneg %p419
        %p642 = pneg %p416
        %p643 = pneg %p445
        %p644 = pneg %p442
        %p645 = scmp.lt.s32.totalorder %s36, 1
        %s646 = scalar_select %p645, %s36, 1
        %s647 = smul.addr %s646, 8
        %s648 = scalar_lea.vmem %s18, %s647
        %p649 = pneg %p471
        %p650 = pneg %p468
        %s651 = sand.u32 %s458, 1
        %s652 = scalar_lea.sflag [#allocation4], %s651
        %s653 = sand.u32 %s458, 1
        %s654 = scalar_lea.vmem [#allocation8], %s653
        %p655 = scmp.lt.s32.totalorder %s36, 1
        %s656 = scalar_select %p655, %s36, 1
        %s657 = smul.addr %s656, 8
        %s658 = scalar_lea.vmem %s0, %s657
        %p659 = scmp.lt.s32.totalorder %s36, 1
        %s660 = scalar_select %p659, %s36, 1
        %s661 = scalar_lea.vmem %s1, %s660
        %p662 = scmp.lt.s32.totalorder %s36, 1
        %s663 = scalar_select %p662, %s36, 1
        %s664 = smul.addr %s663, 8
        %s665 = scalar_lea.vmem %s18, %s664
        %v666 = vld [vmem:[%s658] sm:$0xff]
        %v667 = vld [vmem:[%s661] sm:$0x1]
        %v668 = vld [vmem:[%s2] sm:$0x1]
        %v669 = vld [vmem:[%s3] sm:$0x1]
        %670 = vadd.xlane.f32.xlu0 %v666
        %v671 = vpop.xlane.xlu0 %670
        %v672 = vmul.f32 %v671, 0.03125
        %v673 = vmul.f32 %v666, %v666
        %674 = vadd.xlane.f32.xlu0 %v673
        %v675 = vpop.xlane.xlu0 %674
        %v676 = vmul.f32 %v675, 0.03125
        %v677 = vmul.f32 %v672, %v672
        %v678 = vsub.f32 %v676, %v677
        %v679 = vsub.f32 %v666, %v672
        %v680 = vadd.f32 %v678, 1e-12
        %v681 = vrsqrt.pop %v680
        %v682 = vmul.f32 %v679, %v681
        %v684 = vlaneseq
        %v685 = vshrl.u32 %v684, 7
        %v686 = vsub.s32 0, %v685
        %v687 = vrot.slane %v668, %v686
        %v689 = vmul.f32 %v682, %v687
        %v691 = vlaneseq
        %v692 = vshrl.u32 %v691, 7
        %v693 = vsub.s32 0, %v692
        %v694 = vrot.slane %v669, %v693
        %v696 = vadd.f32 %v689, %v694
        %v697 = vld [vmem:[%s4] sm:$0xff]
        %v698 = vld [vmem:[%s4 + $0x8] sm:$0xff]
        %v699 = vld [vmem:[%s4 + $0x10] sm:$0xff]
        %v700 = vld [vmem:[%s4 + $0x18] sm:$0xff]
        %v701 = vld [vmem:[%s4 + $0x20] sm:$0xff]
        %v702 = vld [vmem:[%s4 + $0x28] sm:$0xff]
        %v703 = vld [vmem:[%s4 + $0x30] sm:$0xff]
        %v704 = vld [vmem:[%s4 + $0x38] sm:$0xff]
        %v705 = vld [vmem:[%s4 + $0x40] sm:$0xff]
        %v706 = vld [vmem:[%s4 + $0x48] sm:$0xff]
        %v707 = vld [vmem:[%s4 + $0x50] sm:$0xff]
        %v708 = vld [vmem:[%s4 + $0x58] sm:$0xff]
        %v709 = vld [vmem:[%s4 + $0x60] sm:$0xff]
        %v710 = vld [vmem:[%s4 + $0x68] sm:$0xff]
        %v711 = vld [vmem:[%s4 + $0x70] sm:$0xff]
        %v712 = vld [vmem:[%s4 + $0x78] sm:$0xff]
        %v713 = vld [vmem:[%s5] sm:$0x1]
        %v715 = vlaneseq
        %v716 = vshrl.u32 %v715, 7
        %v717 = vsub.s32 0, %v716
        %v718 = vrot.slane %v713, %v717
        %720 = vmatprep.subr.mxu0 0.0
        %721 = vmatpush1.msra.mxu0 %v697
        %722 = vmatprep.subr.mxu0 0.0
        %723 = vmatpush1.msra.mxu0 %v698
        %724 = vmatprep.subr.mxu0 0.0
        %725 = vmatpush1.msra.mxu0 %v699
        %726 = vmatprep.subr.mxu0 0.0
        %727 = vmatpush1.msra.mxu0 %v700
        %728 = vmatprep.subr.mxu0 0.0
        %729 = vmatpush1.msra.mxu0 %v701
        %730 = vmatprep.subr.mxu0 0.0
        %731 = vmatpush1.msra.mxu0 %v702
        %732 = vmatprep.subr.mxu0 0.0
        %733 = vmatpush1.msra.mxu0 %v703
        %734 = vmatprep.subr.mxu0 0.0
        %735 = vmatpush1.msra.mxu0 %v704
        %736 = vmatprep.subr.mxu0 0.0
        %737 = vmatpush1.msra.mxu0 %v705
        %738 = vmatprep.subr.mxu0 0.0
        %739 = vmatpush1.msra.mxu0 %v706
        %740 = vmatprep.subr.mxu0 0.0
        %741 = vmatpush1.msra.mxu0 %v707
        %742 = vmatprep.subr.mxu0 0.0
        %743 = vmatpush1.msra.mxu0 %v708
        %744 = vmatprep.subr.mxu0 0.0
        %745 = vmatpush1.msra.mxu0 %v709
        %746 = vmatprep.subr.mxu0 0.0
        %747 = vmatpush1.msra.mxu0 %v710
        %748 = vmatprep.subr.mxu0 0.0
        %749 = vmatpush1.msra.mxu0 %v711
        %750 = vmatprep.subr.mxu0 0.0
        %751 = vmatpush1.msra.mxu0 %v712
        %752 = vmatprep.subr.mxu0 0.0
        %753 = vmatpush1.msra.mxu0 0.0
        %754 = vmatprep.subr.mxu0 0.0
        %755 = vmatpush1.msra.mxu0 0.0
        %756 = vmatprep.subr.mxu0 0.0
        %757 = vmatpush1.msra.mxu0 0.0
        %758 = vmatprep.subr.mxu0 0.0
        %759 = vmatpush1.msra.mxu0 0.0
        %760 = vmatprep.subr.mxu0 0.0
        %761 = vmatpush1.msra.mxu0 0.0
        %762 = vmatprep.subr.mxu0 0.0
        %763 = vmatpush1.msra.mxu0 0.0
        %764 = vmatprep.subr.mxu0 0.0
        %765 = vmatpush1.msra.mxu0 0.0
        %766 = vmatprep.subr.mxu0 0.0
        %767 = vmatpush1.msra.mxu0 0.0
        %768 = vmatprep.subr.mxu0 0.0
        %769 = vmatpush1.msra.mxu0 0.0
        %770 = vmatprep.subr.mxu0 0.0
        %771 = vmatpush1.msra.mxu0 0.0
        %772 = vmatprep.subr.mxu0 0.0
        %773 = vmatpush1.msra.mxu0 0.0
        %774 = vmatprep.subr.mxu0 0.0
        %775 = vmatpush1.msra.mxu0 0.0
        %776 = vmatprep.subr.mxu0 0.0
        %777 = vmatpush1.msra.mxu0 0.0
        %778 = vmatprep.subr.mxu0 0.0
        %779 = vmatpush1.msra.mxu0 0.0
        %780 = vmatprep.subr.mxu0 0.0
        %781 = vmatpush1.msra.mxu0 0.0
        %782 = vmatprep.subr.mxu0 0.0
        %783 = vmatpush1.msra.mxu0 0.0
        %784 = vmatprep.mubr.f32.mxu0 0.0
        %785 = vmatmul.mubr.f32.gmra.mrb[0].mxu0 %v696
        %v786 = vpop.f32.mrb[0].mxu0
        %v787 = vadd.f32 %v718, %v786
        %v788 = vpop.f32.mrb[0].mxu0
        %789 = vdwg.mxu0
        %v790 = vld [vmem:[#allocation2] sm:$0xff]
        %v791 = vld [vmem:[#allocation2 + $0x8] sm:$0xff]
        %v792 = vld [vmem:[#allocation2 + $0x10] sm:$0xff]
        %v793 = vld [vmem:[#allocation2 + $0x18] sm:$0xff]
        %795 = vrot.lane.b32.xlu0 %v787, 96
        %v796 = vpop.permute.xlu0 %795
        %vm797 = vcmask 64512
        %v798 = vsel %vm797, %v787, 0
        %v800 = vsel %vm797, %v796, 0
        %802 = vmatprep.subr.mxu0 0.0
        %803 = vmatpush1.xpose.msra.mxu0 %v800
        %804 = vmatprep.subr.mxu0 0.0
        %805 = vmatpush1.xpose.msra.mxu0 0.0
        %806 = vmatprep.subr.mxu0 0.0
        %807 = vmatpush1.xpose.msra.mxu0 0.0
        %808 = vmatprep.subr.mxu0 0.0
        %809 = vmatpush1.xpose.msra.mxu0 0.0
        %810 = vmatprep.subr.mxu0 0.0
        %811 = vmatpush1.xpose.msra.mxu0 0.0
        %812 = vmatprep.subr.mxu0 0.0
        %813 = vmatpush1.xpose.msra.mxu0 0.0
        %814 = vmatprep.subr.mxu0 0.0
        %815 = vmatpush1.xpose.msra.mxu0 0.0
        %816 = vmatprep.subr.mxu0 0.0
        %817 = vmatpush1.xpose.msra.mxu0 0.0
        %818 = vmatprep.subr.mxu0 0.0
        %819 = vmatpush1.xpose.msra.mxu0 0.0
        %820 = vmatprep.subr.mxu0 0.0
        %821 = vmatpush1.xpose.msra.mxu0 0.0
        %822 = vmatprep.subr.mxu0 0.0
        %823 = vmatpush1.xpose.msra.mxu0 0.0
        %824 = vmatprep.subr.mxu0 0.0
        %825 = vmatpush1.xpose.msra.mxu0 0.0
        %826 = vmatprep.subr.mxu0 0.0
        %827 = vmatpush1.xpose.msra.mxu0 0.0
        %828 = vmatprep.subr.mxu0 0.0
        %829 = vmatpush1.xpose.msra.mxu0 0.0
        %830 = vmatprep.subr.mxu0 0.0
        %831 = vmatpush1.xpose.msra.mxu0 0.0
        %832 = vmatprep.subr.mxu0 0.0
        %833 = vmatpush1.xpose.msra.mxu0 0.0
        %834 = vmatprep.subr.mxu0 0.0
        %835 = vmatpush1.xpose.msra.mxu0 0.0
        %836 = vmatprep.subr.mxu0 0.0
        %837 = vmatpush1.xpose.msra.mxu0 0.0
        %838 = vmatprep.subr.mxu0 0.0
        %839 = vmatpush1.xpose.msra.mxu0 0.0
        %840 = vmatprep.subr.mxu0 0.0
        %841 = vmatpush1.xpose.msra.mxu0 0.0
        %842 = vmatprep.subr.mxu0 0.0
        %843 = vmatpush1.xpose.msra.mxu0 0.0
        %844 = vmatprep.subr.mxu0 0.0
        %845 = vmatpush1.xpose.msra.mxu0 0.0
        %846 = vmatprep.subr.mxu0 0.0
        %847 = vmatpush1.xpose.msra.mxu0 0.0
        %848 = vmatprep.subr.mxu0 0.0
        %849 = vmatpush1.xpose.msra.mxu0 0.0
        %850 = vmatprep.subr.mxu0 0.0
        %851 = vmatpush1.xpose.msra.mxu0 0.0
        %852 = vmatprep.subr.mxu0 0.0
        %853 = vmatpush1.xpose.msra.mxu0 0.0
        %854 = vmatprep.subr.mxu0 0.0
        %855 = vmatpush1.xpose.msra.mxu0 0.0
        %856 = vmatprep.subr.mxu0 0.0
        %857 = vmatpush1.xpose.msra.mxu0 0.0
        %858 = vmatprep.subr.mxu0 0.0
        %859 = vmatpush1.xpose.msra.mxu0 0.0
        %860 = vmatprep.subr.mxu0 0.0
        %861 = vmatpush1.xpose.msra.mxu0 0.0
        %862 = vmatprep.subr.mxu0 0.0
        %863 = vmatpush1.xpose.msra.mxu0 0.0
        %864 = vmatprep.subr.mxu0 0.0
        %865 = vmatpush1.xpose.msra.mxu0 0.0
        %866 = vmatprep.mubr.f32.mxu0 0.0
        %867 = vmatmul.mubr.f32.gmra.mrb[0].mxu0 %v798
        %v868 = vpop.f32.mrb[0].mxu0
        %v869 = vadd.f32 0.0, %v868
        %v870 = vpop.f32.mrb[0].mxu0
        %871 = vdwg.mxu0
        %v872 = vmul.f32 %v869, 0.35355338
        %v874 = vlaneseq
        %v875 = vshrl.u32 %v874, 7
        %v876 = vsub.s32 0, %v875
        %v877 = vrot.slane %v667, %v876
        %v879 = vadd.f32 %v872, %v877
        %v880 = vsel %vm797, %v879, -inf
        %881 = vmax.xlane.f32.xlu0 %v880
        %v882 = vpop.xlane.xlu0 %881
        %v883 = vsub.f32 %v879, %v882
        %v884 = vmul.f32 %v883, 1.442695
        %v885 = vpow.pop %v884
        %v886 = vsel %vm797, %v885, 0.0
        %887 = vadd.xlane.f32.xlu0 %v886
        %v888 = vpop.xlane.xlu0 %887
        %v889 = vrcp.pop %v888
        %v890 = vmul.f32 %v885, %v889
        %891 = vrot.lane.b32.xlu0 %v787, 64
        %v892 = vpop.permute.xlu0 %891
        %v895 = vsel %vm797, %v890, 0
        %897 = vmatprep.subr.mxu0 0.0
        %898 = vmatpush1.msra.mxu0 %v892
        %899 = vmatprep.subr.mxu0 0.0
        %900 = vmatpush1.msra.mxu0 0.0
        %901 = vmatprep.subr.mxu0 0.0
        %902 = vmatpush1.msra.mxu0 0.0
        %903 = vmatprep.subr.mxu0 0.0
        %904 = vmatpush1.msra.mxu0 0.0
        %905 = vmatprep.subr.mxu0 0.0
        %906 = vmatpush1.msra.mxu0 0.0
        %907 = vmatprep.subr.mxu0 0.0
        %908 = vmatpush1.msra.mxu0 0.0
        %909 = vmatprep.subr.mxu0 0.0
        %910 = vmatpush1.msra.mxu0 0.0
        %911 = vmatprep.subr.mxu0 0.0
        %912 = vmatpush1.msra.mxu0 0.0
        %913 = vmatprep.subr.mxu0 0.0
        %914 = vmatpush1.msra.mxu0 0.0
        %915 = vmatprep.subr.mxu0 0.0
        %916 = vmatpush1.msra.mxu0 0.0
        %917 = vmatprep.subr.mxu0 0.0
        %918 = vmatpush1.msra.mxu0 0.0
        %919 = vmatprep.subr.mxu0 0.0
        %920 = vmatpush1.msra.mxu0 0.0
        %921 = vmatprep.subr.mxu0 0.0
        %922 = vmatpush1.msra.mxu0 0.0
        %923 = vmatprep.subr.mxu0 0.0
        %924 = vmatpush1.msra.mxu0 0.0
        %925 = vmatprep.subr.mxu0 0.0
        %926 = vmatpush1.msra.mxu0 0.0
        %927 = vmatprep.subr.mxu0 0.0
        %928 = vmatpush1.msra.mxu0 0.0
        %929 = vmatprep.subr.mxu0 0.0
        %930 = vmatpush1.msra.mxu0 0.0
        %931 = vmatprep.subr.mxu0 0.0
        %932 = vmatpush1.msra.mxu0 0.0
        %933 = vmatprep.subr.mxu0 0.0
        %934 = vmatpush1.msra.mxu0 0.0
        %935 = vmatprep.subr.mxu0 0.0
        %936 = vmatpush1.msra.mxu0 0.0
        %937 = vmatprep.subr.mxu0 0.0
        %938 = vmatpush1.msra.mxu0 0.0
        %939 = vmatprep.subr.mxu0 0.0
        %940 = vmatpush1.msra.mxu0 0.0
        %941 = vmatprep.subr.mxu0 0.0
        %942 = vmatpush1.msra.mxu0 0.0
        %943 = vmatprep.subr.mxu0 0.0
        %944 = vmatpush1.msra.mxu0 0.0
        %945 = vmatprep.subr.mxu0 0.0
        %946 = vmatpush1.msra.mxu0 0.0
        %947 = vmatprep.subr.mxu0 0.0
        %948 = vmatpush1.msra.mxu0 0.0
        %949 = vmatprep.subr.mxu0 0.0
        %950 = vmatpush1.msra.mxu0 0.0
        %951 = vmatprep.subr.mxu0 0.0
        %952 = vmatpush1.msra.mxu0 0.0
        %953 = vmatprep.subr.mxu0 0.0
        %954 = vmatpush1.msra.mxu0 0.0
        %955 = vmatprep.subr.mxu0 0.0
        %956 = vmatpush1.msra.mxu0 0.0
        %957 = vmatprep.subr.mxu0 0.0
        %958 = vmatpush1.msra.mxu0 0.0
        %959 = vmatprep.subr.mxu0 0.0
        %960 = vmatpush1.msra.mxu0 0.0
        %961 = vmatprep.mubr.f32.mxu0 0.0
        %962 = vmatmul.mubr.f32.gmra.mrb[0].mxu0 %v895
        %v963 = vpop.f32.mrb[0].mxu0
        %v964 = vadd.f32 0.0, %v963
        %v965 = vpop.f32.mrb[0].mxu0
        %966 = vdwg.mxu0
        %967 = vrot.lane.b32.xlu0 %v787, 120
        %v968 = vpop.permute.xlu0 %967
        %969 = vrot.lane.b32.xlu0 %v787, 88
        %v970 = vpop.permute.xlu0 %969
        %v971 = vsel %vm797, %v968, 0
        %v973 = vsel %vm797, %v970, 0
        %975 = vmatprep.subr.mxu0 0.0
        %976 = vmatpush1.xpose.msra.mxu0 %v973
        %977 = vmatprep.subr.mxu0 0.0
        %978 = vmatpush1.xpose.msra.mxu0 0.0
        %979 = vmatprep.subr.mxu0 0.0
        %980 = vmatpush1.xpose.msra.mxu0 0.0
        %981 = vmatprep.subr.mxu0 0.0
        %982 = vmatpush1.xpose.msra.mxu0 0.0
        %983 = vmatprep.subr.mxu0 0.0
        %984 = vmatpush1.xpose.msra.mxu0 0.0
        %985 = vmatprep.subr.mxu0 0.0
        %986 = vmatpush1.xpose.msra.mxu0 0.0
        %987 = vmatprep.subr.mxu0 0.0
        %988 = vmatpush1.xpose.msra.mxu0 0.0
        %989 = vmatprep.subr.mxu0 0.0
        %990 = vmatpush1.xpose.msra.mxu0 0.0
        %991 = vmatprep.subr.mxu0 0.0
        %992 = vmatpush1.xpose.msra.mxu0 0.0
        %993 = vmatprep.subr.mxu0 0.0
        %994 = vmatpush1.xpose.msra.mxu0 0.0
        %995 = vmatprep.subr.mxu0 0.0
        %996 = vmatpush1.xpose.msra.mxu0 0.0
        %997 = vmatprep.subr.mxu0 0.0
        %998 = vmatpush1.xpose.msra.mxu0 0.0
        %999 = vmatprep.subr.mxu0 0.0
        %1000 = vmatpush1.xpose.msra.mxu0 0.0
        %1001 = vmatprep.subr.mxu0 0.0
        %1002 = vmatpush1.xpose.msra.mxu0 0.0
        %1003 = vmatprep.subr.mxu0 0.0
        %1004 = vmatpush1.xpose.msra.mxu0 0.0
        %1005 = vmatprep.subr.mxu0 0.0
        %1006 = vmatpush1.xpose.msra.mxu0 0.0
        %1007 = vmatprep.subr.mxu0 0.0
        %1008 = vmatpush1.xpose.msra.mxu0 0.0
        %1009 = vmatprep.subr.mxu0 0.0
        %1010 = vmatpush1.xpose.msra.mxu0 0.0
        %1011 = vmatprep.subr.mxu0 0.0
        %1012 = vmatpush1.xpose.msra.mxu0 0.0
        %1013 = vmatprep.subr.mxu0 0.0
        %1014 = vmatpush1.xpose.msra.mxu0 0.0
        %1015 = vmatprep.subr.mxu0 0.0
        %1016 = vmatpush1.xpose.msra.mxu0 0.0
        %1017 = vmatprep.subr.mxu0 0.0
        %1018 = vmatpush1.xpose.msra.mxu0 0.0
        %1019 = vmatprep.subr.mxu0 0.0
        %1020 = vmatpush1.xpose.msra.mxu0 0.0
        %1021 = vmatprep.subr.mxu0 0.0
        %1022 = vmatpush1.xpose.msra.mxu0 0.0
        %1023 = vmatprep.subr.mxu0 0.0
        %1024 = vmatpush1.xpose.msra.mxu0 0.0
        %1025 = vmatprep.subr.mxu0 0.0
        %1026 = vmatpush1.xpose.msra.mxu0 0.0
        %1027 = vmatprep.subr.mxu0 0.0
        %1028 = vmatpush1.xpose.msra.mxu0 0.0
        %1029 = vmatprep.subr.mxu0 0.0
        %1030 = vmatpush1.xpose.msra.mxu0 0.0
        %1031 = vmatprep.subr.mxu0 0.0
        %1032 = vmatpush1.xpose.msra.mxu0 0.0
        %1033 = vmatprep.subr.mxu0 0.0
        %1034 = vmatpush1.xpose.msra.mxu0 0.0
        %1035 = vmatprep.subr.mxu0 0.0
        %1036 = vmatpush1.xpose.msra.mxu0 0.0
        %1037 = vmatprep.subr.mxu0 0.0
        %1038 = vmatpush1.xpose.msra.mxu0 0.0
        %1039 = vmatprep.mubr.f32.mxu0 0.0
        %1040 = vmatmul.mubr.f32.gmra.mrb[0].mxu0 %v971
        %v1041 = vpop.f32.mrb[0].mxu0
        %v1042 = vadd.f32 0.0, %v1041
        %v1043 = vpop.f32.mrb[0].mxu0
        %1044 = vdwg.mxu0
        %v1045 = vmul.f32 %v1042, 0.35355338
        %v1046 = vadd.f32 %v1045, %v877
        %v1047 = vsel %vm797, %v1046, -inf
        %1048 = vmax.xlane.f32.xlu0 %v1047
        %v1049 = vpop.xlane.xlu0 %1048
        %v1050 = vsub.f32 %v1046, %v1049
        %v1051 = vmul.f32 %v1050, 1.442695
        %v1052 = vpow.pop %v1051
        %v1053 = vsel %vm797, %v1052, 0.0
        %1054 = vadd.xlane.f32.xlu0 %v1053
        %v1055 = vpop.xlane.xlu0 %1054
        %v1056 = vrcp.pop %v1055
        %v1057 = vmul.f32 %v1052, %v1056
        %1058 = vrot.lane.b32.xlu0 %v787, 56
        %v1059 = vpop.permute.xlu0 %1058
        %v1062 = vsel %vm797, %v1057, 0
        %1064 = vmatprep.subr.mxu0 0.0
        %1065 = vmatpush1.msra.mxu0 %v1059
        %1066 = vmatprep.subr.mxu0 0.0
        %1067 = vmatpush1.msra.mxu0 0.0
        %1068 = vmatprep.subr.mxu0 0.0
        %1069 = vmatpush1.msra.mxu0 0.0
        %1070 = vmatprep.subr.mxu0 0.0
        %1071 = vmatpush1.msra.mxu0 0.0
        %1072 = vmatprep.subr.mxu0 0.0
        %1073 = vmatpush1.msra.mxu0 0.0
        %1074 = vmatprep.subr.mxu0 0.0
        %1075 = vmatpush1.msra.mxu0 0.0
        %1076 = vmatprep.subr.mxu0 0.0
        %1077 = vmatpush1.msra.mxu0 0.0
        %1078 = vmatprep.subr.mxu0 0.0
        %1079 = vmatpush1.msra.mxu0 0.0
        %1080 = vmatprep.subr.mxu0 0.0
        %1081 = vmatpush1.msra.mxu0 0.0
        %1082 = vmatprep.subr.mxu0 0.0
        %1083 = vmatpush1.msra.mxu0 0.0
        %1084 = vmatprep.subr.mxu0 0.0
        %1085 = vmatpush1.msra.mxu0 0.0
        %1086 = vmatprep.subr.mxu0 0.0
        %1087 = vmatpush1.msra.mxu0 0.0
        %1088 = vmatprep.subr.mxu0 0.0
        %1089 = vmatpush1.msra.mxu0 0.0
        %1090 = vmatprep.subr.mxu0 0.0
        %1091 = vmatpush1.msra.mxu0 0.0
        %1092 = vmatprep.subr.mxu0 0.0
        %1093 = vmatpush1.msra.mxu0 0.0
        %1094 = vmatprep.subr.mxu0 0.0
        %1095 = vmatpush1.msra.mxu0 0.0
        %1096 = vmatprep.subr.mxu0 0.0
        %1097 = vmatpush1.msra.mxu0 0.0
        %1098 = vmatprep.subr.mxu0 0.0
        %1099 = vmatpush1.msra.mxu0 0.0
        %1100 = vmatprep.subr.mxu0 0.0
        %1101 = vmatpush1.msra.mxu0 0.0
        %1102 = vmatprep.subr.mxu0 0.0
        %1103 = vmatpush1.msra.mxu0 0.0
        %1104 = vmatprep.subr.mxu0 0.0
        %1105 = vmatpush1.msra.mxu0 0.0
        %1106 = vmatprep.subr.mxu0 0.0
        %1107 = vmatpush1.msra.mxu0 0.0
        %1108 = vmatprep.subr.mxu0 0.0
        %1109 = vmatpush1.msra.mxu0 0.0
        %1110 = vmatprep.subr.mxu0 0.0
        %1111 = vmatpush1.msra.mxu0 0.0
        %1112 = vmatprep.subr.mxu0 0.0
        %1113 = vmatpush1.msra.mxu0 0.0
        %1114 = vmatprep.subr.mxu0 0.0
        %1115 = vmatpush1.msra.mxu0 0.0
        %1116 = vmatprep.subr.mxu0 0.0
        %1117 = vmatpush1.msra.mxu0 0.0
        %1118 = vmatprep.subr.mxu0 0.0
        %1119 = vmatpush1.msra.mxu0 0.0
        %1120 = vmatprep.subr.mxu0 0.0
        %1121 = vmatpush1.msra.mxu0 0.0
        %1122 = vmatprep.subr.mxu0 0.0
        %1123 = vmatpush1.msra.mxu0 0.0
        %1124 = vmatprep.subr.mxu0 0.0
        %1125 = vmatpush1.msra.mxu0 0.0
        %1126 = vmatprep.subr.mxu0 0.0
        %1127 = vmatpush1.msra.mxu0 0.0
        %1128 = vmatprep.mubr.f32.mxu0 0.0
        %1129 = vmatmul.mubr.f32.gmra.mrb[0].mxu0 %v1062
        %v1130 = vpop.f32.mrb[0].mxu0
        %v1131 = vadd.f32 0.0, %v1130
        %v1132 = vpop.f32.mrb[0].mxu0
        %1133 = vdwg.mxu0
        %v1135 = vsel %vm797, %v1131, 0
        %1137 = vmatprep.subr.mxu0 0.0
        %1138 = vmatpush1.msra.mxu0 %v791
        %1139 = vmatprep.subr.mxu0 0.0
        %1140 = vmatpush1.msra.mxu0 0.0
        %1141 = vmatprep.subr.mxu0 0.0
        %1142 = vmatpush1.msra.mxu0 0.0
        %1143 = vmatprep.subr.mxu0 0.0
        %1144 = vmatpush1.msra.mxu0 0.0
        %1145 = vmatprep.subr.mxu0 0.0
        %1146 = vmatpush1.msra.mxu0 0.0
        %1147 = vmatprep.subr.mxu0 0.0
        %1148 = vmatpush1.msra.mxu0 0.0
        %1149 = vmatprep.subr.mxu0 0.0
        %1150 = vmatpush1.msra.mxu0 0.0
        %1151 = vmatprep.subr.mxu0 0.0
        %1152 = vmatpush1.msra.mxu0 0.0
        %1153 = vmatprep.subr.mxu0 0.0
        %1154 = vmatpush1.msra.mxu0 0.0
        %1155 = vmatprep.subr.mxu0 0.0
        %1156 = vmatpush1.msra.mxu0 0.0
        %1157 = vmatprep.subr.mxu0 0.0
        %1158 = vmatpush1.msra.mxu0 0.0
        %1159 = vmatprep.subr.mxu0 0.0
        %1160 = vmatpush1.msra.mxu0 0.0
        %1161 = vmatprep.subr.mxu0 0.0
        %1162 = vmatpush1.msra.mxu0 0.0
        %1163 = vmatprep.subr.mxu0 0.0
        %1164 = vmatpush1.msra.mxu0 0.0
        %1165 = vmatprep.subr.mxu0 0.0
        %1166 = vmatpush1.msra.mxu0 0.0
        %1167 = vmatprep.subr.mxu0 0.0
        %1168 = vmatpush1.msra.mxu0 0.0
        %1169 = vmatprep.subr.mxu0 0.0
        %1170 = vmatpush1.msra.mxu0 0.0
        %1171 = vmatprep.subr.mxu0 0.0
        %1172 = vmatpush1.msra.mxu0 0.0
        %1173 = vmatprep.subr.mxu0 0.0
        %1174 = vmatpush1.msra.mxu0 0.0
        %1175 = vmatprep.subr.mxu0 0.0
        %1176 = vmatpush1.msra.mxu0 0.0
        %1177 = vmatprep.subr.mxu0 0.0
        %1178 = vmatpush1.msra.mxu0 0.0
        %1179 = vmatprep.subr.mxu0 0.0
        %1180 = vmatpush1.msra.mxu0 0.0
        %1181 = vmatprep.subr.mxu0 0.0
        %1182 = vmatpush1.msra.mxu0 0.0
        %1183 = vmatprep.subr.mxu0 0.0
        %1184 = vmatpush1.msra.mxu0 0.0
        %1185 = vmatprep.subr.mxu0 0.0
        %1186 = vmatpush1.msra.mxu0 0.0
        %1187 = vmatprep.subr.mxu0 0.0
        %1188 = vmatpush1.msra.mxu0 0.0
        %1189 = vmatprep.subr.mxu0 0.0
        %1190 = vmatpush1.msra.mxu0 0.0
        %1191 = vmatprep.subr.mxu0 0.0
        %1192 = vmatpush1.msra.mxu0 0.0
        %1193 = vmatprep.subr.mxu0 0.0
        %1194 = vmatpush1.msra.mxu0 0.0
        %1195 = vmatprep.subr.mxu0 0.0
        %1196 = vmatpush1.msra.mxu0 0.0
        %1197 = vmatprep.subr.mxu0 0.0
        %1198 = vmatpush1.msra.mxu0 0.0
        %1199 = vmatprep.subr.mxu0 0.0
        %1200 = vmatpush1.msra.mxu0 0.0
        %1201 = vmatprep.mubr.f32.mxu0 0.0
        %1202 = vmatmul.mubr.f32.gmra.mrb[0].mxu0 %v1135
        %v1203 = vpop.f32.mrb[0].mxu0
        %v1204 = vadd.f32 0.0, %v1203
        %v1205 = vpop.f32.mrb[0].mxu0
        %1206 = vdwg.mxu0
        %v1208 = vsel %vm797, %v964, 0
        %1210 = vmatprep.subr.mxu0 0.0
        %1211 = vmatpush1.msra.mxu0 %v790
        %1212 = vmatprep.subr.mxu0 0.0
        %1213 = vmatpush1.msra.mxu0 0.0
        %1214 = vmatprep.subr.mxu0 0.0
        %1215 = vmatpush1.msra.mxu0 0.0
        %1216 = vmatprep.subr.mxu0 0.0
        %1217 = vmatpush1.msra.mxu0 0.0
        %1218 = vmatprep.subr.mxu0 0.0
        %1219 = vmatpush1.msra.mxu0 0.0
        %1220 = vmatprep.subr.mxu0 0.0
        %1221 = vmatpush1.msra.mxu0 0.0
        %1222 = vmatprep.subr.mxu0 0.0
        %1223 = vmatpush1.msra.mxu0 0.0
        %1224 = vmatprep.subr.mxu0 0.0
        %1225 = vmatpush1.msra.mxu0 0.0
        %1226 = vmatprep.subr.mxu0 0.0
        %1227 = vmatpush1.msra.mxu0 0.0
        %1228 = vmatprep.subr.mxu0 0.0
        %1229 = vmatpush1.msra.mxu0 0.0
        %1230 = vmatprep.subr.mxu0 0.0
        %1231 = vmatpush1.msra.mxu0 0.0
        %1232 = vmatprep.subr.mxu0 0.0
        %1233 = vmatpush1.msra.mxu0 0.0
        %1234 = vmatprep.subr.mxu0 0.0
        %1235 = vmatpush1.msra.mxu0 0.0
        %1236 = vmatprep.subr.mxu0 0.0
        %1237 = vmatpush1.msra.mxu0 0.0
        %1238 = vmatprep.subr.mxu0 0.0
        %1239 = vmatpush1.msra.mxu0 0.0
        %1240 = vmatprep.subr.mxu0 0.0
        %1241 = vmatpush1.msra.mxu0 0.0
        %1242 = vmatprep.subr.mxu0 0.0
        %1243 = vmatpush1.msra.mxu0 0.0
        %1244 = vmatprep.subr.mxu0 0.0
        %1245 = vmatpush1.msra.mxu0 0.0
        %1246 = vmatprep.subr.mxu0 0.0
        %1247 = vmatpush1.msra.mxu0 0.0
        %1248 = vmatprep.subr.mxu0 0.0
        %1249 = vmatpush1.msra.mxu0 0.0
        %1250 = vmatprep.subr.mxu0 0.0
        %1251 = vmatpush1.msra.mxu0 0.0
        %1252 = vmatprep.subr.mxu0 0.0
        %1253 = vmatpush1.msra.mxu0 0.0
        %1254 = vmatprep.subr.mxu0 0.0
        %1255 = vmatpush1.msra.mxu0 0.0
        %1256 = vmatprep.subr.mxu0 0.0
        %1257 = vmatpush1.msra.mxu0 0.0
        %1258 = vmatprep.subr.mxu0 0.0
        %1259 = vmatpush1.msra.mxu0 0.0
        %1260 = vmatprep.subr.mxu0 0.0
        %1261 = vmatpush1.msra.mxu0 0.0
        %1262 = vmatprep.subr.mxu0 0.0
        %1263 = vmatpush1.msra.mxu0 0.0
        %1264 = vmatprep.subr.mxu0 0.0
        %1265 = vmatpush1.msra.mxu0 0.0
        %1266 = vmatprep.subr.mxu0 0.0
        %1267 = vmatpush1.msra.mxu0 0.0
        %1268 = vmatprep.subr.mxu0 0.0
        %1269 = vmatpush1.msra.mxu0 0.0
        %1270 = vmatprep.subr.mxu0 0.0
        %1271 = vmatpush1.msra.mxu0 0.0
        %1272 = vmatprep.subr.mxu0 0.0
        %1273 = vmatpush1.msra.mxu0 0.0
        %1274 = vmatprep.mubr.f32.mxu0 0.0
        %1275 = vmatmul.mubr.f32.gmra.mrb[0].mxu0 %v1208
        %v1276 = vpop.f32.mrb[0].mxu0
        %v1277 = vadd.f32 %v1204, %v1276
        %v1278 = vpop.f32.mrb[0].mxu0
        %1279 = vdwg.mxu0
        %1280 = vrot.lane.b32.xlu0 %v787, 112
        %v1281 = vpop.permute.xlu0 %1280
        %1282 = vrot.lane.b32.xlu0 %v787, 80
        %v1283 = vpop.permute.xlu0 %1282
        %v1284 = vsel %vm797, %v1281, 0
        %v1286 = vsel %vm797, %v1283, 0
        %1288 = vmatprep.subr.mxu0 0.0
        %1289 = vmatpush1.xpose.msra.mxu0 %v1286
        %1290 = vmatprep.subr.mxu0 0.0
        %1291 = vmatpush1.xpose.msra.mxu0 0.0
        %1292 = vmatprep.subr.mxu0 0.0
        %1293 = vmatpush1.xpose.msra.mxu0 0.0
        %1294 = vmatprep.subr.mxu0 0.0
        %1295 = vmatpush1.xpose.msra.mxu0 0.0
        %1296 = vmatprep.subr.mxu0 0.0
        %1297 = vmatpush1.xpose.msra.mxu0 0.0
        %1298 = vmatprep.subr.mxu0 0.0
        %1299 = vmatpush1.xpose.msra.mxu0 0.0
        %1300 = vmatprep.subr.mxu0 0.0
        %1301 = vmatpush1.xpose.msra.mxu0 0.0
        %1302 = vmatprep.subr.mxu0 0.0
        %1303 = vmatpush1.xpose.msra.mxu0 0.0
        %1304 = vmatprep.subr.mxu0 0.0
        %1305 = vmatpush1.xpose.msra.mxu0 0.0
        %1306 = vmatprep.subr.mxu0 0.0
        %1307 = vmatpush1.xpose.msra.mxu0 0.0
        %1308 = vmatprep.subr.mxu0 0.0
        %1309 = vmatpush1.xpose.msra.mxu0 0.0
        %1310 = vmatprep.subr.mxu0 0.0
        %1311 = vmatpush1.xpose.msra.mxu0 0.0
        %1312 = vmatprep.subr.mxu0 0.0
        %1313 = vmatpush1.xpose.msra.mxu0 0.0
        %1314 = vmatprep.subr.mxu0 0.0
        %1315 = vmatpush1.xpose.msra.mxu0 0.0
        %1316 = vmatprep.subr.mxu0 0.0
        %1317 = vmatpush1.xpose.msra.mxu0 0.0
        %1318 = vmatprep.subr.mxu0 0.0
        %1319 = vmatpush1.xpose.msra.mxu0 0.0
        %1320 = vmatprep.subr.mxu0 0.0
        %1321 = vmatpush1.xpose.msra.mxu0 0.0
        %1322 = vmatprep.subr.mxu0 0.0
        %1323 = vmatpush1.xpose.msra.mxu0 0.0
        %1324 = vmatprep.subr.mxu0 0.0
        %1325 = vmatpush1.xpose.msra.mxu0 0.0
        %1326 = vmatprep.subr.mxu0 0.0
        %1327 = vmatpush1.xpose.msra.mxu0 0.0
        %1328 = vmatprep.subr.mxu0 0.0
        %1329 = vmatpush1.xpose.msra.mxu0 0.0
        %1330 = vmatprep.subr.mxu0 0.0
        %1331 = vmatpush1.xpose.msra.mxu0 0.0
        %1332 = vmatprep.subr.mxu0 0.0
        %1333 = vmatpush1.xpose.msra.mxu0 0.0
        %1334 = vmatprep.subr.mxu0 0.0
        %1335 = vmatpush1.xpose.msra.mxu0 0.0
        %1336 = vmatprep.subr.mxu0 0.0
        %1337 = vmatpush1.xpose.msra.mxu0 0.0
        %1338 = vmatprep.subr.mxu0 0.0
        %1339 = vmatpush1.xpose.msra.mxu0 0.0
        %1340 = vmatprep.subr.mxu0 0.0
        %1341 = vmatpush1.xpose.msra.mxu0 0.0
        %1342 = vmatprep.subr.mxu0 0.0
        %1343 = vmatpush1.xpose.msra.mxu0 0.0
        %1344 = vmatprep.subr.mxu0 0.0
        %1345 = vmatpush1.xpose.msra.mxu0 0.0
        %1346 = vmatprep.subr.mxu0 0.0
        %1347 = vmatpush1.xpose.msra.mxu0 0.0
        %1348 = vmatprep.subr.mxu0 0.0
        %1349 = vmatpush1.xpose.msra.mxu0 0.0
        %1350 = vmatprep.subr.mxu0 0.0
        %1351 = vmatpush1.xpose.msra.mxu0 0.0
        %1352 = vmatprep.mubr.f32.mxu0 0.0
        %1353 = vmatmul.mubr.f32.gmra.mrb[0].mxu0 %v1284
        %v1354 = vpop.f32.mrb[0].mxu0
        %v1355 = vadd.f32 0.0, %v1354
        %v1356 = vpop.f32.mrb[0].mxu0
        %1357 = vdwg.mxu0
        %v1358 = vmul.f32 %v1355, 0.35355338
        %v1359 = vadd.f32 %v1358, %v877
        %v1360 = vsel %vm797, %v1359, -inf
        %1361 = vmax.xlane.f32.xlu0 %v1360
        %v1362 = vpop.xlane.xlu0 %1361
        %v1363 = vsub.f32 %v1359, %v1362
        %v1364 = vmul.f32 %v1363, 1.442695
        %v1365 = vpow.pop %v1364
        %v1366 = vsel %vm797, %v1365, 0.0
        %1367 = vadd.xlane.f32.xlu0 %v1366
        %v1368 = vpop.xlane.xlu0 %1367
        %v1369 = vrcp.pop %v1368
        %v1370 = vmul.f32 %v1365, %v1369
        %1371 = vrot.lane.b32.xlu0 %v787, 48
        %v1372 = vpop.permute.xlu0 %1371
        %v1375 = vsel %vm797, %v1370, 0
        %1377 = vmatprep.subr.mxu0 0.0
        %1378 = vmatpush1.msra.mxu0 %v1372
        %1379 = vmatprep.subr.mxu0 0.0
        %1380 = vmatpush1.msra.mxu0 0.0
        %1381 = vmatprep.subr.mxu0 0.0
        %1382 = vmatpush1.msra.mxu0 0.0
        %1383 = vmatprep.subr.mxu0 0.0
        %1384 = vmatpush1.msra.mxu0 0.0
        %1385 = vmatprep.subr.mxu0 0.0
        %1386 = vmatpush1.msra.mxu0 0.0
        %1387 = vmatprep.subr.mxu0 0.0
        %1388 = vmatpush1.msra.mxu0 0.0
        %1389 = vmatprep.subr.mxu0 0.0
        %1390 = vmatpush1.msra.mxu0 0.0
        %1391 = vmatprep.subr.mxu0 0.0
        %1392 = vmatpush1.msra.mxu0 0.0
        %1393 = vmatprep.subr.mxu0 0.0
        %1394 = vmatpush1.msra.mxu0 0.0
        %1395 = vmatprep.subr.mxu0 0.0
        %1396 = vmatpush1.msra.mxu0 0.0
        %1397 = vmatprep.subr.mxu0 0.0
        %1398 = vmatpush1.msra.mxu0 0.0
        %1399 = vmatprep.subr.mxu0 0.0
        %1400 = vmatpush1.msra.mxu0 0.0
        %1401 = vmatprep.subr.mxu0 0.0
        %1402 = vmatpush1.msra.mxu0 0.0
        %1403 = vmatprep.subr.mxu0 0.0
        %1404 = vmatpush1.msra.mxu0 0.0
        %1405 = vmatprep.subr.mxu0 0.0
        %1406 = vmatpush1.msra.mxu0 0.0
        %1407 = vmatprep.subr.mxu0 0.0
        %1408 = vmatpush1.msra.mxu0 0.0
        %1409 = vmatprep.subr.mxu0 0.0
        %1410 = vmatpush1.msra.mxu0 0.0
        %1411 = vmatprep.subr.mxu0 0.0
        %1412 = vmatpush1.msra.mxu0 0.0
        %1413 = vmatprep.subr.mxu0 0.0
        %1414 = vmatpush1.msra.mxu0 0.0
        %1415 = vmatprep.subr.mxu0 0.0
        %1416 = vmatpush1.msra.mxu0 0.0
        %1417 = vmatprep.subr.mxu0 0.0
        %1418 = vmatpush1.msra.mxu0 0.0
        %1419 = vmatprep.subr.mxu0 0.0
        %1420 = vmatpush1.msra.mxu0 0.0
        %1421 = vmatprep.subr.mxu0 0.0
        %1422 = vmatpush1.msra.mxu0 0.0
        %1423 = vmatprep.subr.mxu0 0.0
        %1424 = vmatpush1.msra.mxu0 0.0
        %1425 = vmatprep.subr.mxu0 0.0
        %1426 = vmatpush1.msra.mxu0 0.0
        %1427 = vmatprep.subr.mxu0 0.0
        %1428 = vmatpush1.msra.mxu0 0.0
        %1429 = vmatprep.subr.mxu0 0.0
        %1430 = vmatpush1.msra.mxu0 0.0
        %1431 = vmatprep.subr.mxu0 0.0
        %1432 = vmatpush1.msra.mxu0 0.0
        %1433 = vmatprep.subr.mxu0 0.0
        %1434 = vmatpush1.msra.mxu0 0.0
        %1435 = vmatprep.subr.mxu0 0.0
        %1436 = vmatpush1.msra.mxu0 0.0
        %1437 = vmatprep.subr.mxu0 0.0
        %1438 = vmatpush1.msra.mxu0 0.0
        %1439 = vmatprep.subr.mxu0 0.0
        %1440 = vmatpush1.msra.mxu0 0.0
        %1441 = vmatprep.mubr.f32.mxu0 0.0
        %1442 = vmatmul.mubr.f32.gmra.mrb[0].mxu0 %v1375
        %v1443 = vpop.f32.mrb[0].mxu0
        %v1444 = vadd.f32 0.0, %v1443
        %v1445 = vpop.f32.mrb[0].mxu0
        %1446 = vdwg.mxu0
        %v1448 = vsel %vm797, %v1444, 0
        %1450 = vmatprep.subr.mxu0 0.0
        %1451 = vmatpush1.msra.mxu0 %v792
        %1452 = vmatprep.subr.mxu0 0.0
        %1453 = vmatpush1.msra.mxu0 0.0
        %1454 = vmatprep.subr.mxu0 0.0
        %1455 = vmatpush1.msra.mxu0 0.0
        %1456 = vmatprep.subr.mxu0 0.0
        %1457 = vmatpush1.msra.mxu0 0.0
        %1458 = vmatprep.subr.mxu0 0.0
        %1459 = vmatpush1.msra.mxu0 0.0
        %1460 = vmatprep.subr.mxu0 0.0
        %1461 = vmatpush1.msra.mxu0 0.0
        %1462 = vmatprep.subr.mxu0 0.0
        %1463 = vmatpush1.msra.mxu0 0.0
        %1464 = vmatprep.subr.mxu0 0.0
        %1465 = vmatpush1.msra.mxu0 0.0
        %1466 = vmatprep.subr.mxu0 0.0
        %1467 = vmatpush1.msra.mxu0 0.0
        %1468 = vmatprep.subr.mxu0 0.0
        %1469 = vmatpush1.msra.mxu0 0.0
        %1470 = vmatprep.subr.mxu0 0.0
        %1471 = vmatpush1.msra.mxu0 0.0
        %1472 = vmatprep.subr.mxu0 0.0
        %1473 = vmatpush1.msra.mxu0 0.0
        %1474 = vmatprep.subr.mxu0 0.0
        %1475 = vmatpush1.msra.mxu0 0.0
        %1476 = vmatprep.subr.mxu0 0.0
        %1477 = vmatpush1.msra.mxu0 0.0
        %1478 = vmatprep.subr.mxu0 0.0
        %1479 = vmatpush1.msra.mxu0 0.0
        %1480 = vmatprep.subr.mxu0 0.0
        %1481 = vmatpush1.msra.mxu0 0.0
        %1482 = vmatprep.subr.mxu0 0.0
        %1483 = vmatpush1.msra.mxu0 0.0
        %1484 = vmatprep.subr.mxu0 0.0
        %1485 = vmatpush1.msra.mxu0 0.0
        %1486 = vmatprep.subr.mxu0 0.0
        %1487 = vmatpush1.msra.mxu0 0.0
        %1488 = vmatprep.subr.mxu0 0.0
        %1489 = vmatpush1.msra.mxu0 0.0
        %1490 = vmatprep.subr.mxu0 0.0
        %1491 = vmatpush1.msra.mxu0 0.0
        %1492 = vmatprep.subr.mxu0 0.0
        %1493 = vmatpush1.msra.mxu0 0.0
        %1494 = vmatprep.subr.mxu0 0.0
        %1495 = vmatpush1.msra.mxu0 0.0
        %1496 = vmatprep.subr.mxu0 0.0
        %1497 = vmatpush1.msra.mxu0 0.0
        %1498 = vmatprep.subr.mxu0 0.0
        %1499 = vmatpush1.msra.mxu0 0.0
        %1500 = vmatprep.subr.mxu0 0.0
        %1501 = vmatpush1.msra.mxu0 0.0
        %1502 = vmatprep.subr.mxu0 0.0
        %1503 = vmatpush1.msra.mxu0 0.0
        %1504 = vmatprep.subr.mxu0 0.0
        %1505 = vmatpush1.msra.mxu0 0.0
        %1506 = vmatprep.subr.mxu0 0.0
        %1507 = vmatpush1.msra.mxu0 0.0
        %1508 = vmatprep.subr.mxu0 0.0
        %1509 = vmatpush1.msra.mxu0 0.0
        %1510 = vmatprep.subr.mxu0 0.0
        %1511 = vmatpush1.msra.mxu0 0.0
        %1512 = vmatprep.subr.mxu0 0.0
        %1513 = vmatpush1.msra.mxu0 0.0
        %1514 = vmatprep.mubr.f32.mxu0 0.0
        %1515 = vmatmul.mubr.f32.gmra.mrb[0].mxu0 %v1448
        %v1516 = vpop.f32.mrb[0].mxu0
        %v1517 = vadd.f32 0.0, %v1516
        %v1518 = vpop.f32.mrb[0].mxu0
        %1519 = vdwg.mxu0
        %v1520 = vadd.f32 %v1277, %v1517
        %1521 = vrot.lane.b32.xlu0 %v787, 104
        %v1522 = vpop.permute.xlu0 %1521
        %1523 = vrot.lane.b32.xlu0 %v787, 72
        %v1524 = vpop.permute.xlu0 %1523
        %v1525 = vsel %vm797, %v1522, 0
        %v1527 = vsel %vm797, %v1524, 0
        %1529 = vmatprep.subr.mxu0 0.0
        %1530 = vmatpush1.xpose.msra.mxu0 %v1527
        %1531 = vmatprep.subr.mxu0 0.0
        %1532 = vmatpush1.xpose.msra.mxu0 0.0
        %1533 = vmatprep.subr.mxu0 0.0
        %1534 = vmatpush1.xpose.msra.mxu0 0.0
        %1535 = vmatprep.subr.mxu0 0.0
        %1536 = vmatpush1.xpose.msra.mxu0 0.0
        %1537 = vmatprep.subr.mxu0 0.0
        %1538 = vmatpush1.xpose.msra.mxu0 0.0
        %1539 = vmatprep.subr.mxu0 0.0
        %1540 = vmatpush1.xpose.msra.mxu0 0.0
        %1541 = vmatprep.subr.mxu0 0.0
        %1542 = vmatpush1.xpose.msra.mxu0 0.0
        %1543 = vmatprep.subr.mxu0 0.0
        %1544 = vmatpush1.xpose.msra.mxu0 0.0
        %1545 = vmatprep.subr.mxu0 0.0
        %1546 = vmatpush1.xpose.msra.mxu0 0.0
        %1547 = vmatprep.subr.mxu0 0.0
        %1548 = vmatpush1.xpose.msra.mxu0 0.0
        %1549 = vmatprep.subr.mxu0 0.0
        %1550 = vmatpush1.xpose.msra.mxu0 0.0
        %1551 = vmatprep.subr.mxu0 0.0
        %1552 = vmatpush1.xpose.msra.mxu0 0.0
        %1553 = vmatprep.subr.mxu0 0.0
        %1554 = vmatpush1.xpose.msra.mxu0 0.0
        %1555 = vmatprep.subr.mxu0 0.0
        %1556 = vmatpush1.xpose.msra.mxu0 0.0
        %1557 = vmatprep.subr.mxu0 0.0
        %1558 = vmatpush1.xpose.msra.mxu0 0.0
        %1559 = vmatprep.subr.mxu0 0.0
        %1560 = vmatpush1.xpose.msra.mxu0 0.0
        %1561 = vmatprep.subr.mxu0 0.0
        %1562 = vmatpush1.xpose.msra.mxu0 0.0
        %1563 = vmatprep.subr.mxu0 0.0
        %1564 = vmatpush1.xpose.msra.mxu0 0.0
        %1565 = vmatprep.subr.mxu0 0.0
        %1566 = vmatpush1.xpose.msra.mxu0 0.0
        %1567 = vmatprep.subr.mxu0 0.0
        %1568 = vmatpush1.xpose.msra.mxu0 0.0
        %1569 = vmatprep.subr.mxu0 0.0
        %1570 = vmatpush1.xpose.msra.mxu0 0.0
        %1571 = vmatprep.subr.mxu0 0.0
        %1572 = vmatpush1.xpose.msra.mxu0 0.0
        %1573 = vmatprep.subr.mxu0 0.0
        %1574 = vmatpush1.xpose.msra.mxu0 0.0
        %1575 = vmatprep.subr.mxu0 0.0
        %1576 = vmatpush1.xpose.msra.mxu0 0.0
        %1577 = vmatprep.subr.mxu0 0.0
        %1578 = vmatpush1.xpose.msra.mxu0 0.0
        %1579 = vmatprep.subr.mxu0 0.0
        %1580 = vmatpush1.xpose.msra.mxu0 0.0
        %1581 = vmatprep.subr.mxu0 0.0
        %1582 = vmatpush1.xpose.msra.mxu0 0.0
        %1583 = vmatprep.subr.mxu0 0.0
        %1584 = vmatpush1.xpose.msra.mxu0 0.0
        %1585 = vmatprep.subr.mxu0 0.0
        %1586 = vmatpush1.xpose.msra.mxu0 0.0
        %1587 = vmatprep.subr.mxu0 0.0
        %1588 = vmatpush1.xpose.msra.mxu0 0.0
        %1589 = vmatprep.subr.mxu0 0.0
        %1590 = vmatpush1.xpose.msra.mxu0 0.0
        %1591 = vmatprep.subr.mxu0 0.0
        %1592 = vmatpush1.xpose.msra.mxu0 0.0
        %1593 = vmatprep.mubr.f32.mxu0 0.0
        %1594 = vmatmul.mubr.f32.gmra.mrb[0].mxu0 %v1525
        %v1595 = vpop.f32.mrb[0].mxu0
        %v1596 = vadd.f32 0.0, %v1595
        %v1597 = vpop.f32.mrb[0].mxu0
        %1598 = vdwg.mxu0
        %v1599 = vmul.f32 %v1596, 0.35355338
        %v1600 = vadd.f32 %v1599, %v877
        %v1601 = vsel %vm797, %v1600, -inf
        %1602 = vmax.xlane.f32.xlu0 %v1601
        %v1603 = vpop.xlane.xlu0 %1602
        %v1604 = vsub.f32 %v1600, %v1603
        %v1605 = vmul.f32 %v1604, 1.442695
        %v1606 = vpow.pop %v1605
        %v1607 = vsel %vm797, %v1606, 0.0
        %1608 = vadd.xlane.f32.xlu0 %v1607
        %v1609 = vpop.xlane.xlu0 %1608
        %v1610 = vrcp.pop %v1609
        %v1611 = vmul.f32 %v1606, %v1610
        %1612 = vrot.lane.b32.xlu0 %v787, 40
        %v1613 = vpop.permute.xlu0 %1612
        %v1616 = vsel %vm797, %v1611, 0
        %1618 = vmatprep.subr.mxu0 0.0
        %1619 = vmatpush1.msra.mxu0 %v1613
        %1620 = vmatprep.subr.mxu0 0.0
        %1621 = vmatpush1.msra.mxu0 0.0
        %1622 = vmatprep.subr.mxu0 0.0
        %1623 = vmatpush1.msra.mxu0 0.0
        %1624 = vmatprep.subr.mxu0 0.0
        %1625 = vmatpush1.msra.mxu0 0.0
        %1626 = vmatprep.subr.mxu0 0.0
        %1627 = vmatpush1.msra.mxu0 0.0
        %1628 = vmatprep.subr.mxu0 0.0
        %1629 = vmatpush1.msra.mxu0 0.0
        %1630 = vmatprep.subr.mxu0 0.0
        %1631 = vmatpush1.msra.mxu0 0.0
        %1632 = vmatprep.subr.mxu0 0.0
        %1633 = vmatpush1.msra.mxu0 0.0
        %1634 = vmatprep.subr.mxu0 0.0
        %1635 = vmatpush1.msra.mxu0 0.0
        %1636 = vmatprep.subr.mxu0 0.0
        %1637 = vmatpush1.msra.mxu0 0.0
        %1638 = vmatprep.subr.mxu0 0.0
        %1639 = vmatpush1.msra.mxu0 0.0
        %1640 = vmatprep.subr.mxu0 0.0
        %1641 = vmatpush1.msra.mxu0 0.0
        %1642 = vmatprep.subr.mxu0 0.0
        %1643 = vmatpush1.msra.mxu0 0.0
        %1644 = vmatprep.subr.mxu0 0.0
        %1645 = vmatpush1.msra.mxu0 0.0
        %1646 = vmatprep.subr.mxu0 0.0
        %1647 = vmatpush1.msra.mxu0 0.0
        %1648 = vmatprep.subr.mxu0 0.0
        %1649 = vmatpush1.msra.mxu0 0.0
        %1650 = vmatprep.subr.mxu0 0.0
        %1651 = vmatpush1.msra.mxu0 0.0
        %1652 = vmatprep.subr.mxu0 0.0
        %1653 = vmatpush1.msra.mxu0 0.0
        %1654 = vmatprep.subr.mxu0 0.0
        %1655 = vmatpush1.msra.mxu0 0.0
        %1656 = vmatprep.subr.mxu0 0.0
        %1657 = vmatpush1.msra.mxu0 0.0
        %1658 = vmatprep.subr.mxu0 0.0
        %1659 = vmatpush1.msra.mxu0 0.0
        %1660 = vmatprep.subr.mxu0 0.0
        %1661 = vmatpush1.msra.mxu0 0.0
        %1662 = vmatprep.subr.mxu0 0.0
        %1663 = vmatpush1.msra.mxu0 0.0
        %1664 = vmatprep.subr.mxu0 0.0
        %1665 = vmatpush1.msra.mxu0 0.0
        %1666 = vmatprep.subr.mxu0 0.0
        %1667 = vmatpush1.msra.mxu0 0.0
        %1668 = vmatprep.subr.mxu0 0.0
        %1669 = vmatpush1.msra.mxu0 0.0
        %1670 = vmatprep.subr.mxu0 0.0
        %1671 = vmatpush1.msra.mxu0 0.0
        %1672 = vmatprep.subr.mxu0 0.0
        %1673 = vmatpush1.msra.mxu0 0.0
        %1674 = vmatprep.subr.mxu0 0.0
        %1675 = vmatpush1.msra.mxu0 0.0
        %1676 = vmatprep.subr.mxu0 0.0
        %1677 = vmatpush1.msra.mxu0 0.0
        %1678 = vmatprep.subr.mxu0 0.0
        %1679 = vmatpush1.msra.mxu0 0.0
        %1680 = vmatprep.subr.mxu0 0.0
        %1681 = vmatpush1.msra.mxu0 0.0
        %1682 = vmatprep.mubr.f32.mxu0 0.0
        %1683 = vmatmul.mubr.f32.gmra.mrb[0].mxu0 %v1616
        %v1684 = vpop.f32.mrb[0].mxu0
        %v1685 = vadd.f32 0.0, %v1684
        %v1686 = vpop.f32.mrb[0].mxu0
        %1687 = vdwg.mxu0
        %v1689 = vsel %vm797, %v1685, 0
        %1691 = vmatprep.subr.mxu0 0.0
        %1692 = vmatpush1.msra.mxu0 %v793
        %1693 = vmatprep.subr.mxu0 0.0
        %1694 = vmatpush1.msra.mxu0 0.0
        %1695 = vmatprep.subr.mxu0 0.0
        %1696 = vmatpush1.msra.mxu0 0.0
        %1697 = vmatprep.subr.mxu0 0.0
        %1698 = vmatpush1.msra.mxu0 0.0
        %1699 = vmatprep.subr.mxu0 0.0
        %1700 = vmatpush1.msra.mxu0 0.0
        %1701 = vmatprep.subr.mxu0 0.0
        %1702 = vmatpush1.msra.mxu0 0.0
        %1703 = vmatprep.subr.mxu0 0.0
        %1704 = vmatpush1.msra.mxu0 0.0
        %1705 = vmatprep.subr.mxu0 0.0
        %1706 = vmatpush1.msra.mxu0 0.0
        %1707 = vmatprep.subr.mxu0 0.0
        %1708 = vmatpush1.msra.mxu0 0.0
        %1709 = vmatprep.subr.mxu0 0.0
        %1710 = vmatpush1.msra.mxu0 0.0
        %1711 = vmatprep.subr.mxu0 0.0
        %1712 = vmatpush1.msra.mxu0 0.0
        %1713 = vmatprep.subr.mxu0 0.0
        %1714 = vmatpush1.msra.mxu0 0.0
        %1715 = vmatprep.subr.mxu0 0.0
        %1716 = vmatpush1.msra.mxu0 0.0
        %1717 = vmatprep.subr.mxu0 0.0
        %1718 = vmatpush1.msra.mxu0 0.0
        %1719 = vmatprep.subr.mxu0 0.0
        %1720 = vmatpush1.msra.mxu0 0.0
        %1721 = vmatprep.subr.mxu0 0.0
        %1722 = vmatpush1.msra.mxu0 0.0
        %1723 = vmatprep.subr.mxu0 0.0
        %1724 = vmatpush1.msra.mxu0 0.0
        %1725 = vmatprep.subr.mxu0 0.0
        %1726 = vmatpush1.msra.mxu0 0.0
        %1727 = vmatprep.subr.mxu0 0.0
        %1728 = vmatpush1.msra.mxu0 0.0
        %1729 = vmatprep.subr.mxu0 0.0
        %1730 = vmatpush1.msra.mxu0 0.0
        %1731 = vmatprep.subr.mxu0 0.0
        %1732 = vmatpush1.msra.mxu0 0.0
        %1733 = vmatprep.subr.mxu0 0.0
        %1734 = vmatpush1.msra.mxu0 0.0
        %1735 = vmatprep.subr.mxu0 0.0
        %1736 = vmatpush1.msra.mxu0 0.0
        %1737 = vmatprep.subr.mxu0 0.0
        %1738 = vmatpush1.msra.mxu0 0.0
        %1739 = vmatprep.subr.mxu0 0.0
        %1740 = vmatpush1.msra.mxu0 0.0
        %1741 = vmatprep.subr.mxu0 0.0
        %1742 = vmatpush1.msra.mxu0 0.0
        %1743 = vmatprep.subr.mxu0 0.0
        %1744 = vmatpush1.msra.mxu0 0.0
        %1745 = vmatprep.subr.mxu0 0.0
        %1746 = vmatpush1.msra.mxu0 0.0
        %1747 = vmatprep.subr.mxu0 0.0
        %1748 = vmatpush1.msra.mxu0 0.0
        %1749 = vmatprep.subr.mxu0 0.0
        %1750 = vmatpush1.msra.mxu0 0.0
        %1751 = vmatprep.subr.mxu0 0.0
        %1752 = vmatpush1.msra.mxu0 0.0
        %1753 = vmatprep.subr.mxu0 0.0
        %1754 = vmatpush1.msra.mxu0 0.0
        %1755 = vmatprep.mubr.f32.mxu0 0.0
        %1756 = vmatmul.mubr.f32.gmra.mrb[0].mxu0 %v1689
        %v1757 = vpop.f32.mrb[0].mxu0
        %v1758 = vadd.f32 0.0, %v1757
        %v1759 = vpop.f32.mrb[0].mxu0
        %1760 = vdwg.mxu0
        %v1761 = vadd.f32 %v1520, %v1758
        %v1762 = vld [vmem:[%s7] sm:$0x1]
        %v1764 = vlaneseq
        %v1765 = vshrl.u32 %v1764, 7
        %v1766 = vsub.s32 0, %v1765
        %v1767 = vrot.slane %v1762, %v1766
        %v1769 = vadd.f32 %v1761, %v1767
        %v1770 = vadd.f32 %v1769, %v696
        %v1771 = vld [vmem:[%s8] sm:$0x1]
        %v1772 = vld [vmem:[%s9] sm:$0x1]
        %1773 = vadd.xlane.f32.xlu0 %v1770
        %v1774 = vpop.xlane.xlu0 %1773
        %v1775 = vmul.f32 %v1774, 0.03125
        %v1776 = vmul.f32 %v1770, %v1770
        %1777 = vadd.xlane.f32.xlu0 %v1776
        %v1778 = vpop.xlane.xlu0 %1777
        %v1779 = vmul.f32 %v1778, 0.03125
        %v1780 = vmul.f32 %v1775, %v1775
        %v1781 = vsub.f32 %v1779, %v1780
        %v1782 = vsub.f32 %v1770, %v1775
        %v1783 = vadd.f32 %v1781, 1e-12
        %v1784 = vrsqrt.pop %v1783
        %v1785 = vmul.f32 %v1782, %v1784
        %v1787 = vlaneseq
        %v1788 = vshrl.u32 %v1787, 7
        %v1789 = vsub.s32 0, %v1788
        %v1790 = vrot.slane %v1771, %v1789
        %v1792 = vmul.f32 %v1785, %v1790
        %v1794 = vlaneseq
        %v1795 = vshrl.u32 %v1794, 7
        %v1796 = vsub.s32 0, %v1795
        %v1797 = vrot.slane %v1772, %v1796
        %v1799 = vadd.f32 %v1792, %v1797
        %v1800 = vld [vmem:[#allocation5] sm:$0xff]
        %v1801 = vld [vmem:[#allocation5 + $0x8] sm:$0xff]
        %v1802 = vld [vmem:[#allocation5 + $0x10] sm:$0xff]
        %v1803 = vld [vmem:[#allocation5 + $0x18] sm:$0xff]
        %v1804 = vld [vmem:[#allocation5 + $0x20] sm:$0xff]
        %v1805 = vld [vmem:[#allocation5 + $0x28] sm:$0xff]
        %v1806 = vld [vmem:[#allocation5 + $0x30] sm:$0xff]
        %v1807 = vld [vmem:[#allocation5 + $0x38] sm:$0xff]
        %v1808 = vld [vmem:[#allocation5 + $0x40] sm:$0xff]
        %v1809 = vld [vmem:[#allocation5 + $0x48] sm:$0xff]
        %v1810 = vld [vmem:[#allocation5 + $0x50] sm:$0xff]
        %v1811 = vld [vmem:[#allocation5 + $0x58] sm:$0xff]
        %v1812 = vld [vmem:[#allocation5 + $0x60] sm:$0xff]
        %v1813 = vld [vmem:[#allocation5 + $0x68] sm:$0xff]
        %v1814 = vld [vmem:[#allocation5 + $0x70] sm:$0xff]
        %v1815 = vld [vmem:[#allocation5 + $0x78] sm:$0xff]
        %v1816 = vld [vmem:[%s11] sm:$0x1]
        %v1818 = vlaneseq
        %v1819 = vshrl.u32 %v1818, 7
        %v1820 = vsub.s32 0, %v1819
        %v1821 = vrot.slane %v1816, %v1820
        %1823 = vmatprep.subr.mxu0 0.0
        %1824 = vmatpush1.msra.mxu0 %v1800
        %1825 = vmatprep.subr.mxu0 0.0
        %1826 = vmatpush1.msra.mxu0 %v1801
        %1827 = vmatprep.subr.mxu0 0.0
        %1828 = vmatpush1.msra.mxu0 %v1802
        %1829 = vmatprep.subr.mxu0 0.0
        %1830 = vmatpush1.msra.mxu0 %v1803
        %1831 = vmatprep.subr.mxu0 0.0
        %1832 = vmatpush1.msra.mxu0 %v1804
        %1833 = vmatprep.subr.mxu0 0.0
        %1834 = vmatpush1.msra.mxu0 %v1805
        %1835 = vmatprep.subr.mxu0 0.0
        %1836 = vmatpush1.msra.mxu0 %v1806
        %1837 = vmatprep.subr.mxu0 0.0
        %1838 = vmatpush1.msra.mxu0 %v1807
        %1839 = vmatprep.subr.mxu0 0.0
        %1840 = vmatpush1.msra.mxu0 %v1808
        %1841 = vmatprep.subr.mxu0 0.0
        %1842 = vmatpush1.msra.mxu0 %v1809
        %1843 = vmatprep.subr.mxu0 0.0
        %1844 = vmatpush1.msra.mxu0 %v1810
        %1845 = vmatprep.subr.mxu0 0.0
        %1846 = vmatpush1.msra.mxu0 %v1811
        %1847 = vmatprep.subr.mxu0 0.0
        %1848 = vmatpush1.msra.mxu0 %v1812
        %1849 = vmatprep.subr.mxu0 0.0
        %1850 = vmatpush1.msra.mxu0 %v1813
        %1851 = vmatprep.subr.mxu0 0.0
        %1852 = vmatpush1.msra.mxu0 %v1814
        %1853 = vmatprep.subr.mxu0 0.0
        %1854 = vmatpush1.msra.mxu0 %v1815
        %1855 = vmatprep.subr.mxu0 0.0
        %1856 = vmatpush1.msra.mxu0 0.0
        %1857 = vmatprep.subr.mxu0 0.0
        %1858 = vmatpush1.msra.mxu0 0.0
        %1859 = vmatprep.subr.mxu0 0.0
        %1860 = vmatpush1.msra.mxu0 0.0
        %1861 = vmatprep.subr.mxu0 0.0
        %1862 = vmatpush1.msra.mxu0 0.0
        %1863 = vmatprep.subr.mxu0 0.0
        %1864 = vmatpush1.msra.mxu0 0.0
        %1865 = vmatprep.subr.mxu0 0.0
        %1866 = vmatpush1.msra.mxu0 0.0
        %1867 = vmatprep.subr.mxu0 0.0
        %1868 = vmatpush1.msra.mxu0 0.0
        %1869 = vmatprep.subr.mxu0 0.0
        %1870 = vmatpush1.msra.mxu0 0.0
        %1871 = vmatprep.subr.mxu0 0.0
        %1872 = vmatpush1.msra.mxu0 0.0
        %1873 = vmatprep.subr.mxu0 0.0
        %1874 = vmatpush1.msra.mxu0 0.0
        %1875 = vmatprep.subr.mxu0 0.0
        %1876 = vmatpush1.msra.mxu0 0.0
        %1877 = vmatprep.subr.mxu0 0.0
        %1878 = vmatpush1.msra.mxu0 0.0
        %1879 = vmatprep.subr.mxu0 0.0
        %1880 = vmatpush1.msra.mxu0 0.0
        %1881 = vmatprep.subr.mxu0 0.0
        %1882 = vmatpush1.msra.mxu0 0.0
        %1883 = vmatprep.subr.mxu0 0.0
        %1884 = vmatpush1.msra.mxu0 0.0
        %1885 = vmatprep.subr.mxu0 0.0
        %1886 = vmatpush1.msra.mxu0 0.0
        %1887 = vmatprep.mubr.f32.mxu0 0.0
        %1888 = vmatmul.mubr.f32.gmra.mrb[0].mxu0 %v1799
        %v1889 = vpop.f32.mrb[0].mxu0
        %v1890 = vadd.f32 %v1821, %v1889
        %v1891 = vpop.f32.mrb[0].mxu0
        %1892 = vdwg.mxu0
        %v1893 = vmul.f32 %v1890, 0.5
        %v1894 = vmul.f32 %v1890, 0.044715
        %v1895 = vmul.f32 %v1894, %v1890
        %v1896 = vmul.f32 %v1895, %v1890
        %v1897 = vadd.f32 %v1890, %v1896
        %v1898 = vmul.f32 %v1897, 0.7978846
        %v1899 = vtanh.pop %v1898
        %v1900 = vadd.f32 %v1899, 1.0
        %v1901 = vmul.f32 %v1893, %v1900
        %v1902 = vld [vmem:[#allocation7] sm:$0xff]
        %v1903 = vld [vmem:[#allocation7 + $0x8] sm:$0xff]
        %v1904 = vld [vmem:[#allocation7 + $0x10] sm:$0xff]
        %v1905 = vld [vmem:[#allocation7 + $0x18] sm:$0xff]
        %v1906 = vld [vmem:[#allocation7 + $0x20] sm:$0xff]
        %v1907 = vld [vmem:[#allocation7 + $0x28] sm:$0xff]
        %v1908 = vld [vmem:[#allocation7 + $0x30] sm:$0xff]
        %v1909 = vld [vmem:[#allocation7 + $0x38] sm:$0xff]
        %v1910 = vld [vmem:[#allocation7 + $0x40] sm:$0xff]
        %v1911 = vld [vmem:[#allocation7 + $0x48] sm:$0xff]
        %v1912 = vld [vmem:[#allocation7 + $0x50] sm:$0xff]
        %v1913 = vld [vmem:[#allocation7 + $0x58] sm:$0xff]
        %v1914 = vld [vmem:[#allocation7 + $0x60] sm:$0xff]
        %v1915 = vld [vmem:[#allocation7 + $0x68] sm:$0xff]
        %v1916 = vld [vmem:[#allocation7 + $0x70] sm:$0xff]
        %v1917 = vld [vmem:[#allocation7 + $0x78] sm:$0xff]
        %v1918 = vld [vmem:[%s13] sm:$0x1]
        %v1920 = vlaneseq
        %v1921 = vshrl.u32 %v1920, 7
        %v1922 = vsub.s32 0, %v1921
        %v1923 = vrot.slane %v1918, %v1922
        %1925 = vmatprep.subr.mxu0 0.0
        %1926 = vmatpush1.msra.mxu0 %v1902
        %1927 = vmatprep.subr.mxu0 0.0
        %1928 = vmatpush1.msra.mxu0 %v1903
        %1929 = vmatprep.subr.mxu0 0.0
        %1930 = vmatpush1.msra.mxu0 %v1904
        %1931 = vmatprep.subr.mxu0 0.0
        %1932 = vmatpush1.msra.mxu0 %v1905
        %1933 = vmatprep.subr.mxu0 0.0
        %1934 = vmatpush1.msra.mxu0 %v1906
        %1935 = vmatprep.subr.mxu0 0.0
        %1936 = vmatpush1.msra.mxu0 %v1907
        %1937 = vmatprep.subr.mxu0 0.0
        %1938 = vmatpush1.msra.mxu0 %v1908
        %1939 = vmatprep.subr.mxu0 0.0
        %1940 = vmatpush1.msra.mxu0 %v1909
        %1941 = vmatprep.subr.mxu0 0.0
        %1942 = vmatpush1.msra.mxu0 %v1910
        %1943 = vmatprep.subr.mxu0 0.0
        %1944 = vmatpush1.msra.mxu0 %v1911
        %1945 = vmatprep.subr.mxu0 0.0
        %1946 = vmatpush1.msra.mxu0 %v1912
        %1947 = vmatprep.subr.mxu0 0.0
        %1948 = vmatpush1.msra.mxu0 %v1913
        %1949 = vmatprep.subr.mxu0 0.0
        %1950 = vmatpush1.msra.mxu0 %v1914
        %1951 = vmatprep.subr.mxu0 0.0
        %1952 = vmatpush1.msra.mxu0 %v1915
        %1953 = vmatprep.subr.mxu0 0.0
        %1954 = vmatpush1.msra.mxu0 %v1916
        %1955 = vmatprep.subr.mxu0 0.0
        %1956 = vmatpush1.msra.mxu0 %v1917
        %1957 = vmatprep.subr.mxu0 0.0
        %1958 = vmatpush1.msra.mxu0 0.0
        %1959 = vmatprep.subr.mxu0 0.0
        %1960 = vmatpush1.msra.mxu0 0.0
        %1961 = vmatprep.subr.mxu0 0.0
        %1962 = vmatpush1.msra.mxu0 0.0
        %1963 = vmatprep.subr.mxu0 0.0
        %1964 = vmatpush1.msra.mxu0 0.0
        %1965 = vmatprep.subr.mxu0 0.0
        %1966 = vmatpush1.msra.mxu0 0.0
        %1967 = vmatprep.subr.mxu0 0.0
        %1968 = vmatpush1.msra.mxu0 0.0
        %1969 = vmatprep.subr.mxu0 0.0
        %1970 = vmatpush1.msra.mxu0 0.0
        %1971 = vmatprep.subr.mxu0 0.0
        %1972 = vmatpush1.msra.mxu0 0.0
        %1973 = vmatprep.subr.mxu0 0.0
        %1974 = vmatpush1.msra.mxu0 0.0
        %1975 = vmatprep.subr.mxu0 0.0
        %1976 = vmatpush1.msra.mxu0 0.0
        %1977 = vmatprep.subr.mxu0 0.0
        %1978 = vmatpush1.msra.mxu0 0.0
        %1979 = vmatprep.subr.mxu0 0.0
        %1980 = vmatpush1.msra.mxu0 0.0
        %1981 = vmatprep.subr.mxu0 0.0
        %1982 = vmatpush1.msra.mxu0 0.0
        %1983 = vmatprep.subr.mxu0 0.0
        %1984 = vmatpush1.msra.mxu0 0.0
        %1985 = vmatprep.subr.mxu0 0.0
        %1986 = vmatpush1.msra.mxu0 0.0
        %1987 = vmatprep.subr.mxu0 0.0
        %1988 = vmatpush1.msra.mxu0 0.0
        %1989 = vmatprep.mubr.f32.mxu0 0.0
        %1990 = vmatmul.mubr.f32.gmra.mrb[0].mxu0 %v1901
        %v1991 = vpop.f32.mrb[0].mxu0
        %v1992 = vadd.f32 %v1923, %v1991
        %v1993 = vpop.f32.mrb[0].mxu0
        %1994 = vdwg.mxu0
        %v1995 = vadd.f32 %v1992, %v1799
        %v1996 = vld [vmem:[%s14] sm:$0x1]
        %v1997 = vld [vmem:[%s15] sm:$0x1]
        %1998 = vadd.xlane.f32.xlu0 %v1995
        %v1999 = vpop.xlane.xlu0 %1998
        %v2000 = vmul.f32 %v1999, 0.03125
        %v2001 = vmul.f32 %v1995, %v1995
        %2002 = vadd.xlane.f32.xlu0 %v2001
        %v2003 = vpop.xlane.xlu0 %2002
        %v2004 = vmul.f32 %v2003, 0.03125
        %v2005 = vmul.f32 %v2000, %v2000
        %v2006 = vsub.f32 %v2004, %v2005
        %v2007 = vsub.f32 %v1995, %v2000
        %v2008 = vadd.f32 %v2006, 1e-12
        %v2009 = vrsqrt.pop %v2008
        %v2010 = vmul.f32 %v2007, %v2009
        %v2012 = vlaneseq
        %v2013 = vshrl.u32 %v2012, 7
        %v2014 = vsub.s32 0, %v2013
        %v2015 = vrot.slane %v1996, %v2014
        %v2017 = vmul.f32 %v2010, %v2015
        %v2019 = vlaneseq
        %v2020 = vshrl.u32 %v2019, 7
        %v2021 = vsub.s32 0, %v2020
        %v2022 = vrot.slane %v1997, %v2021
        %v2024 = vadd.f32 %v2017, %v2022
        %s2025 = scalar_lea.vmem %s4, 128
        %v2026 = vld [vmem:[%s2025] sm:$0xff]
        %v2027 = vld [vmem:[%s2025 + $0x8] sm:$0xff]
        %v2028 = vld [vmem:[%s2025 + $0x10] sm:$0xff]
        %v2029 = vld [vmem:[%s2025 + $0x18] sm:$0xff]
        %v2030 = vld [vmem:[%s2025 + $0x20] sm:$0xff]
        %v2031 = vld [vmem:[%s2025 + $0x28] sm:$0xff]
        %v2032 = vld [vmem:[%s2025 + $0x30] sm:$0xff]
        %v2033 = vld [vmem:[%s2025 + $0x38] sm:$0xff]
        %v2034 = vld [vmem:[%s2025 + $0x40] sm:$0xff]
        %v2035 = vld [vmem:[%s2025 + $0x48] sm:$0xff]
        %v2036 = vld [vmem:[%s2025 + $0x50] sm:$0xff]
        %v2037 = vld [vmem:[%s2025 + $0x58] sm:$0xff]
        %v2038 = vld [vmem:[%s2025 + $0x60] sm:$0xff]
        %v2039 = vld [vmem:[%s2025 + $0x68] sm:$0xff]
        %v2040 = vld [vmem:[%s2025 + $0x70] sm:$0xff]
        %v2041 = vld [vmem:[%s2025 + $0x78] sm:$0xff]
        %s2042 = scalar_lea.vmem %s5, 1
        %v2043 = vld [vmem:[%s2042] sm:$0x1]
        %v2045 = vlaneseq
        %v2046 = vshrl.u32 %v2045, 7
        %v2047 = vsub.s32 0, %v2046
        %v2048 = vrot.slane %v2043, %v2047
        %2050 = vmatprep.subr.mxu0 0.0
        %2051 = vmatpush1.msra.mxu0 %v2026
        %2052 = vmatprep.subr.mxu0 0.0
        %2053 = vmatpush1.msra.mxu0 %v2027
        %2054 = vmatprep.subr.mxu0 0.0
        %2055 = vmatpush1.msra.mxu0 %v2028
        %2056 = vmatprep.subr.mxu0 0.0
        %2057 = vmatpush1.msra.mxu0 %v2029
        %2058 = vmatprep.subr.mxu0 0.0
        %2059 = vmatpush1.msra.mxu0 %v2030
        %2060 = vmatprep.subr.mxu0 0.0
        %2061 = vmatpush1.msra.mxu0 %v2031
        %2062 = vmatprep.subr.mxu0 0.0
        %2063 = vmatpush1.msra.mxu0 %v2032
        %2064 = vmatprep.subr.mxu0 0.0
        %2065 = vmatpush1.msra.mxu0 %v2033
        %2066 = vmatprep.subr.mxu0 0.0
        %2067 = vmatpush1.msra.mxu0 %v2034
        %2068 = vmatprep.subr.mxu0 0.0
        %2069 = vmatpush1.msra.mxu0 %v2035
        %2070 = vmatprep.subr.mxu0 0.0
        %2071 = vmatpush1.msra.mxu0 %v2036
        %2072 = vmatprep.subr.mxu0 0.0
        %2073 = vmatpush1.msra.mxu0 %v2037
        %2074 = vmatprep.subr.mxu0 0.0
        %2075 = vmatpush1.msra.mxu0 %v2038
        %2076 = vmatprep.subr.mxu0 0.0
        %2077 = vmatpush1.msra.mxu0 %v2039
        %2078 = vmatprep.subr.mxu0 0.0
        %2079 = vmatpush1.msra.mxu0 %v2040
        %2080 = vmatprep.subr.mxu0 0.0
        %2081 = vmatpush1.msra.mxu0 %v2041
        %2082 = vmatprep.subr.mxu0 0.0
        %2083 = vmatpush1.msra.mxu0 0.0
        %2084 = vmatprep.subr.mxu0 0.0
        %2085 = vmatpush1.msra.mxu0 0.0
        %2086 = vmatprep.subr.mxu0 0.0
        %2087 = vmatpush1.msra.mxu0 0.0
        %2088 = vmatprep.subr.mxu0 0.0
        %2089 = vmatpush1.msra.mxu0 0.0
        %2090 = vmatprep.subr.mxu0 0.0
        %2091 = vmatpush1.msra.mxu0 0.0
        %2092 = vmatprep.subr.mxu0 0.0
        %2093 = vmatpush1.msra.mxu0 0.0
        %2094 = vmatprep.subr.mxu0 0.0
        %2095 = vmatpush1.msra.mxu0 0.0
        %2096 = vmatprep.subr.mxu0 0.0
        %2097 = vmatpush1.msra.mxu0 0.0
        %2098 = vmatprep.subr.mxu0 0.0
        %2099 = vmatpush1.msra.mxu0 0.0
        %2100 = vmatprep.subr.mxu0 0.0
        %2101 = vmatpush1.msra.mxu0 0.0
        %2102 = vmatprep.subr.mxu0 0.0
        %2103 = vmatpush1.msra.mxu0 0.0
        %2104 = vmatprep.subr.mxu0 0.0
        %2105 = vmatpush1.msra.mxu0 0.0
        %2106 = vmatprep.subr.mxu0 0.0
        %2107 = vmatpush1.msra.mxu0 0.0
        %2108 = vmatprep.subr.mxu0 0.0
        %2109 = vmatpush1.msra.mxu0 0.0
        %2110 = vmatprep.subr.mxu0 0.0
        %2111 = vmatpush1.msra.mxu0 0.0
        %2112 = vmatprep.subr.mxu0 0.0
        %2113 = vmatpush1.msra.mxu0 0.0
        %2114 = vmatprep.mubr.f32.mxu0 0.0
        %2115 = vmatmul.mubr.f32.gmra.mrb[0].mxu0 %v2024
        %v2116 = vpop.f32.mrb[0].mxu0
        %v2117 = vadd.f32 %v2048, %v2116
        %v2118 = vpop.f32.mrb[0].mxu0
        %2119 = vdwg.mxu0
        %s2120 = scalar_lea.vmem [#allocation2], 128
        %v2121 = vld [vmem:[%s2120] sm:$0xff]
        %v2122 = vld [vmem:[%s2120 + $0x8] sm:$0xff]
        %v2123 = vld [vmem:[%s2120 + $0x10] sm:$0xff]
        %v2124 = vld [vmem:[%s2120 + $0x18] sm:$0xff]
        %2126 = vrot.lane.b32.xlu0 %v2117, 96
        %v2127 = vpop.permute.xlu0 %2126
        %v2128 = vsel %vm797, %v2117, 0
        %v2130 = vsel %vm797, %v2127, 0
        %2132 = vmatprep.subr.mxu0 0.0
        %2133 = vmatpush1.xpose.msra.mxu0 %v2130
        %2134 = vmatprep.subr.mxu0 0.0
        %2135 = vmatpush1.xpose.msra.mxu0 0.0
        %2136 = vmatprep.subr.mxu0 0.0
        %2137 = vmatpush1.xpose.msra.mxu0 0.0
        %2138 = vmatprep.subr.mxu0 0.0
        %2139 = vmatpush1.xpose.msra.mxu0 0.0
        %2140 = vmatprep.subr.mxu0 0.0
        %2141 = vmatpush1.xpose.msra.mxu0 0.0
        %2142 = vmatprep.subr.mxu0 0.0
        %2143 = vmatpush1.xpose.msra.mxu0 0.0
        %2144 = vmatprep.subr.mxu0 0.0
        %2145 = vmatpush1.xpose.msra.mxu0 0.0
        %2146 = vmatprep.subr.mxu0 0.0
        %2147 = vmatpush1.xpose.msra.mxu0 0.0
        %2148 = vmatprep.subr.mxu0 0.0
        %2149 = vmatpush1.xpose.msra.mxu0 0.0
        %2150 = vmatprep.subr.mxu0 0.0
        %2151 = vmatpush1.xpose.msra.mxu0 0.0
        %2152 = vmatprep.subr.mxu0 0.0
        %2153 = vmatpush1.xpose.msra.mxu0 0.0
        %2154 = vmatprep.subr.mxu0 0.0
        %2155 = vmatpush1.xpose.msra.mxu0 0.0
        %2156 = vmatprep.subr.mxu0 0.0
        %2157 = vmatpush1.xpose.msra.mxu0 0.0
        %2158 = vmatprep.subr.mxu0 0.0
        %2159 = vmatpush1.xpose.msra.mxu0 0.0
        %2160 = vmatprep.subr.mxu0 0.0
        %2161 = vmatpush1.xpose.msra.mxu0 0.0
        %2162 = vmatprep.subr.mxu0 0.0
        %2163 = vmatpush1.xpose.msra.mxu0 0.0
        %2164 = vmatprep.subr.mxu0 0.0
        %2165 = vmatpush1.xpose.msra.mxu0 0.0
        %2166 = vmatprep.subr.mxu0 0.0
        %2167 = vmatpush1.xpose.msra.mxu0 0.0
        %2168 = vmatprep.subr.mxu0 0.0
        %2169 = vmatpush1.xpose.msra.mxu0 0.0
        %2170 = vmatprep.subr.mxu0 0.0
        %2171 = vmatpush1.xpose.msra.mxu0 0.0
        %2172 = vmatprep.subr.mxu0 0.0
        %2173 = vmatpush1.xpose.msra.mxu0 0.0
        %2174 = vmatprep.subr.mxu0 0.0
        %2175 = vmatpush1.xpose.msra.mxu0 0.0
        %2176 = vmatprep.subr.mxu0 0.0
        %2177 = vmatpush1.xpose.msra.mxu0 0.0
        %2178 = vmatprep.subr.mxu0 0.0
        %2179 = vmatpush1.xpose.msra.mxu0 0.0
        %2180 = vmatprep.subr.mxu0 0.0
        %2181 = vmatpush1.xpose.msra.mxu0 0.0
        %2182 = vmatprep.subr.mxu0 0.0
        %2183 = vmatpush1.xpose.msra.mxu0 0.0
        %2184 = vmatprep.subr.mxu0 0.0
        %2185 = vmatpush1.xpose.msra.mxu0 0.0
        %2186 = vmatprep.subr.mxu0 0.0
        %2187 = vmatpush1.xpose.msra.mxu0 0.0
        %2188 = vmatprep.subr.mxu0 0.0
        %2189 = vmatpush1.xpose.msra.mxu0 0.0
        %2190 = vmatprep.subr.mxu0 0.0
        %2191 = vmatpush1.xpose.msra.mxu0 0.0
        %2192 = vmatprep.subr.mxu0 0.0
        %2193 = vmatpush1.xpose.msra.mxu0 0.0
        %2194 = vmatprep.subr.mxu0 0.0
        %2195 = vmatpush1.xpose.msra.mxu0 0.0
        %2196 = vmatprep.mubr.f32.mxu0 0.0
        %2197 = vmatmul.mubr.f32.gmra.mrb[0].mxu0 %v2128
        %v2198 = vpop.f32.mrb[0].mxu0
        %v2199 = vadd.f32 0.0, %v2198
        %v2200 = vpop.f32.mrb[0].mxu0
        %2201 = vdwg.mxu0
        %v2202 = vmul.f32 %v2199, 0.35355338
        %v2203 = vadd.f32 %v2202, %v877
        %v2204 = vsel %vm797, %v2203, -inf
        %2205 = vmax.xlane.f32.xlu0 %v2204
        %v2206 = vpop.xlane.xlu0 %2205
        %v2207 = vsub.f32 %v2203, %v2206
        %v2208 = vmul.f32 %v2207, 1.442695
        %v2209 = vpow.pop %v2208
        %v2210 = vsel %vm797, %v2209, 0.0
        %2211 = vadd.xlane.f32.xlu0 %v2210
        %v2212 = vpop.xlane.xlu0 %2211
        %v2213 = vrcp.pop %v2212
        %v2214 = vmul.f32 %v2209, %v2213
        %2215 = vrot.lane.b32.xlu0 %v2117, 64
        %v2216 = vpop.permute.xlu0 %2215
        %v2219 = vsel %vm797, %v2214, 0
        %2221 = vmatprep.subr.mxu0 0.0
        %2222 = vmatpush1.msra.mxu0 %v2216
        %2223 = vmatprep.subr.mxu0 0.0
        %2224 = vmatpush1.msra.mxu0 0.0
        %2225 = vmatprep.subr.mxu0 0.0
        %2226 = vmatpush1.msra.mxu0 0.0
        %2227 = vmatprep.subr.mxu0 0.0
        %2228 = vmatpush1.msra.mxu0 0.0
        %2229 = vmatprep.subr.mxu0 0.0
        %2230 = vmatpush1.msra.mxu0 0.0
        %2231 = vmatprep.subr.mxu0 0.0
        %2232 = vmatpush1.msra.mxu0 0.0
        %2233 = vmatprep.subr.mxu0 0.0
        %2234 = vmatpush1.msra.mxu0 0.0
        %2235 = vmatprep.subr.mxu0 0.0
        %2236 = vmatpush1.msra.mxu0 0.0
        %2237 = vmatprep.subr.mxu0 0.0
        %2238 = vmatpush1.msra.mxu0 0.0
        %2239 = vmatprep.subr.mxu0 0.0
        %2240 = vmatpush1.msra.mxu0 0.0
        %2241 = vmatprep.subr.mxu0 0.0
        %2242 = vmatpush1.msra.mxu0 0.0
        %2243 = vmatprep.subr.mxu0 0.0
        %2244 = vmatpush1.msra.mxu0 0.0
        %2245 = vmatprep.subr.mxu0 0.0
        %2246 = vmatpush1.msra.mxu0 0.0
        %2247 = vmatprep.subr.mxu0 0.0
        %2248 = vmatpush1.msra.mxu0 0.0
        %2249 = vmatprep.subr.mxu0 0.0
        %2250 = vmatpush1.msra.mxu0 0.0
        %2251 = vmatprep.subr.mxu0 0.0
        %2252 = vmatpush1.msra.mxu0 0.0
        %2253 = vmatprep.subr.mxu0 0.0
        %2254 = vmatpush1.msra.mxu0 0.0
        %2255 = vmatprep.subr.mxu0 0.0
        %2256 = vmatpush1.msra.mxu0 0.0
        %2257 = vmatprep.subr.mxu0 0.0
        %2258 = vmatpush1.msra.mxu0 0.0
        %2259 = vmatprep.subr.mxu0 0.0
        %2260 = vmatpush1.msra.mxu0 0.0
        %2261 = vmatprep.subr.mxu0 0.0
        %2262 = vmatpush1.msra.mxu0 0.0
        %2263 = vmatprep.subr.mxu0 0.0
        %2264 = vmatpush1.msra.mxu0 0.0
        %2265 = vmatprep.subr.mxu0 0.0
        %2266 = vmatpush1.msra.mxu0 0.0
        %2267 = vmatprep.subr.mxu0 0.0
        %2268 = vmatpush1.msra.mxu0 0.0
        %2269 = vmatprep.subr.mxu0 0.0
        %2270 = vmatpush1.msra.mxu0 0.0
        %2271 = vmatprep.subr.mxu0 0.0
        %2272 = vmatpush1.msra.mxu0 0.0
        %2273 = vmatprep.subr.mxu0 0.0
        %2274 = vmatpush1.msra.mxu0 0.0
        %2275 = vmatprep.subr.mxu0 0.0
        %2276 = vmatpush1.msra.mxu0 0.0
        %2277 = vmatprep.subr.mxu0 0.0
        %2278 = vmatpush1.msra.mxu0 0.0
        %2279 = vmatprep.subr.mxu0 0.0
        %2280 = vmatpush1.msra.mxu0 0.0
        %2281 = vmatprep.subr.mxu0 0.0
        %2282 = vmatpush1.msra.mxu0 0.0
        %2283 = vmatprep.subr.mxu0 0.0
        %2284 = vmatpush1.msra.mxu0 0.0
        %2285 = vmatprep.mubr.f32.mxu0 0.0
        %2286 = vmatmul.mubr.f32.gmra.mrb[0].mxu0 %v2219
        %v2287 = vpop.f32.mrb[0].mxu0
        %v2288 = vadd.f32 0.0, %v2287
        %v2289 = vpop.f32.mrb[0].mxu0
        %2290 = vdwg.mxu0
        %2291 = vrot.lane.b32.xlu0 %v2117, 120
        %v2292 = vpop.permute.xlu0 %2291
        %2293 = vrot.lane.b32.xlu0 %v2117, 88
        %v2294 = vpop.permute.xlu0 %2293
        %v2295 = vsel %vm797, %v2292, 0
        %v2297 = vsel %vm797, %v2294, 0
        %2299 = vmatprep.subr.mxu0 0.0
        %2300 = vmatpush1.xpose.msra.mxu0 %v2297
        %2301 = vmatprep.subr.mxu0 0.0
        %2302 = vmatpush1.xpose.msra.mxu0 0.0
        %2303 = vmatprep.subr.mxu0 0.0
        %2304 = vmatpush1.xpose.msra.mxu0 0.0
        %2305 = vmatprep.subr.mxu0 0.0
        %2306 = vmatpush1.xpose.msra.mxu0 0.0
        %2307 = vmatprep.subr.mxu0 0.0
        %2308 = vmatpush1.xpose.msra.mxu0 0.0
        %2309 = vmatprep.subr.mxu0 0.0
        %2310 = vmatpush1.xpose.msra.mxu0 0.0
        %2311 = vmatprep.subr.mxu0 0.0
        %2312 = vmatpush1.xpose.msra.mxu0 0.0
        %2313 = vmatprep.subr.mxu0 0.0
        %2314 = vmatpush1.xpose.msra.mxu0 0.0
        %2315 = vmatprep.subr.mxu0 0.0
        %2316 = vmatpush1.xpose.msra.mxu0 0.0
        %2317 = vmatprep.subr.mxu0 0.0
        %2318 = vmatpush1.xpose.msra.mxu0 0.0
        %2319 = vmatprep.subr.mxu0 0.0
        %2320 = vmatpush1.xpose.msra.mxu0 0.0
        %2321 = vmatprep.subr.mxu0 0.0
        %2322 = vmatpush1.xpose.msra.mxu0 0.0
        %2323 = vmatprep.subr.mxu0 0.0
        %2324 = vmatpush1.xpose.msra.mxu0 0.0
        %2325 = vmatprep.subr.mxu0 0.0
        %2326 = vmatpush1.xpose.msra.mxu0 0.0
        %2327 = vmatprep.subr.mxu0 0.0
        %2328 = vmatpush1.xpose.msra.mxu0 0.0
        %2329 = vmatprep.subr.mxu0 0.0
        %2330 = vmatpush1.xpose.msra.mxu0 0.0
        %2331 = vmatprep.subr.mxu0 0.0
        %2332 = vmatpush1.xpose.msra.mxu0 0.0
        %2333 = vmatprep.subr.mxu0 0.0
        %2334 = vmatpush1.xpose.msra.mxu0 0.0
        %2335 = vmatprep.subr.mxu0 0.0
        %2336 = vmatpush1.xpose.msra.mxu0 0.0
        %2337 = vmatprep.subr.mxu0 0.0
        %2338 = vmatpush1.xpose.msra.mxu0 0.0
        %2339 = vmatprep.subr.mxu0 0.0
        %2340 = vmatpush1.xpose.msra.mxu0 0.0
        %2341 = vmatprep.subr.mxu0 0.0
        %2342 = vmatpush1.xpose.msra.mxu0 0.0
        %2343 = vmatprep.subr.mxu0 0.0
        %2344 = vmatpush1.xpose.msra.mxu0 0.0
        %2345 = vmatprep.subr.mxu0 0.0
        %2346 = vmatpush1.xpose.msra.mxu0 0.0
        %2347 = vmatprep.subr.mxu0 0.0
        %2348 = vmatpush1.xpose.msra.mxu0 0.0
        %2349 = vmatprep.subr.mxu0 0.0
        %2350 = vmatpush1.xpose.msra.mxu0 0.0
        %2351 = vmatprep.subr.mxu0 0.0
        %2352 = vmatpush1.xpose.msra.mxu0 0.0
        %2353 = vmatprep.subr.mxu0 0.0
        %2354 = vmatpush1.xpose.msra.mxu0 0.0
        %2355 = vmatprep.subr.mxu0 0.0
        %2356 = vmatpush1.xpose.msra.mxu0 0.0
        %2357 = vmatprep.subr.mxu0 0.0
        %2358 = vmatpush1.xpose.msra.mxu0 0.0
        %2359 = vmatprep.subr.mxu0 0.0
        %2360 = vmatpush1.xpose.msra.mxu0 0.0
        %2361 = vmatprep.subr.mxu0 0.0
        %2362 = vmatpush1.xpose.msra.mxu0 0.0
        %2363 = vmatprep.mubr.f32.mxu0 0.0
        %2364 = vmatmul.mubr.f32.gmra.mrb[0].mxu0 %v2295
        %v2365 = vpop.f32.mrb[0].mxu0
        %v2366 = vadd.f32 0.0, %v2365
        %v2367 = vpop.f32.mrb[0].mxu0
        %2368 = vdwg.mxu0
        %v2369 = vmul.f32 %v2366, 0.35355338
        %v2370 = vadd.f32 %v2369, %v877
        %v2371 = vsel %vm797, %v2370, -inf
        %2372 = vmax.xlane.f32.xlu0 %v2371
        %v2373 = vpop.xlane.xlu0 %2372
        %v2374 = vsub.f32 %v2370, %v2373
        %v2375 = vmul.f32 %v2374, 1.442695
        %v2376 = vpow.pop %v2375
        %v2377 = vsel %vm797, %v2376, 0.0
        %2378 = vadd.xlane.f32.xlu0 %v2377
        %v2379 = vpop.xlane.xlu0 %2378
        %v2380 = vrcp.pop %v2379
        %v2381 = vmul.f32 %v2376, %v2380
        %2382 = vrot.lane.b32.xlu0 %v2117, 56
        %v2383 = vpop.permute.xlu0 %2382
        %v2386 = vsel %vm797, %v2381, 0
        %2388 = vmatprep.subr.mxu0 0.0
        %2389 = vmatpush1.msra.mxu0 %v2383
        %2390 = vmatprep.subr.mxu0 0.0
        %2391 = vmatpush1.msra.mxu0 0.0
        %2392 = vmatprep.subr.mxu0 0.0
        %2393 = vmatpush1.msra.mxu0 0.0
        %2394 = vmatprep.subr.mxu0 0.0
        %2395 = vmatpush1.msra.mxu0 0.0
        %2396 = vmatprep.subr.mxu0 0.0
        %2397 = vmatpush1.msra.mxu0 0.0
        %2398 = vmatprep.subr.mxu0 0.0
        %2399 = vmatpush1.msra.mxu0 0.0
        %2400 = vmatprep.subr.mxu0 0.0
        %2401 = vmatpush1.msra.mxu0 0.0
        %2402 = vmatprep.subr.mxu0 0.0
        %2403 = vmatpush1.msra.mxu0 0.0
        %2404 = vmatprep.subr.mxu0 0.0
        %2405 = vmatpush1.msra.mxu0 0.0
        %2406 = vmatprep.subr.mxu0 0.0
        %2407 = vmatpush1.msra.mxu0 0.0
        %2408 = vmatprep.subr.mxu0 0.0
        %2409 = vmatpush1.msra.mxu0 0.0
        %2410 = vmatprep.subr.mxu0 0.0
        %2411 = vmatpush1.msra.mxu0 0.0
        %2412 = vmatprep.subr.mxu0 0.0
        %2413 = vmatpush1.msra.mxu0 0.0
        %2414 = vmatprep.subr.mxu0 0.0
        %2415 = vmatpush1.msra.mxu0 0.0
        %2416 = vmatprep.subr.mxu0 0.0
        %2417 = vmatpush1.msra.mxu0 0.0
        %2418 = vmatprep.subr.mxu0 0.0
        %2419 = vmatpush1.msra.mxu0 0.0
        %2420 = vmatprep.subr.mxu0 0.0
        %2421 = vmatpush1.msra.mxu0 0.0
        %2422 = vmatprep.subr.mxu0 0.0
        %2423 = vmatpush1.msra.mxu0 0.0
        %2424 = vmatprep.subr.mxu0 0.0
        %2425 = vmatpush1.msra.mxu0 0.0
        %2426 = vmatprep.subr.mxu0 0.0
        %2427 = vmatpush1.msra.mxu0 0.0
        %2428 = vmatprep.subr.mxu0 0.0
        %2429 = vmatpush1.msra.mxu0 0.0
        %2430 = vmatprep.subr.mxu0 0.0
        %2431 = vmatpush1.msra.mxu0 0.0
        %2432 = vmatprep.subr.mxu0 0.0
        %2433 = vmatpush1.msra.mxu0 0.0
        %2434 = vmatprep.subr.mxu0 0.0
        %2435 = vmatpush1.msra.mxu0 0.0
        %2436 = vmatprep.subr.mxu0 0.0
        %2437 = vmatpush1.msra.mxu0 0.0
        %2438 = vmatprep.subr.mxu0 0.0
        %2439 = vmatpush1.msra.mxu0 0.0
        %2440 = vmatprep.subr.mxu0 0.0
        %2441 = vmatpush1.msra.mxu0 0.0
        %2442 = vmatprep.subr.mxu0 0.0
        %2443 = vmatpush1.msra.mxu0 0.0
        %2444 = vmatprep.subr.mxu0 0.0
        %2445 = vmatpush1.msra.mxu0 0.0
        %2446 = vmatprep.subr.mxu0 0.0
        %2447 = vmatpush1.msra.mxu0 0.0
        %2448 = vmatprep.subr.mxu0 0.0
        %2449 = vmatpush1.msra.mxu0 0.0
        %2450 = vmatprep.subr.mxu0 0.0
        %2451 = vmatpush1.msra.mxu0 0.0
        %2452 = vmatprep.mubr.f32.mxu0 0.0
        %2453 = vmatmul.mubr.f32.gmra.mrb[0].mxu0 %v2386
        %v2454 = vpop.f32.mrb[0].mxu0
        %v2455 = vadd.f32 0.0, %v2454
        %v2456 = vpop.f32.mrb[0].mxu0
        %2457 = vdwg.mxu0
        %v2459 = vsel %vm797, %v2455, 0
        %2461 = vmatprep.subr.mxu0 0.0
        %2462 = vmatpush1.msra.mxu0 %v2122
        %2463 = vmatprep.subr.mxu0 0.0
        %2464 = vmatpush1.msra.mxu0 0.0
        %2465 = vmatprep.subr.mxu0 0.0
        %2466 = vmatpush1.msra.mxu0 0.0
        %2467 = vmatprep.subr.mxu0 0.0
        %2468 = vmatpush1.msra.mxu0 0.0
        %2469 = vmatprep.subr.mxu0 0.0
        %2470 = vmatpush1.msra.mxu0 0.0
        %2471 = vmatprep.subr.mxu0 0.0
        %2472 = vmatpush1.msra.mxu0 0.0
        %2473 = vmatprep.subr.mxu0 0.0
        %2474 = vmatpush1.msra.mxu0 0.0
        %2475 = vmatprep.subr.mxu0 0.0
        %2476 = vmatpush1.msra.mxu0 0.0
        %2477 = vmatprep.subr.mxu0 0.0
        %2478 = vmatpush1.msra.mxu0 0.0
        %2479 = vmatprep.subr.mxu0 0.0
        %2480 = vmatpush1.msra.mxu0 0.0
        %2481 = vmatprep.subr.mxu0 0.0
        %2482 = vmatpush1.msra.mxu0 0.0
        %2483 = vmatprep.subr.mxu0 0.0
        %2484 = vmatpush1.msra.mxu0 0.0
        %2485 = vmatprep.subr.mxu0 0.0
        %2486 = vmatpush1.msra.mxu0 0.0
        %2487 = vmatprep.subr.mxu0 0.0
        %2488 = vmatpush1.msra.mxu0 0.0
        %2489 = vmatprep.subr.mxu0 0.0
        %2490 = vmatpush1.msra.mxu0 0.0
        %2491 = vmatprep.subr.mxu0 0.0
        %2492 = vmatpush1.msra.mxu0 0.0
        %2493 = vmatprep.subr.mxu0 0.0
        %2494 = vmatpush1.msra.mxu0 0.0
        %2495 = vmatprep.subr.mxu0 0.0
        %2496 = vmatpush1.msra.mxu0 0.0
        %2497 = vmatprep.subr.mxu0 0.0
        %2498 = vmatpush1.msra.mxu0 0.0
        %2499 = vmatprep.subr.mxu0 0.0
        %2500 = vmatpush1.msra.mxu0 0.0
        %2501 = vmatprep.subr.mxu0 0.0
        %2502 = vmatpush1.msra.mxu0 0.0
        %2503 = vmatprep.subr.mxu0 0.0
        %2504 = vmatpush1.msra.mxu0 0.0
        %2505 = vmatprep.subr.mxu0 0.0
        %2506 = vmatpush1.msra.mxu0 0.0
        %2507 = vmatprep.subr.mxu0 0.0
        %2508 = vmatpush1.msra.mxu0 0.0
        %2509 = vmatprep.subr.mxu0 0.0
        %2510 = vmatpush1.msra.mxu0 0.0
        %2511 = vmatprep.subr.mxu0 0.0
        %2512 = vmatpush1.msra.mxu0 0.0
        %2513 = vmatprep.subr.mxu0 0.0
        %2514 = vmatpush1.msra.mxu0 0.0
        %2515 = vmatprep.subr.mxu0 0.0
        %2516 = vmatpush1.msra.mxu0 0.0
        %2517 = vmatprep.subr.mxu0 0.0
        %2518 = vmatpush1.msra.mxu0 0.0
        %2519 = vmatprep.subr.mxu0 0.0
        %2520 = vmatpush1.msra.mxu0 0.0
        %2521 = vmatprep.subr.mxu0 0.0
        %2522 = vmatpush1.msra.mxu0 0.0
        %2523 = vmatprep.subr.mxu0 0.0
        %2524 = vmatpush1.msra.mxu0 0.0
        %2525 = vmatprep.mubr.f32.mxu0 0.0
        %2526 = vmatmul.mubr.f32.gmra.mrb[0].mxu0 %v2459
        %v2527 = vpop.f32.mrb[0].mxu0
        %v2528 = vadd.f32 0.0, %v2527
        %v2529 = vpop.f32.mrb[0].mxu0
        %2530 = vdwg.mxu0
        %v2532 = vsel %vm797, %v2288, 0
        %2534 = vmatprep.subr.mxu0 0.0
        %2535 = vmatpush1.msra.mxu0 %v2121
        %2536 = vmatprep.subr.mxu0 0.0
        %2537 = vmatpush1.msra.mxu0 0.0
        %2538 = vmatprep.subr.mxu0 0.0
        %2539 = vmatpush1.msra.mxu0 0.0
        %2540 = vmatprep.subr.mxu0 0.0
        %2541 = vmatpush1.msra.mxu0 0.0
        %2542 = vmatprep.subr.mxu0 0.0
        %2543 = vmatpush1.msra.mxu0 0.0
        %2544 = vmatprep.subr.mxu0 0.0
        %2545 = vmatpush1.msra.mxu0 0.0
        %2546 = vmatprep.subr.mxu0 0.0
        %2547 = vmatpush1.msra.mxu0 0.0
        %2548 = vmatprep.subr.mxu0 0.0
        %2549 = vmatpush1.msra.mxu0 0.0
        %2550 = vmatprep.subr.mxu0 0.0
        %2551 = vmatpush1.msra.mxu0 0.0
        %2552 = vmatprep.subr.mxu0 0.0
        %2553 = vmatpush1.msra.mxu0 0.0
        %2554 = vmatprep.subr.mxu0 0.0
        %2555 = vmatpush1.msra.mxu0 0.0
        %2556 = vmatprep.subr.mxu0 0.0
        %2557 = vmatpush1.msra.mxu0 0.0
        %2558 = vmatprep.subr.mxu0 0.0
        %2559 = vmatpush1.msra.mxu0 0.0
        %2560 = vmatprep.subr.mxu0 0.0
        %2561 = vmatpush1.msra.mxu0 0.0
        %2562 = vmatprep.subr.mxu0 0.0
        %2563 = vmatpush1.msra.mxu0 0.0
        %2564 = vmatprep.subr.mxu0 0.0
        %2565 = vmatpush1.msra.mxu0 0.0
        %2566 = vmatprep.subr.mxu0 0.0
        %2567 = vmatpush1.msra.mxu0 0.0
        %2568 = vmatprep.subr.mxu0 0.0
        %2569 = vmatpush1.msra.mxu0 0.0
        %2570 = vmatprep.subr.mxu0 0.0
        %2571 = vmatpush1.msra.mxu0 0.0
        %2572 = vmatprep.subr.mxu0 0.0
        %2573 = vmatpush1.msra.mxu0 0.0
        %2574 = vmatprep.subr.mxu0 0.0
        %2575 = vmatpush1.msra.mxu0 0.0
        %2576 = vmatprep.subr.mxu0 0.0
        %2577 = vmatpush1.msra.mxu0 0.0
        %2578 = vmatprep.subr.mxu0 0.0
        %2579 = vmatpush1.msra.mxu0 0.0
        %2580 = vmatprep.subr.mxu0 0.0
        %2581 = vmatpush1.msra.mxu0 0.0
        %2582 = vmatprep.subr.mxu0 0.0
        %2583 = vmatpush1.msra.mxu0 0.0
        %2584 = vmatprep.subr.mxu0 0.0
        %2585 = vmatpush1.msra.mxu0 0.0
        %2586 = vmatprep.subr.mxu0 0.0
        %2587 = vmatpush1.msra.mxu0 0.0
        %2588 = vmatprep.subr.mxu0 0.0
        %2589 = vmatpush1.msra.mxu0 0.0
        %2590 = vmatprep.subr.mxu0 0.0
        %2591 = vmatpush1.msra.mxu0 0.0
        %2592 = vmatprep.subr.mxu0 0.0
        %2593 = vmatpush1.msra.mxu0 0.0
        %2594 = vmatprep.subr.mxu0 0.0
        %2595 = vmatpush1.msra.mxu0 0.0
        %2596 = vmatprep.subr.mxu0 0.0
        %2597 = vmatpush1.msra.mxu0 0.0
        %2598 = vmatprep.mubr.f32.mxu0 0.0
        %2599 = vmatmul.mubr.f32.gmra.mrb[0].mxu0 %v2532
        %v2600 = vpop.f32.mrb[0].mxu0
        %v2601 = vadd.f32 %v2528, %v2600
        %v2602 = vpop.f32.mrb[0].mxu0
        %2603 = vdwg.mxu0
        %2604 = vrot.lane.b32.xlu0 %v2117, 112
        %v2605 = vpop.permute.xlu0 %2604
        %2606 = vrot.lane.b32.xlu0 %v2117, 80
        %v2607 = vpop.permute.xlu0 %2606
        %v2608 = vsel %vm797, %v2605, 0
        %v2610 = vsel %vm797, %v2607, 0
        %2612 = vmatprep.subr.mxu0 0.0
        %2613 = vmatpush1.xpose.msra.mxu0 %v2610
        %2614 = vmatprep.subr.mxu0 0.0
        %2615 = vmatpush1.xpose.msra.mxu0 0.0
        %2616 = vmatprep.subr.mxu0 0.0
        %2617 = vmatpush1.xpose.msra.mxu0 0.0
        %2618 = vmatprep.subr.mxu0 0.0
        %2619 = vmatpush1.xpose.msra.mxu0 0.0
        %2620 = vmatprep.subr.mxu0 0.0
        %2621 = vmatpush1.xpose.msra.mxu0 0.0
        %2622 = vmatprep.subr.mxu0 0.0
        %2623 = vmatpush1.xpose.msra.mxu0 0.0
        %2624 = vmatprep.subr.mxu0 0.0
        %2625 = vmatpush1.xpose.msra.mxu0 0.0
        %2626 = vmatprep.subr.mxu0 0.0
        %2627 = vmatpush1.xpose.msra.mxu0 0.0
        %2628 = vmatprep.subr.mxu0 0.0
        %2629 = vmatpush1.xpose.msra.mxu0 0.0
        %2630 = vmatprep.subr.mxu0 0.0
        %2631 = vmatpush1.xpose.msra.mxu0 0.0
        %2632 = vmatprep.subr.mxu0 0.0
        %2633 = vmatpush1.xpose.msra.mxu0 0.0
        %2634 = vmatprep.subr.mxu0 0.0
        %2635 = vmatpush1.xpose.msra.mxu0 0.0
        %2636 = vmatprep.subr.mxu0 0.0
        %2637 = vmatpush1.xpose.msra.mxu0 0.0
        %2638 = vmatprep.subr.mxu0 0.0
        %2639 = vmatpush1.xpose.msra.mxu0 0.0
        %2640 = vmatprep.subr.mxu0 0.0
        %2641 = vmatpush1.xpose.msra.mxu0 0.0
        %2642 = vmatprep.subr.mxu0 0.0
        %2643 = vmatpush1.xpose.msra.mxu0 0.0
        %2644 = vmatprep.subr.mxu0 0.0
        %2645 = vmatpush1.xpose.msra.mxu0 0.0
        %2646 = vmatprep.subr.mxu0 0.0
        %2647 = vmatpush1.xpose.msra.mxu0 0.0
        %2648 = vmatprep.subr.mxu0 0.0
        %2649 = vmatpush1.xpose.msra.mxu0 0.0
        %2650 = vmatprep.subr.mxu0 0.0
        %2651 = vmatpush1.xpose.msra.mxu0 0.0
        %2652 = vmatprep.subr.mxu0 0.0
        %2653 = vmatpush1.xpose.msra.mxu0 0.0
        %2654 = vmatprep.subr.mxu0 0.0
        %2655 = vmatpush1.xpose.msra.mxu0 0.0
        %2656 = vmatprep.subr.mxu0 0.0
        %2657 = vmatpush1.xpose.msra.mxu0 0.0
        %2658 = vmatprep.subr.mxu0 0.0
        %2659 = vmatpush1.xpose.msra.mxu0 0.0
        %2660 = vmatprep.subr.mxu0 0.0
        %2661 = vmatpush1.xpose.msra.mxu0 0.0
        %2662 = vmatprep.subr.mxu0 0.0
        %2663 = vmatpush1.xpose.msra.mxu0 0.0
        %2664 = vmatprep.subr.mxu0 0.0
        %2665 = vmatpush1.xpose.msra.mxu0 0.0
        %2666 = vmatprep.subr.mxu0 0.0
        %2667 = vmatpush1.xpose.msra.mxu0 0.0
        %2668 = vmatprep.subr.mxu0 0.0
        %2669 = vmatpush1.xpose.msra.mxu0 0.0
        %2670 = vmatprep.subr.mxu0 0.0
        %2671 = vmatpush1.xpose.msra.mxu0 0.0
        %2672 = vmatprep.subr.mxu0 0.0
        %2673 = vmatpush1.xpose.msra.mxu0 0.0
        %2674 = vmatprep.subr.mxu0 0.0
        %2675 = vmatpush1.xpose.msra.mxu0 0.0
        %2676 = vmatprep.mubr.f32.mxu0 0.0
        %2677 = vmatmul.mubr.f32.gmra.mrb[0].mxu0 %v2608
        %v2678 = vpop.f32.mrb[0].mxu0
        %v2679 = vadd.f32 0.0, %v2678
        %v2680 = vpop.f32.mrb[0].mxu0
        %2681 = vdwg.mxu0
        %v2682 = vmul.f32 %v2679, 0.35355338
        %v2683 = vadd.f32 %v2682, %v877
        %v2684 = vsel %vm797, %v2683, -inf
        %2685 = vmax.xlane.f32.xlu0 %v2684
        %v2686 = vpop.xlane.xlu0 %2685
        %v2687 = vsub.f32 %v2683, %v2686
        %v2688 = vmul.f32 %v2687, 1.442695
        %v2689 = vpow.pop %v2688
        %v2690 = vsel %vm797, %v2689, 0.0
        %2691 = vadd.xlane.f32.xlu0 %v2690
        %v2692 = vpop.xlane.xlu0 %2691
        %v2693 = vrcp.pop %v2692
        %v2694 = vmul.f32 %v2689, %v2693
        %2695 = vrot.lane.b32.xlu0 %v2117, 48
        %v2696 = vpop.permute.xlu0 %2695
        %v2699 = vsel %vm797, %v2694, 0
        %2701 = vmatprep.subr.mxu0 0.0
        %2702 = vmatpush1.msra.mxu0 %v2696
        %2703 = vmatprep.subr.mxu0 0.0
        %2704 = vmatpush1.msra.mxu0 0.0
        %2705 = vmatprep.subr.mxu0 0.0
        %2706 = vmatpush1.msra.mxu0 0.0
        %2707 = vmatprep.subr.mxu0 0.0
        %2708 = vmatpush1.msra.mxu0 0.0
        %2709 = vmatprep.subr.mxu0 0.0
        %2710 = vmatpush1.msra.mxu0 0.0
        %2711 = vmatprep.subr.mxu0 0.0
        %2712 = vmatpush1.msra.mxu0 0.0
        %2713 = vmatprep.subr.mxu0 0.0
        %2714 = vmatpush1.msra.mxu0 0.0
        %2715 = vmatprep.subr.mxu0 0.0
        %2716 = vmatpush1.msra.mxu0 0.0
        %2717 = vmatprep.subr.mxu0 0.0
        %2718 = vmatpush1.msra.mxu0 0.0
        %2719 = vmatprep.subr.mxu0 0.0
        %2720 = vmatpush1.msra.mxu0 0.0
        %2721 = vmatprep.subr.mxu0 0.0
        %2722 = vmatpush1.msra.mxu0 0.0
        %2723 = vmatprep.subr.mxu0 0.0
        %2724 = vmatpush1.msra.mxu0 0.0
        %2725 = vmatprep.subr.mxu0 0.0
        %2726 = vmatpush1.msra.mxu0 0.0
        %2727 = vmatprep.subr.mxu0 0.0
        %2728 = vmatpush1.msra.mxu0 0.0
        %2729 = vmatprep.subr.mxu0 0.0
        %2730 = vmatpush1.msra.mxu0 0.0
        %2731 = vmatprep.subr.mxu0 0.0
        %2732 = vmatpush1.msra.mxu0 0.0
        %2733 = vmatprep.subr.mxu0 0.0
        %2734 = vmatpush1.msra.mxu0 0.0
        %2735 = vmatprep.subr.mxu0 0.0
        %2736 = vmatpush1.msra.mxu0 0.0
        %2737 = vmatprep.subr.mxu0 0.0
        %2738 = vmatpush1.msra.mxu0 0.0
        %2739 = vmatprep.subr.mxu0 0.0
        %2740 = vmatpush1.msra.mxu0 0.0
        %2741 = vmatprep.subr.mxu0 0.0
        %2742 = vmatpush1.msra.mxu0 0.0
        %2743 = vmatprep.subr.mxu0 0.0
        %2744 = vmatpush1.msra.mxu0 0.0
        %2745 = vmatprep.subr.mxu0 0.0
        %2746 = vmatpush1.msra.mxu0 0.0
        %2747 = vmatprep.subr.mxu0 0.0
        %2748 = vmatpush1.msra.mxu0 0.0
        %2749 = vmatprep.subr.mxu0 0.0
        %2750 = vmatpush1.msra.mxu0 0.0
        %2751 = vmatprep.subr.mxu0 0.0
        %2752 = vmatpush1.msra.mxu0 0.0
        %2753 = vmatprep.subr.mxu0 0.0
        %2754 = vmatpush1.msra.mxu0 0.0
        %2755 = vmatprep.subr.mxu0 0.0
        %2756 = vmatpush1.msra.mxu0 0.0
        %2757 = vmatprep.subr.mxu0 0.0
        %2758 = vmatpush1.msra.mxu0 0.0
        %2759 = vmatprep.subr.mxu0 0.0
        %2760 = vmatpush1.msra.mxu0 0.0
        %2761 = vmatprep.subr.mxu0 0.0
        %2762 = vmatpush1.msra.mxu0 0.0
        %2763 = vmatprep.subr.mxu0 0.0
        %2764 = vmatpush1.msra.mxu0 0.0
        %2765 = vmatprep.mubr.f32.mxu0 0.0
        %2766 = vmatmul.mubr.f32.gmra.mrb[0].mxu0 %v2699
        %v2767 = vpop.f32.mrb[0].mxu0
        %v2768 = vadd.f32 0.0, %v2767
        %v2769 = vpop.f32.mrb[0].mxu0
        %2770 = vdwg.mxu0
        %v2772 = vsel %vm797, %v2768, 0
        %2774 = vmatprep.subr.mxu0 0.0
        %2775 = vmatpush1.msra.mxu0 %v2123
        %2776 = vmatprep.subr.mxu0 0.0
        %2777 = vmatpush1.msra.mxu0 0.0
        %2778 = vmatprep.subr.mxu0 0.0
        %2779 = vmatpush1.msra.mxu0 0.0
        %2780 = vmatprep.subr.mxu0 0.0
        %2781 = vmatpush1.msra.mxu0 0.0
        %2782 = vmatprep.subr.mxu0 0.0
        %2783 = vmatpush1.msra.mxu0 0.0
        %2784 = vmatprep.subr.mxu0 0.0
        %2785 = vmatpush1.msra.mxu0 0.0
        %2786 = vmatprep.subr.mxu0 0.0
        %2787 = vmatpush1.msra.mxu0 0.0
        %2788 = vmatprep.subr.mxu0 0.0
        %2789 = vmatpush1.msra.mxu0 0.0
        %2790 = vmatprep.subr.mxu0 0.0
        %2791 = vmatpush1.msra.mxu0 0.0
        %2792 = vmatprep.subr.mxu0 0.0
        %2793 = vmatpush1.msra.mxu0 0.0
        %2794 = vmatprep.subr.mxu0 0.0
        %2795 = vmatpush1.msra.mxu0 0.0
        %2796 = vmatprep.subr.mxu0 0.0
        %2797 = vmatpush1.msra.mxu0 0.0
        %2798 = vmatprep.subr.mxu0 0.0
        %2799 = vmatpush1.msra.mxu0 0.0
        %2800 = vmatprep.subr.mxu0 0.0
        %2801 = vmatpush1.msra.mxu0 0.0
        %2802 = vmatprep.subr.mxu0 0.0
        %2803 = vmatpush1.msra.mxu0 0.0
        %2804 = vmatprep.subr.mxu0 0.0
        %2805 = vmatpush1.msra.mxu0 0.0
        %2806 = vmatprep.subr.mxu0 0.0
        %2807 = vmatpush1.msra.mxu0 0.0
        %2808 = vmatprep.subr.mxu0 0.0
        %2809 = vmatpush1.msra.mxu0 0.0
        %2810 = vmatprep.subr.mxu0 0.0
        %2811 = vmatpush1.msra.mxu0 0.0
        %2812 = vmatprep.subr.mxu0 0.0
        %2813 = vmatpush1.msra.mxu0 0.0
        %2814 = vmatprep.subr.mxu0 0.0
        %2815 = vmatpush1.msra.mxu0 0.0
        %2816 = vmatprep.subr.mxu0 0.0
        %2817 = vmatpush1.msra.mxu0 0.0
        %2818 = vmatprep.subr.mxu0 0.0
        %2819 = vmatpush1.msra.mxu0 0.0
        %2820 = vmatprep.subr.mxu0 0.0
        %2821 = vmatpush1.msra.mxu0 0.0
        %2822 = vmatprep.subr.mxu0 0.0
        %2823 = vmatpush1.msra.mxu0 0.0
        %2824 = vmatprep.subr.mxu0 0.0
        %2825 = vmatpush1.msra.mxu0 0.0
        %2826 = vmatprep.subr.mxu0 0.0
        %2827 = vmatpush1.msra.mxu0 0.0
        %2828 = vmatprep.subr.mxu0 0.0
        %2829 = vmatpush1.msra.mxu0 0.0
        %2830 = vmatprep.subr.mxu0 0.0
        %2831 = vmatpush1.msra.mxu0 0.0
        %2832 = vmatprep.subr.mxu0 0.0
        %2833 = vmatpush1.msra.mxu0 0.0
        %2834 = vmatprep.subr.mxu0 0.0
        %2835 = vmatpush1.msra.mxu0 0.0
        %2836 = vmatprep.subr.mxu0 0.0
        %2837 = vmatpush1.msra.mxu0 0.0
        %2838 = vmatprep.mubr.f32.mxu0 0.0
        %2839 = vmatmul.mubr.f32.gmra.mrb[0].mxu0 %v2772
        %v2840 = vpop.f32.mrb[0].mxu0
        %v2841 = vadd.f32 0.0, %v2840
        %v2842 = vpop.f32.mrb[0].mxu0
        %2843 = vdwg.mxu0
        %v2844 = vadd.f32 %v2601, %v2841
        %2845 = vrot.lane.b32.xlu0 %v2117, 104
        %v2846 = vpop.permute.xlu0 %2845
        %2847 = vrot.lane.b32.xlu0 %v2117, 72
        %v2848 = vpop.permute.xlu0 %2847
        %v2849 = vsel %vm797, %v2846, 0
        %v2851 = vsel %vm797, %v2848, 0
        %2853 = vmatprep.subr.mxu0 0.0
        %2854 = vmatpush1.xpose.msra.mxu0 %v2851
        %2855 = vmatprep.subr.mxu0 0.0
        %2856 = vmatpush1.xpose.msra.mxu0 0.0
        %2857 = vmatprep.subr.mxu0 0.0
        %2858 = vmatpush1.xpose.msra.mxu0 0.0
        %2859 = vmatprep.subr.mxu0 0.0
        %2860 = vmatpush1.xpose.msra.mxu0 0.0
        %2861 = vmatprep.subr.mxu0 0.0
        %2862 = vmatpush1.xpose.msra.mxu0 0.0
        %2863 = vmatprep.subr.mxu0 0.0
        %2864 = vmatpush1.xpose.msra.mxu0 0.0
        %2865 = vmatprep.subr.mxu0 0.0
        %2866 = vmatpush1.xpose.msra.mxu0 0.0
        %2867 = vmatprep.subr.mxu0 0.0
        %2868 = vmatpush1.xpose.msra.mxu0 0.0
        %2869 = vmatprep.subr.mxu0 0.0
        %2870 = vmatpush1.xpose.msra.mxu0 0.0
        %2871 = vmatprep.subr.mxu0 0.0
        %2872 = vmatpush1.xpose.msra.mxu0 0.0
        %2873 = vmatprep.subr.mxu0 0.0
        %2874 = vmatpush1.xpose.msra.mxu0 0.0
        %2875 = vmatprep.subr.mxu0 0.0
        %2876 = vmatpush1.xpose.msra.mxu0 0.0
        %2877 = vmatprep.subr.mxu0 0.0
        %2878 = vmatpush1.xpose.msra.mxu0 0.0
        %2879 = vmatprep.subr.mxu0 0.0
        %2880 = vmatpush1.xpose.msra.mxu0 0.0
        %2881 = vmatprep.subr.mxu0 0.0
        %2882 = vmatpush1.xpose.msra.mxu0 0.0
        %2883 = vmatprep.subr.mxu0 0.0
        %2884 = vmatpush1.xpose.msra.mxu0 0.0
        %2885 = vmatprep.subr.mxu0 0.0
        %2886 = vmatpush1.xpose.msra.mxu0 0.0
        %2887 = vmatprep.subr.mxu0 0.0
        %2888 = vmatpush1.xpose.msra.mxu0 0.0
        %2889 = vmatprep.subr.mxu0 0.0
        %2890 = vmatpush1.xpose.msra.mxu0 0.0
        %2891 = vmatprep.subr.mxu0 0.0
        %2892 = vmatpush1.xpose.msra.mxu0 0.0
        %2893 = vmatprep.subr.mxu0 0.0
        %2894 = vmatpush1.xpose.msra.mxu0 0.0
        %2895 = vmatprep.subr.mxu0 0.0
        %2896 = vmatpush1.xpose.msra.mxu0 0.0
        %2897 = vmatprep.subr.mxu0 0.0
        %2898 = vmatpush1.xpose.msra.mxu0 0.0
        %2899 = vmatprep.subr.mxu0 0.0
        %2900 = vmatpush1.xpose.msra.mxu0 0.0
        %2901 = vmatprep.subr.mxu0 0.0
        %2902 = vmatpush1.xpose.msra.mxu0 0.0
        %2903 = vmatprep.subr.mxu0 0.0
        %2904 = vmatpush1.xpose.msra.mxu0 0.0
        %2905 = vmatprep.subr.mxu0 0.0
        %2906 = vmatpush1.xpose.msra.mxu0 0.0
        %2907 = vmatprep.subr.mxu0 0.0
        %2908 = vmatpush1.xpose.msra.mxu0 0.0
        %2909 = vmatprep.subr.mxu0 0.0
        %2910 = vmatpush1.xpose.msra.mxu0 0.0
        %2911 = vmatprep.subr.mxu0 0.0
        %2912 = vmatpush1.xpose.msra.mxu0 0.0
        %2913 = vmatprep.subr.mxu0 0.0
        %2914 = vmatpush1.xpose.msra.mxu0 0.0
        %2915 = vmatprep.subr.mxu0 0.0
        %2916 = vmatpush1.xpose.msra.mxu0 0.0
        %2917 = vmatprep.mubr.f32.mxu0 0.0
        %2918 = vmatmul.mubr.f32.gmra.mrb[0].mxu0 %v2849
        %v2919 = vpop.f32.mrb[0].mxu0
        %v2920 = vadd.f32 0.0, %v2919
        %v2921 = vpop.f32.mrb[0].mxu0
        %2922 = vdwg.mxu0
        %v2923 = vmul.f32 %v2920, 0.35355338
        %v2924 = vadd.f32 %v2923, %v877
        %v2925 = vsel %vm797, %v2924, -inf
        %2926 = vmax.xlane.f32.xlu0 %v2925
        %v2927 = vpop.xlane.xlu0 %2926
        %v2928 = vsub.f32 %v2924, %v2927
        %v2929 = vmul.f32 %v2928, 1.442695
        %v2930 = vpow.pop %v2929
        %v2931 = vsel %vm797, %v2930, 0.0
        %2932 = vadd.xlane.f32.xlu0 %v2931
        %v2933 = vpop.xlane.xlu0 %2932
        %v2934 = vrcp.pop %v2933
        %v2935 = vmul.f32 %v2930, %v2934
        %2936 = vrot.lane.b32.xlu0 %v2117, 40
        %v2937 = vpop.permute.xlu0 %2936
        %v2940 = vsel %vm797, %v2935, 0
        %2942 = vmatprep.subr.mxu0 0.0
        %2943 = vmatpush1.msra.mxu0 %v2937
        %2944 = vmatprep.subr.mxu0 0.0
        %2945 = vmatpush1.msra.mxu0 0.0
        %2946 = vmatprep.subr.mxu0 0.0
        %2947 = vmatpush1.msra.mxu0 0.0
        %2948 = vmatprep.subr.mxu0 0.0
        %2949 = vmatpush1.msra.mxu0 0.0
        %2950 = vmatprep.subr.mxu0 0.0
        %2951 = vmatpush1.msra.mxu0 0.0
        %2952 = vmatprep.subr.mxu0 0.0
        %2953 = vmatpush1.msra.mxu0 0.0
        %2954 = vmatprep.subr.mxu0 0.0
        %2955 = vmatpush1.msra.mxu0 0.0
        %2956 = vmatprep.subr.mxu0 0.0
        %2957 = vmatpush1.msra.mxu0 0.0
        %2958 = vmatprep.subr.mxu0 0.0
        %2959 = vmatpush1.msra.mxu0 0.0
        %2960 = vmatprep.subr.mxu0 0.0
        %2961 = vmatpush1.msra.mxu0 0.0
        %2962 = vmatprep.subr.mxu0 0.0
        %2963 = vmatpush1.msra.mxu0 0.0
        %2964 = vmatprep.subr.mxu0 0.0
        %2965 = vmatpush1.msra.mxu0 0.0
        %2966 = vmatprep.subr.mxu0 0.0
        %2967 = vmatpush1.msra.mxu0 0.0
        %2968 = vmatprep.subr.mxu0 0.0
        %2969 = vmatpush1.msra.mxu0 0.0
        %2970 = vmatprep.subr.mxu0 0.0
        %2971 = vmatpush1.msra.mxu0 0.0
        %2972 = vmatprep.subr.mxu0 0.0
        %2973 = vmatpush1.msra.mxu0 0.0
        %2974 = vmatprep.subr.mxu0 0.0
        %2975 = vmatpush1.msra.mxu0 0.0
        %2976 = vmatprep.subr.mxu0 0.0
        %2977 = vmatpush1.msra.mxu0 0.0
        %2978 = vmatprep.subr.mxu0 0.0
        %2979 = vmatpush1.msra.mxu0 0.0
        %2980 = vmatprep.subr.mxu0 0.0
        %2981 = vmatpush1.msra.mxu0 0.0
        %2982 = vmatprep.subr.mxu0 0.0
        %2983 = vmatpush1.msra.mxu0 0.0
        %2984 = vmatprep.subr.mxu0 0.0
        %2985 = vmatpush1.msra.mxu0 0.0
        %2986 = vmatprep.subr.mxu0 0.0
        %2987 = vmatpush1.msra.mxu0 0.0
        %2988 = vmatprep.subr.mxu0 0.0
        %2989 = vmatpush1.msra.mxu0 0.0
        %2990 = vmatprep.subr.mxu0 0.0
        %2991 = vmatpush1.msra.mxu0 0.0
        %2992 = vmatprep.subr.mxu0 0.0
        %2993 = vmatpush1.msra.mxu0 0.0
        %2994 = vmatprep.subr.mxu0 0.0
        %2995 = vmatpush1.msra.mxu0 0.0
        %2996 = vmatprep.subr.mxu0 0.0
        %2997 = vmatpush1.msra.mxu0 0.0
        %2998 = vmatprep.subr.mxu0 0.0
        %2999 = vmatpush1.msra.mxu0 0.0
        %3000 = vmatprep.subr.mxu0 0.0
        %3001 = vmatpush1.msra.mxu0 0.0
        %3002 = vmatprep.subr.mxu0 0.0
        %3003 = vmatpush1.msra.mxu0 0.0
        %3004 = vmatprep.subr.mxu0 0.0
        %3005 = vmatpush1.msra.mxu0 0.0
        %3006 = vmatprep.mubr.f32.mxu0 0.0
        %3007 = vmatmul.mubr.f32.gmra.mrb[0].mxu0 %v2940
        %v3008 = vpop.f32.mrb[0].mxu0
        %v3009 = vadd.f32 0.0, %v3008
        %v3010 = vpop.f32.mrb[0].mxu0
        %3011 = vdwg.mxu0
        %v3013 = vsel %vm797, %v3009, 0
        %3015 = vmatprep.subr.mxu0 0.0
        %3016 = vmatpush1.msra.mxu0 %v2124
        %3017 = vmatprep.subr.mxu0 0.0
        %3018 = vmatpush1.msra.mxu0 0.0
        %3019 = vmatprep.subr.mxu0 0.0
        %3020 = vmatpush1.msra.mxu0 0.0
        %3021 = vmatprep.subr.mxu0 0.0
        %3022 = vmatpush1.msra.mxu0 0.0
        %3023 = vmatprep.subr.mxu0 0.0
        %3024 = vmatpush1.msra.mxu0 0.0
        %3025 = vmatprep.subr.mxu0 0.0
        %3026 = vmatpush1.msra.mxu0 0.0
        %3027 = vmatprep.subr.mxu0 0.0
        %3028 = vmatpush1.msra.mxu0 0.0
        %3029 = vmatprep.subr.mxu0 0.0
        %3030 = vmatpush1.msra.mxu0 0.0
        %3031 = vmatprep.subr.mxu0 0.0
        %3032 = vmatpush1.msra.mxu0 0.0
        %3033 = vmatprep.subr.mxu0 0.0
        %3034 = vmatpush1.msra.mxu0 0.0
        %3035 = vmatprep.subr.mxu0 0.0
        %3036 = vmatpush1.msra.mxu0 0.0
        %3037 = vmatprep.subr.mxu0 0.0
        %3038 = vmatpush1.msra.mxu0 0.0
        %3039 = vmatprep.subr.mxu0 0.0
        %3040 = vmatpush1.msra.mxu0 0.0
        %3041 = vmatprep.subr.mxu0 0.0
        %3042 = vmatpush1.msra.mxu0 0.0
        %3043 = vmatprep.subr.mxu0 0.0
        %3044 = vmatpush1.msra.mxu0 0.0
        %3045 = vmatprep.subr.mxu0 0.0
        %3046 = vmatpush1.msra.mxu0 0.0
        %3047 = vmatprep.subr.mxu0 0.0
        %3048 = vmatpush1.msra.mxu0 0.0
        %3049 = vmatprep.subr.mxu0 0.0
        %3050 = vmatpush1.msra.mxu0 0.0
        %3051 = vmatprep.subr.mxu0 0.0
        %3052 = vmatpush1.msra.mxu0 0.0
        %3053 = vmatprep.subr.mxu0 0.0
        %3054 = vmatpush1.msra.mxu0 0.0
        %3055 = vmatprep.subr.mxu0 0.0
        %3056 = vmatpush1.msra.mxu0 0.0
        %3057 = vmatprep.subr.mxu0 0.0
        %3058 = vmatpush1.msra.mxu0 0.0
        %3059 = vmatprep.subr.mxu0 0.0
        %3060 = vmatpush1.msra.mxu0 0.0
        %3061 = vmatprep.subr.mxu0 0.0
        %3062 = vmatpush1.msra.mxu0 0.0
        %3063 = vmatprep.subr.mxu0 0.0
        %3064 = vmatpush1.msra.mxu0 0.0
        %3065 = vmatprep.subr.mxu0 0.0
        %3066 = vmatpush1.msra.mxu0 0.0
        %3067 = vmatprep.subr.mxu0 0.0
        %3068 = vmatpush1.msra.mxu0 0.0
        %3069 = vmatprep.subr.mxu0 0.0
        %3070 = vmatpush1.msra.mxu0 0.0
        %3071 = vmatprep.subr.mxu0 0.0
        %3072 = vmatpush1.msra.mxu0 0.0
        %3073 = vmatprep.subr.mxu0 0.0
        %3074 = vmatpush1.msra.mxu0 0.0
        %3075 = vmatprep.subr.mxu0 0.0
        %3076 = vmatpush1.msra.mxu0 0.0
        %3077 = vmatprep.subr.mxu0 0.0
        %3078 = vmatpush1.msra.mxu0 0.0
        %3079 = vmatprep.mubr.f32.mxu0 0.0
        %3080 = vmatmul.mubr.f32.gmra.mrb[0].mxu0 %v3013
        %v3081 = vpop.f32.mrb[0].mxu0
        %v3082 = vadd.f32 0.0, %v3081
        %v3083 = vpop.f32.mrb[0].mxu0
        %3084 = vdwg.mxu0
        %v3085 = vadd.f32 %v2844, %v3082
        %s3086 = scalar_lea.vmem %s7, 1
        %v3087 = vld [vmem:[%s3086] sm:$0x1]
        %v3089 = vlaneseq
        %v3090 = vshrl.u32 %v3089, 7
        %v3091 = vsub.s32 0, %v3090
        %v3092 = vrot.slane %v3087, %v3091
        %v3094 = vadd.f32 %v3085, %v3092
        %v3095 = vadd.f32 %v3094, %v2024
        %s3096 = scalar_lea.vmem %s8, 1
        %v3097 = vld [vmem:[%s3096] sm:$0x1]
        %s3098 = scalar_lea.vmem %s9, 1
        %v3099 = vld [vmem:[%s3098] sm:$0x1]
        %3100 = vadd.xlane.f32.xlu0 %v3095
        %v3101 = vpop.xlane.xlu0 %3100
        %v3102 = vmul.f32 %v3101, 0.03125
        %v3103 = vmul.f32 %v3095, %v3095
        %3104 = vadd.xlane.f32.xlu0 %v3103
        %v3105 = vpop.xlane.xlu0 %3104
        %v3106 = vmul.f32 %v3105, 0.03125
        %v3107 = vmul.f32 %v3102, %v3102
        %v3108 = vsub.f32 %v3106, %v3107
        %v3109 = vsub.f32 %v3095, %v3102
        %v3110 = vadd.f32 %v3108, 1e-12
        %v3111 = vrsqrt.pop %v3110
        %v3112 = vmul.f32 %v3109, %v3111
        %v3114 = vlaneseq
        %v3115 = vshrl.u32 %v3114, 7
        %v3116 = vsub.s32 0, %v3115
        %v3117 = vrot.slane %v3097, %v3116
        %v3119 = vmul.f32 %v3112, %v3117
        %v3121 = vlaneseq
        %v3122 = vshrl.u32 %v3121, 7
        %v3123 = vsub.s32 0, %v3122
        %v3124 = vrot.slane %v3099, %v3123
        %v3126 = vadd.f32 %v3119, %v3124
        %s3127 = scalar_lea.vmem [#allocation5], 128
        %v3128 = vld [vmem:[%s3127] sm:$0xff]
        %v3129 = vld [vmem:[%s3127 + $0x8] sm:$0xff]
        %v3130 = vld [vmem:[%s3127 + $0x10] sm:$0xff]
        %v3131 = vld [vmem:[%s3127 + $0x18] sm:$0xff]
        %v3132 = vld [vmem:[%s3127 + $0x20] sm:$0xff]
        %v3133 = vld [vmem:[%s3127 + $0x28] sm:$0xff]
        %v3134 = vld [vmem:[%s3127 + $0x30] sm:$0xff]
        %v3135 = vld [vmem:[%s3127 + $0x38] sm:$0xff]
        %v3136 = vld [vmem:[%s3127 + $0x40] sm:$0xff]
        %v3137 = vld [vmem:[%s3127 + $0x48] sm:$0xff]
        %v3138 = vld [vmem:[%s3127 + $0x50] sm:$0xff]
        %v3139 = vld [vmem:[%s3127 + $0x58] sm:$0xff]
        %v3140 = vld [vmem:[%s3127 + $0x60] sm:$0xff]
        %v3141 = vld [vmem:[%s3127 + $0x68] sm:$0xff]
        %v3142 = vld [vmem:[%s3127 + $0x70] sm:$0xff]
        %v3143 = vld [vmem:[%s3127 + $0x78] sm:$0xff]
        %s3144 = scalar_lea.vmem %s11, 1
        %v3145 = vld [vmem:[%s3144] sm:$0x1]
        %v3147 = vlaneseq
        %v3148 = vshrl.u32 %v3147, 7
        %v3149 = vsub.s32 0, %v3148
        %v3150 = vrot.slane %v3145, %v3149
        %3152 = vmatprep.subr.mxu0 0.0
        %3153 = vmatpush1.msra.mxu0 %v3128
        %3154 = vmatprep.subr.mxu0 0.0
        %3155 = vmatpush1.msra.mxu0 %v3129
        %3156 = vmatprep.subr.mxu0 0.0
        %3157 = vmatpush1.msra.mxu0 %v3130
        %3158 = vmatprep.subr.mxu0 0.0
        %3159 = vmatpush1.msra.mxu0 %v3131
        %3160 = vmatprep.subr.mxu0 0.0
        %3161 = vmatpush1.msra.mxu0 %v3132
        %3162 = vmatprep.subr.mxu0 0.0
        %3163 = vmatpush1.msra.mxu0 %v3133
        %3164 = vmatprep.subr.mxu0 0.0
        %3165 = vmatpush1.msra.mxu0 %v3134
        %3166 = vmatprep.subr.mxu0 0.0
        %3167 = vmatpush1.msra.mxu0 %v3135
        %3168 = vmatprep.subr.mxu0 0.0
        %3169 = vmatpush1.msra.mxu0 %v3136
        %3170 = vmatprep.subr.mxu0 0.0
        %3171 = vmatpush1.msra.mxu0 %v3137
        %3172 = vmatprep.subr.mxu0 0.0
        %3173 = vmatpush1.msra.mxu0 %v3138
        %3174 = vmatprep.subr.mxu0 0.0
        %3175 = vmatpush1.msra.mxu0 %v3139
        %3176 = vmatprep.subr.mxu0 0.0
        %3177 = vmatpush1.msra.mxu0 %v3140
        %3178 = vmatprep.subr.mxu0 0.0
        %3179 = vmatpush1.msra.mxu0 %v3141
        %3180 = vmatprep.subr.mxu0 0.0
        %3181 = vmatpush1.msra.mxu0 %v3142
        %3182 = vmatprep.subr.mxu0 0.0
        %3183 = vmatpush1.msra.mxu0 %v3143
        %3184 = vmatprep.subr.mxu0 0.0
        %3185 = vmatpush1.msra.mxu0 0.0
        %3186 = vmatprep.subr.mxu0 0.0
        %3187 = vmatpush1.msra.mxu0 0.0
        %3188 = vmatprep.subr.mxu0 0.0
        %3189 = vmatpush1.msra.mxu0 0.0
        %3190 = vmatprep.subr.mxu0 0.0
        %3191 = vmatpush1.msra.mxu0 0.0
        %3192 = vmatprep.subr.mxu0 0.0
        %3193 = vmatpush1.msra.mxu0 0.0
        %3194 = vmatprep.subr.mxu0 0.0
        %3195 = vmatpush1.msra.mxu0 0.0
        %3196 = vmatprep.subr.mxu0 0.0
        %3197 = vmatpush1.msra.mxu0 0.0
        %3198 = vmatprep.subr.mxu0 0.0
        %3199 = vmatpush1.msra.mxu0 0.0
        %3200 = vmatprep.subr.mxu0 0.0
        %3201 = vmatpush1.msra.mxu0 0.0
        %3202 = vmatprep.subr.mxu0 0.0
        %3203 = vmatpush1.msra.mxu0 0.0
        %3204 = vmatprep.subr.mxu0 0.0
        %3205 = vmatpush1.msra.mxu0 0.0
        %3206 = vmatprep.subr.mxu0 0.0
        %3207 = vmatpush1.msra.mxu0 0.0
        %3208 = vmatprep.subr.mxu0 0.0
        %3209 = vmatpush1.msra.mxu0 0.0
        %3210 = vmatprep.subr.mxu0 0.0
        %3211 = vmatpush1.msra.mxu0 0.0
        %3212 = vmatprep.subr.mxu0 0.0
        %3213 = vmatpush1.msra.mxu0 0.0
        %3214 = vmatprep.subr.mxu0 0.0
        %3215 = vmatpush1.msra.mxu0 0.0
        %3216 = vmatprep.mubr.f32.mxu0 0.0
        %3217 = vmatmul.mubr.f32.gmra.mrb[0].mxu0 %v3126
        %v3218 = vpop.f32.mrb[0].mxu0
        %v3219 = vadd.f32 %v3150, %v3218
        %v3220 = vpop.f32.mrb[0].mxu0
        %3221 = vdwg.mxu0
        %v3222 = vmul.f32 %v3219, 0.5
        %v3223 = vmul.f32 %v3219, 0.044715
        %v3224 = vmul.f32 %v3223, %v3219
        %v3225 = vmul.f32 %v3224, %v3219
        %v3226 = vadd.f32 %v3219, %v3225
        %v3227 = vmul.f32 %v3226, 0.7978846
        %v3228 = vtanh.pop %v3227
        %v3229 = vadd.f32 %v3228, 1.0
        %v3230 = vmul.f32 %v3222, %v3229
        %s3231 = scalar_lea.vmem [#allocation7], 128
        %v3232 = vld [vmem:[%s3231] sm:$0xff]
        %v3233 = vld [vmem:[%s3231 + $0x8] sm:$0xff]
        %v3234 = vld [vmem:[%s3231 + $0x10] sm:$0xff]
        %v3235 = vld [vmem:[%s3231 + $0x18] sm:$0xff]
        %v3236 = vld [vmem:[%s3231 + $0x20] sm:$0xff]
        %v3237 = vld [vmem:[%s3231 + $0x28] sm:$0xff]
        %v3238 = vld [vmem:[%s3231 + $0x30] sm:$0xff]
        %v3239 = vld [vmem:[%s3231 + $0x38] sm:$0xff]
        %v3240 = vld [vmem:[%s3231 + $0x40] sm:$0xff]
        %v3241 = vld [vmem:[%s3231 + $0x48] sm:$0xff]
        %v3242 = vld [vmem:[%s3231 + $0x50] sm:$0xff]
        %v3243 = vld [vmem:[%s3231 + $0x58] sm:$0xff]
        %v3244 = vld [vmem:[%s3231 + $0x60] sm:$0xff]
        %v3245 = vld [vmem:[%s3231 + $0x68] sm:$0xff]
        %v3246 = vld [vmem:[%s3231 + $0x70] sm:$0xff]
        %v3247 = vld [vmem:[%s3231 + $0x78] sm:$0xff]
        %s3248 = scalar_lea.vmem %s13, 1
        %v3249 = vld [vmem:[%s3248] sm:$0x1]
        %v3251 = vlaneseq
        %v3252 = vshrl.u32 %v3251, 7
        %v3253 = vsub.s32 0, %v3252
        %v3254 = vrot.slane %v3249, %v3253
        %3256 = vmatprep.subr.mxu0 0.0
        %3257 = vmatpush1.msra.mxu0 %v3232
        %3258 = vmatprep.subr.mxu0 0.0
        %3259 = vmatpush1.msra.mxu0 %v3233
        %3260 = vmatprep.subr.mxu0 0.0
        %3261 = vmatpush1.msra.mxu0 %v3234
        %3262 = vmatprep.subr.mxu0 0.0
        %3263 = vmatpush1.msra.mxu0 %v3235
        %3264 = vmatprep.subr.mxu0 0.0
        %3265 = vmatpush1.msra.mxu0 %v3236
        %3266 = vmatprep.subr.mxu0 0.0
        %3267 = vmatpush1.msra.mxu0 %v3237
        %3268 = vmatprep.subr.mxu0 0.0
        %3269 = vmatpush1.msra.mxu0 %v3238
        %3270 = vmatprep.subr.mxu0 0.0
        %3271 = vmatpush1.msra.mxu0 %v3239
        %3272 = vmatprep.subr.mxu0 0.0
        %3273 = vmatpush1.msra.mxu0 %v3240
        %3274 = vmatprep.subr.mxu0 0.0
        %3275 = vmatpush1.msra.mxu0 %v3241
        %3276 = vmatprep.subr.mxu0 0.0
        %3277 = vmatpush1.msra.mxu0 %v3242
        %3278 = vmatprep.subr.mxu0 0.0
        %3279 = vmatpush1.msra.mxu0 %v3243
        %3280 = vmatprep.subr.mxu0 0.0
        %3281 = vmatpush1.msra.mxu0 %v3244
        %3282 = vmatprep.subr.mxu0 0.0
        %3283 = vmatpush1.msra.mxu0 %v3245
        %3284 = vmatprep.subr.mxu0 0.0
        %3285 = vmatpush1.msra.mxu0 %v3246
        %3286 = vmatprep.subr.mxu0 0.0
        %3287 = vmatpush1.msra.mxu0 %v3247
        %3288 = vmatprep.subr.mxu0 0.0
        %3289 = vmatpush1.msra.mxu0 0.0
        %3290 = vmatprep.subr.mxu0 0.0
        %3291 = vmatpush1.msra.mxu0 0.0
        %3292 = vmatprep.subr.mxu0 0.0
        %3293 = vmatpush1.msra.mxu0 0.0
        %3294 = vmatprep.subr.mxu0 0.0
        %3295 = vmatpush1.msra.mxu0 0.0
        %3296 = vmatprep.subr.mxu0 0.0
        %3297 = vmatpush1.msra.mxu0 0.0
        %3298 = vmatprep.subr.mxu0 0.0
        %3299 = vmatpush1.msra.mxu0 0.0
        %3300 = vmatprep.subr.mxu0 0.0
        %3301 = vmatpush1.msra.mxu0 0.0
        %3302 = vmatprep.subr.mxu0 0.0
        %3303 = vmatpush1.msra.mxu0 0.0
        %3304 = vmatprep.subr.mxu0 0.0
        %3305 = vmatpush1.msra.mxu0 0.0
        %3306 = vmatprep.subr.mxu0 0.0
        %3307 = vmatpush1.msra.mxu0 0.0
        %3308 = vmatprep.subr.mxu0 0.0
        %3309 = vmatpush1.msra.mxu0 0.0
        %3310 = vmatprep.subr.mxu0 0.0
        %3311 = vmatpush1.msra.mxu0 0.0
        %3312 = vmatprep.subr.mxu0 0.0
        %3313 = vmatpush1.msra.mxu0 0.0
        %3314 = vmatprep.subr.mxu0 0.0
        %3315 = vmatpush1.msra.mxu0 0.0
        %3316 = vmatprep.subr.mxu0 0.0
        %3317 = vmatpush1.msra.mxu0 0.0
        %3318 = vmatprep.subr.mxu0 0.0
        %3319 = vmatpush1.msra.mxu0 0.0
        %3320 = vmatprep.mubr.f32.mxu0 0.0
        %3321 = vmatmul.mubr.f32.gmra.mrb[0].mxu0 %v3230
        %v3322 = vpop.f32.mrb[0].mxu0
        %v3323 = vadd.f32 %v3254, %v3322
        %v3324 = vpop.f32.mrb[0].mxu0
        %3325 = vdwg.mxu0
        %v3326 = vadd.f32 %v3323, %v3126
        %s3327 = scalar_lea.vmem %s14, 1
        %v3328 = vld [vmem:[%s3327] sm:$0x1]
        %s3329 = scalar_lea.vmem %s15, 1
        %v3330 = vld [vmem:[%s3329] sm:$0x1]
        %3331 = vadd.xlane.f32.xlu0 %v3326
        %v3332 = vpop.xlane.xlu0 %3331
        %v3333 = vmul.f32 %v3332, 0.03125
        %v3334 = vmul.f32 %v3326, %v3326
        %3335 = vadd.xlane.f32.xlu0 %v3334
        %v3336 = vpop.xlane.xlu0 %3335
        %v3337 = vmul.f32 %v3336, 0.03125
        %v3338 = vmul.f32 %v3333, %v3333
        %v3339 = vsub.f32 %v3337, %v3338
        %v3340 = vsub.f32 %v3326, %v3333
        %v3341 = vadd.f32 %v3339, 1e-12
        %v3342 = vrsqrt.pop %v3341
        %v3343 = vmul.f32 %v3340, %v3342
        %v3345 = vlaneseq
        %v3346 = vshrl.u32 %v3345, 7
        %v3347 = vsub.s32 0, %v3346
        %v3348 = vrot.slane %v3328, %v3347
        %v3350 = vmul.f32 %v3343, %v3348
        %v3352 = vlaneseq
        %v3353 = vshrl.u32 %v3352, 7
        %v3354 = vsub.s32 0, %v3353
        %v3355 = vrot.slane %v3330, %v3354
        %v3357 = vadd.f32 %v3350, %v3355
        %3358 = vst [vmem:[%s665] sm:$0xff] %v3357
        %v3359 = vld [vmem:[%s16] sm:$0xff]
        %v3360 = vld [vmem:[%s16 + $0x8] sm:$0xff]
        %v3361 = vld [vmem:[%s16 + $0x10] sm:$0xff]
        %v3362 = vld [vmem:[%s16 + $0x18] sm:$0xff]
        %v3363 = vld [vmem:[%s16 + $0x20] sm:$0xff]
        %v3364 = vld [vmem:[%s16 + $0x28] sm:$0xff]
        %v3365 = vld [vmem:[%s16 + $0x30] sm:$0xff]
        %v3366 = vld [vmem:[%s16 + $0x38] sm:$0xff]
        %v3367 = vld [vmem:[%s16 + $0x40] sm:$0xff]
        %v3368 = vld [vmem:[%s16 + $0x48] sm:$0xff]
        %v3369 = vld [vmem:[%s16 + $0x50] sm:$0xff]
        %v3370 = vld [vmem:[%s16 + $0x58] sm:$0xff]
        %v3371 = vld [vmem:[%s16 + $0x60] sm:$0xff]
        %v3372 = vld [vmem:[%s16 + $0x68] sm:$0xff]
        %v3373 = vld [vmem:[%s16 + $0x70] sm:$0xff]
        %v3374 = vld [vmem:[%s16 + $0x78] sm:$0xff]
        %v3375 = vld [vmem:[%s17] sm:$0x1]
        %3376 = vmatprep.subr.mxu0 0.0
        %3377 = vmatpush1.msra.mxu0 %v3359
        %3378 = vmatprep.subr.mxu0 0.0
        %3379 = vmatpush1.msra.mxu0 %v3360
        %3380 = vmatprep.subr.mxu0 0.0
        %3381 = vmatpush1.msra.mxu0 %v3361
        %3382 = vmatprep.subr.mxu0 0.0
        %3383 = vmatpush1.msra.mxu0 %v3362
        %3384 = vmatprep.subr.mxu0 0.0
        %3385 = vmatpush1.msra.mxu0 %v3363
        %3386 = vmatprep.subr.mxu0 0.0
        %3387 = vmatpush1.msra.mxu0 %v3364
        %3388 = vmatprep.subr.mxu0 0.0
        %3389 = vmatpush1.msra.mxu0 %v3365
        %3390 = vmatprep.subr.mxu0 0.0
        %3391 = vmatpush1.msra.mxu0 %v3366
        %3392 = vmatprep.subr.mxu0 0.0
        %3393 = vmatpush1.msra.mxu0 %v3367
        %3394 = vmatprep.subr.mxu0 0.0
        %3395 = vmatpush1.msra.mxu0 %v3368
        %3396 = vmatprep.subr.mxu0 0.0
        %3397 = vmatpush1.msra.mxu0 %v3369
        %3398 = vmatprep.subr.mxu0 0.0
        %3399 = vmatpush1.msra.mxu0 %v3370
        %3400 = vmatprep.subr.mxu0 0.0
        %3401 = vmatpush1.msra.mxu0 %v3371
        %3402 = vmatprep.subr.mxu0 0.0
        %3403 = vmatpush1.msra.mxu0 %v3372
        %3404 = vmatprep.subr.mxu0 0.0
        %3405 = vmatpush1.msra.mxu0 %v3373
        %3406 = vmatprep.subr.mxu0 0.0
        %3407 = vmatpush1.msra.mxu0 %v3374
        %3408 = vmatprep.subr.mxu0 0.0
        %3409 = vmatpush1.msra.mxu0 0.0
        %3410 = vmatprep.subr.mxu0 0.0
        %3411 = vmatpush1.msra.mxu0 0.0
        %3412 = vmatprep.subr.mxu0 0.0
        %3413 = vmatpush1.msra.mxu0 0.0
        %3414 = vmatprep.subr.mxu0 0.0
        %3415 = vmatpush1.msra.mxu0 0.0
        %3416 = vmatprep.subr.mxu0 0.0
        %3417 = vmatpush1.msra.mxu0 0.0
        %3418 = vmatprep.subr.mxu0 0.0
        %3419 = vmatpush1.msra.mxu0 0.0
        %3420 = vmatprep.subr.mxu0 0.0
        %3421 = vmatpush1.msra.mxu0 0.0
        %3422 = vmatprep.subr.mxu0 0.0
        %3423 = vmatpush1.msra.mxu0 0.0
        %3424 = vmatprep.subr.mxu0 0.0
        %3425 = vmatpush1.msra.mxu0 0.0
        %3426 = vmatprep.subr.mxu0 0.0
        %3427 = vmatpush1.msra.mxu0 0.0
        %3428 = vmatprep.subr.mxu0 0.0
        %3429 = vmatpush1.msra.mxu0 0.0
        %3430 = vmatprep.subr.mxu0 0.0
        %3431 = vmatpush1.msra.mxu0 0.0
        %3432 = vmatprep.subr.mxu0 0.0
        %3433 = vmatpush1.msra.mxu0 0.0
        %3434 = vmatprep.subr.mxu0 0.0
        %3435 = vmatpush1.msra.mxu0 0.0
        %3436 = vmatprep.subr.mxu0 0.0
        %3437 = vmatpush1.msra.mxu0 0.0
        %3438 = vmatprep.subr.mxu0 0.0
        %3439 = vmatpush1.msra.mxu0 0.0
        %3440 = vmatprep.mubr.f32.mxu0 0.0
        %3441 = vmatmul.mubr.f32.gmra.mrb[0].mxu0 %v3357
        %v3442 = vpop.f32.mrb[0].mxu0
        %v3443 = vadd.f32 %v3375, %v3442
        %v3444 = vpop.f32.mrb[0].mxu0
        %3445 = vdwg.mxu0
        %v3446 = vtanh.pop %v3443
        %3447 = vst [vmem:[%s654] sm:$0x1] %v3446
        %p3448 = scmp.lt.s32.totalorder %s36, 1
        %s3449 = scalar_select %p3448, %s36, 1
        %s3450 = smul.addr %s3449, 8
        %s3451 = scalar_lea.vmem %s18, %s3450
        %s3452 = sand.u32 %s458, 1
        %s3453 = scalar_lea.sflag [#allocation4], %s3452
        %s3454 = sand.u32 %s458, 1
        %s3455 = scalar_lea.vmem [#allocation8], %s3454
        // Predicated region
        $region105: #{bert_forward.1} parent=91 // pred_check
          %p3456 = pneg %p442
        $region106: #{bert_forward.1} parent=91 // pred_check_branch
          %3458 = sbr.rel (%p3456) target = $region108
        $region107: #{bert_forward.1} parent=91 // pred_region
          _
        $region108: #{bert_forward.1} parent=91 // pred_fallthru
          _
        // Predicated region
        $region109: #{bert_forward.1} parent=91 // pred_check
          %p3459 = pneg %p468
        $region110: #{bert_forward.1} parent=91 // pred_check_branch
          %3461 = sbr.rel (%p3459) target = $region112
        $region111: #{bert_forward.1} parent=91 // pred_region
          %s3463 = ssub.s32 16, 16
          %3464 = vsyncadd %s3453, %s3463
          %s3465 = smul.addr %s36, 16
          %s3466 = scalar_lea.hbm %s19, %s3465
          %s3468 = sshll.u32 %s3455, 4
          %s3469 = int_to_ptr.vmem [resolvable:$true] %s3468
          %3471 = dma.vmem_to_hbm [thread:$0]  %s3469, 16, %s3466, %s3453
        $region112: #{bert_forward.1} parent=91 // pred_fallthru
          _
      $region92: #{bert_forward.1} parent=5 // pred_fallthru
        _
      %p3472 = scmp.le.s32.totalorder 2, %s31
      // Predicated region
      $region113: #{bert_forward.1} parent=5 // pred_check
        %p3473 = pneg %p3472
      $region114: #{bert_forward.1} parent=5 // pred_check_branch
        %3475 = sbr.rel (%p3473) target = $region116
      $region115: #{bert_forward.1} parent=5 // pred_region
        %s3476 = ssub.s32 %s31, 2
        // Predicated region
        $region117: #{bert_forward.1} parent=115 // pred_check
          %p3477 = pneg %p448
        $region118: #{bert_forward.1} parent=115 // pred_check_branch
          %3479 = sbr.rel (%p3477) target = $region120
        $region119: #{bert_forward.1} parent=115 // pred_region
          %p3480 = scmp.lt.s32.totalorder %s37, 1
          %s3481 = scalar_select %p3480, %s37, 1
          %s3482 = smul.addr %s3481, 8
          %s3483 = scalar_lea.vmem %s18, %s3482
        $region120: #{bert_forward.1} parent=115 // pred_fallthru
          _
        // Predicated region
        $region121: #{bert_forward.1} parent=115 // pred_check
          %p3484 = pneg %p474
        $region122: #{bert_forward.1} parent=115 // pred_check_branch
          %3486 = sbr.rel (%p3484) target = $region124
        $region123: #{bert_forward.1} parent=115 // pred_region
          %s3487 = sand.u32 %s459, 1
          %s3488 = scalar_lea.sflag [#allocation4], %s3487
          %s3489 = sand.u32 %s459, 1
          %s3490 = scalar_lea.vmem [#allocation8], %s3489
          %3491 = dma.done %s3488, 16
        $region124: #{bert_forward.1} parent=115 // pred_fallthru
          _
      $region116: #{bert_forward.1} parent=5 // pred_fallthru
        _
    $region6: #{bert_forward.1} parent=1 // loop_footer
      %s35 = sadd.s32 1, %s31
    $region7: #{bert_forward.1} parent=1 // loop_footer_branch
      %30 = sbr.rel target = $region3
    $region8: #{bert_forward.1} parent=1 // loop_exit
      _
    %3492 = vsyncpa [#allocation3], 1
    %s3493 = scalar_lea.sflag [#allocation3], 1
    %3494 = vsyncpa %s3493, 1
    %3495 = vsyncpa [#allocation6], 1
    %3496 = vsyncpa [#allocation4], 1
    %s3497 = scalar_lea.sflag [#allocation4], 1
    %3498 = vsyncpa %s3497, 1

</llo_original>
